<compile_context>
chip_gen: v7x
topology: tpu7x:2x2x1
jax: 0.10.0
libtpu: 0.0.40
codegen_flags: <defaults>
</compile_context>

<pallas_src>
import functools

import jax
import jax.numpy as jnp
from jax.experimental import pallas as pl
from jax.experimental.pallas import tpu as pltpu

NEG = -1e9
P = 128  # lane padding for per-head q/k/v and for the classifier output


# ------------------------- in-kernel helper math ---------------------------

def _layer_norm_2d(x, g, b, eps=1e-12):
    mu = jnp.mean(x, axis=-1, keepdims=True)
    var = jnp.mean((x - mu) * (x - mu), axis=-1, keepdims=True)
    return (x - mu) * jax.lax.rsqrt(var + eps) * g + b


def _gelu(x):
    # tanh-approximate GELU. TODO(synk): exact erf GELU not used in-kernel.
    c = 0.7978845608028654  # sqrt(2/pi)
    return 0.5 * x * (1.0 + jnp.tanh(c * (x + 0.044715 * x * x * x)))


# --------------------- fully fused forward kernel (1 launch) ----------------

def _fused_kernel(B, S, num_layers, num_heads, target_len,
                  ids_ref, mask_ref, blockbias_ref, wemb_ref, pete_ref,
                  embg_ref, embb_ref,
                  wqkv_ref, bqkv_ref, wo_ref, bo_ref,
                  ln1g_ref, ln1b_ref, w1_ref, b1_ref, w2_ref, b2_ref,
                  ln2g_ref, ln2b_ref,
                  decin_ref, gruw_ref, grub_ref, fcw_ref, fcb_ref, decemb_ref,
                  out_ref):
    BS = B * S
    V, H = wemb_ref.shape
    dh = H // num_heads
    scale = 1.0 / float(dh) ** 0.5

    # ---- token embeddings: one-hot "gather" on the MXU, then LayerNorm ----
    ids = ids_ref[...]                                         # (BS, 1) int32
    vocab_iota = jax.lax.broadcasted_iota(jnp.int32, (BS, V), 1)
    onehot_tok = (vocab_iota == ids).astype(jnp.float32)       # (BS, V)
    x = jnp.dot(onehot_tok, wemb_ref[...],
                preferred_element_type=jnp.float32)            # (BS, H)
    x = _layer_norm_2d(x + pete_ref[...], embg_ref[...], embb_ref[...])

    # ---- attention bias: padding mask + cross-batch block mask ------------
    pad_bias = (1.0 - mask_ref[...].astype(jnp.float32)) * NEG   # (1, BS)
    bias = blockbias_ref[...] + pad_bias                         # (BS, BS)

    # ---- transformer encoder, fully unrolled, vreg/VMEM resident ----------
    for l in range(num_layers):
        # fused QKV projection, head-major with 128-lane padded heads
        qkv = (jnp.dot(x.astype(jnp.bfloat16), wqkv_ref[l],
                       preferred_element_type=jnp.float32) + bqkv_ref[l])
        ctx_heads = []
        for h in range(num_heads):
            base = h * 3 * P                      # vreg-aligned head slices
            q = qkv[:, base:base + P]
            k = qkv[:, base + P:base + 2 * P]
            v = qkv[:, base + 2 * P:base + 3 * P]
            s = jax.lax.dot_general(q, k, (((1,), (1,)), ((), ())),
                                    preferred_element_type=jnp.float32)
            s = s * scale + bias
            s = s - jnp.max(s, axis=-1, keepdims=True)
            p = jnp.exp(s)
            p = p / jnp.sum(p, axis=-1, keepdims=True)
            ctx_heads.append(jnp.dot(p, v, preferred_element_type=jnp.float32))
        ctx = jnp.concatenate(ctx_heads, axis=-1)               # (BS, nh*128)
        attn = (jnp.dot(ctx.astype(jnp.bfloat16), wo_ref[l],
                        preferred_element_type=jnp.float32) + bo_ref[l])
        x = _layer_norm_2d(x + attn, ln1g_ref[l], ln1b_ref[l])

        ff = (jnp.dot(x.astype(jnp.bfloat16), w1_ref[l],
                      preferred_element_type=jnp.float32) + b1_ref[l])
        ff = _gelu(ff)
        ff = (jnp.dot(ff.astype(jnp.bfloat16), w2_ref[l],
                      preferred_element_type=jnp.float32) + b2_ref[l])
        x = _layer_norm_2d(x + ff, ln2g_ref[l], ln2b_ref[l])

    # ---- hidden = last sequence position of every batch row (in-kernel) ---
    hidden = jnp.concatenate(
        [x[b * S + S - 1: b * S + S, :] for b in range(B)], axis=0)   # (B, H)

    # ---- greedy GRU decode, fully unrolled; lane-dense padded logits ------
    h_state = hidden
    x_dec = decin_ref[...]                                     # (B, H)
    gbias = grub_ref[...]                                      # (1, 6H)
    lane_idx = jax.lax.broadcasted_iota(jnp.int32, (B, P), 1)
    for t in range(target_len):
        # one block-diagonal MXU op: [x | h] @ [[W_ih, 0], [0, W_hh]]
        xh = jnp.concatenate([x_dec, h_state], axis=1).astype(jnp.bfloat16)
        g = jnp.dot(xh, gruw_ref[...], preferred_element_type=jnp.float32) + gbias
        i_r, i_z, i_n = g[:, 0:H], g[:, H:2 * H], g[:, 2 * H:3 * H]
        h_r, h_z, h_n = g[:, 3 * H:4 * H], g[:, 4 * H:5 * H], g[:, 5 * H:6 * H]
        r = jax.nn.sigmoid(i_r + h_r)
        z = jax.nn.sigmoid(i_z + h_z)
        n = jnp.tanh(i_n + r * h_n)
        h_state = (1.0 - z) * n + z * h_state

        logits = (jnp.dot(h_state.astype(jnp.bfloat16), fcw_ref[...],
                          preferred_element_type=jnp.float32) + fcb_ref[...])
        out_ref[t * B:(t + 1) * B, :] = logits                 # (B, 128) lane-dense

        if t + 1 < target_len:
            # greedy argmax (first max) over 128 lanes; padded cols hold -1e9
            m = jnp.max(logits, axis=-1, keepdims=True)
            top = jnp.min(jnp.where(logits == m, lane_idx, P),
                          axis=-1, keepdims=True)
            onehot_cls = (lane_idx == top).astype(jnp.float32)
            # "embedding gather" of the argmax token = one-hot @ (128, H)
            x_dec = jnp.dot(onehot_cls, decemb_ref[...],
                            preferred_element_type=jnp.float32)


def date_conversion_forward(cfg, kin, input_ids, attention_mask):
    """Matches DateConversionModelv2.forward with targets=None (greedy decode).

    Dropout is identity (eval mode).
    # TODO(synk): teacher-forcing branch (targets + torch.rand coin flip) not
    # implemented; with targets=None the reference always decodes greedily.
    """
    B, S = input_ids.shape
    T, C = cfg["target_len"], cfg["num_classes"]
    ids = input_ids.reshape(B * S, 1).astype(jnp.int32)
    mask = attention_mask.reshape(1, B * S).astype(jnp.int32)

    kern = functools.partial(_fused_kernel, B, S, cfg["num_layers"],
                             cfg["num_heads"], T)
    out = pl.pallas_call(
        kern,
        out_shape=jax.ShapeDtypeStruct((T * B, P), jnp.float32),
        in_specs=[pl.BlockSpec(memory_space=pltpu.MemorySpace.VMEM)] * 25,
        out_specs=pl.BlockSpec(memory_space=pltpu.MemorySpace.VMEM),
    )(ids, mask, kin["block_bias"], kin["word_emb"], kin["pe_te"],
      kin["emb_ln_g"], kin["emb_ln_b"],
      kin["wqkv"], kin["bqkv"], kin["wo"], kin["bo"],
      kin["ln1_g"], kin["ln1_b"], kin["w1"], kin["b1"],
      kin["w2"], kin["b2"], kin["ln2_g"], kin["ln2_b"],
      kin["dec_in0"], kin["gru_w"], kin["gru_b"],
      kin["fc_w"], kin["fc_b"], kin["dec_emb"])
    # (T*B, 128) -> (B, T, C); slice off the lane padding in the wrapper
    return out.reshape(T, B, P).transpose(1, 0, 2)[:, :, :C]


# --------------------------- parameter init --------------------------------

def init_params(key, vocab=64, hidden=32, heads=2, ffn=64, num_layers=2,
                max_pos=16, num_classes=12, target_len=4, cls_token_id=1):
    keys = iter(jax.random.split(key, 64))

    def nrm(shape, scale=0.02):
        return (scale * jax.random.normal(next(keys), shape)).astype(jnp.float32)

    H, F, L = hidden, ffn, num_layers
    cfg = dict(vocab=vocab, hidden=H, ffn=F, num_heads=heads, num_layers=L,
               max_pos=max_pos, num_classes=num_classes, target_len=target_len,
               cls_token_id=cls_token_id)
    params = dict(
        word_emb=nrm((vocab, H)),
        pos_emb=nrm((max_pos, H)),
        type_emb=nrm((2, H)),
        emb_ln_g=jnp.ones((H,), jnp.float32),
        emb_ln_b=jnp.zeros((H,), jnp.float32),
        wq=nrm((L, H, H)), bq=jnp.zeros((L, H), jnp.float32),
        wk=nrm((L, H, H)), bk=jnp.zeros((L, H), jnp.float32),
        wv=nrm((L, H, H)), bv=jnp.zeros((L, H), jnp.float32),
        wo=nrm((L, H, H)), bo=jnp.zeros((L, H), jnp.float32),
        ln1_g=jnp.ones((L, H), jnp.float32), ln1_b=jnp.zeros((L, H), jnp.float32),
        w1=nrm((L, H, F)), b1=jnp.zeros((L, F), jnp.float32),
        w2=nrm((L, F, H)), b2=jnp.zeros((L, H), jnp.float32),
        ln2_g=jnp.ones((L, H), jnp.float32), ln2_b=jnp.zeros((L, H), jnp.float32),
        gru_w_ih=nrm((H, 3 * H)), gru_b_ih=nrm((3 * H,)),
        gru_w_hh=nrm((H, 3 * H)), gru_b_hh=nrm((3 * H,)),
        fc_w=nrm((H, num_classes)), fc_b=jnp.zeros((num_classes,), jnp.float32),
    )
    return cfg, params


def _bert_embed_rows(params, token_ids):
    """BERT-style embedding for single-token sequences at position 0 (f32)."""
    x = (params["word_emb"][token_ids] + params["pos_emb"][0][None, :]
         + params["type_emb"][0][None, :])
    mu = jnp.mean(x, -1, keepdims=True)
    var = jnp.mean((x - mu) ** 2, -1, keepdims=True)
    return ((x - mu) * jax.lax.rsqrt(var + 1e-12) * params["emb_ln_g"]
            + params["emb_ln_b"])


def prepare_kernel_inputs(cfg, params, batch, seq_len):
    """One-time packing of params into kernel-ready layouts (hoisted constants)."""
    H, L = cfg["hidden"], cfg["num_layers"]
    nh, C = cfg["num_heads"], cfg["num_classes"]
    dh = H // nh
    BS = batch * seq_len

    # head-major, 128-lane padded fused QKV weight/bias and output projection
    wqkv = jnp.zeros((L, H, nh * 3 * P), jnp.float32)
    bqkv = jnp.zeros((L, 1, nh * 3 * P), jnp.float32)
    wo_p = jnp.zeros((L, nh * P, H), jnp.float32)
    for h in range(nh):
        sl = slice(h * dh, (h + 1) * dh)
        base = h * 3 * P
        wqkv = wqkv.at[:, :, base:base + dh].set(params["wq"][:, :, sl])
        wqkv = wqkv.at[:, :, base + P:base + P + dh].set(params["wk"][:, :, sl])
        wqkv = wqkv.at[:, :, base + 2 * P:base + 2 * P + dh].set(params["wv"][:, :, sl])
        bqkv = bqkv.at[:, 0, base:base + dh].set(params["bq"][:, sl])
        bqkv = bqkv.at[:, 0, base + P:base + P + dh].set(params["bk"][:, sl])
        bqkv = bqkv.at[:, 0, base + 2 * P:base + 2 * P + dh].set(params["bv"][:, sl])
        wo_p = wo_p.at[:, h * P:h * P + dh, :].set(params["wo"][:, sl, :])

    # GRU block-diagonal packing so [x | h] @ W yields [x@Wih | h@Whh]
    w_cat = jnp.zeros((2 * H, 6 * H), jnp.float32)
    w_cat = w_cat.at[:H, :3 * H].set(params["gru_w_ih"])
    w_cat = w_cat.at[H:, 3 * H:].set(params["gru_w_hh"])
    b_cat = jnp.concatenate([params["gru_b_ih"], params["gru_b_hh"]])[None, :]

    # classifier padded to 128 lanes; padding bias -1e9 so argmax ignores it
    fc_w = jnp.zeros((H, P), jnp.float32).at[:, :C].set(params["fc_w"])
    fc_b = jnp.full((1, P), NEG, jnp.float32).at[0, :C].set(params["fc_b"])

    # decoder constants (param-only -> computed once, not per forward call)
    dec_in0 = jnp.tile(
        _bert_embed_rows(params, jnp.array([cfg["cls_token_id"]])), (batch, 1))
    dec_emb = jnp.zeros((P, H), jnp.float32).at[:C, :].set(
        _bert_embed_rows(params, jnp.arange(C)))

    # pre-LayerNorm positional + token-type rows, tiled over batch
    pe_te = jnp.tile(params["pos_emb"][:seq_len] + params["type_emb"][0][None, :],
                     (batch, 1))

    # cross-batch block mask: the flattened (B*S, B*S) attention covers all
    # batches in one matmul; off-block entries get -1e9
    bidx = jnp.arange(BS) // seq_len
    block_bias = jnp.where(bidx[:, None] == bidx[None, :], 0.0, NEG).astype(jnp.float32)

    bf = jnp.bfloat16
    return dict(
        word_emb=params["word_emb"], pe_te=pe_te,
        emb_ln_g=params["emb_ln_g"][None, :], emb_ln_b=params["emb_ln_b"][None, :],
        block_bias=block_bias,
        wqkv=wqkv.astype(bf), bqkv=bqkv,
        wo=wo_p.astype(bf), bo=params["bo"][:, None, :],
        ln1_g=params["ln1_g"][:, None, :], ln1_b=params["ln1_b"][:, None, :],
        w1=params["w1"].astype(bf), b1=params["b1"][:, None, :],
        w2=params["w2"].astype(bf), b2=params["b2"][:, None, :],
        ln2_g=params["ln2_g"][:, None, :], ln2_b=params["ln2_b"][:, None, :],
        dec_in0=dec_in0,
        gru_w=w_cat.astype(bf), gru_b=b_cat,
        fc_w=fc_w.astype(bf), fc_b=fc_b,
        dec_emb=dec_emb,
    )


# --------------------------------- main -------------------------------------

if __name__ == "__main__":
    key = jax.random.PRNGKey(0)
    pkey, ikey = jax.random.split(key)

    B, S = 2, 8
    VOCAB, HIDDEN, NUM_CLASSES, TARGET_LEN = 64, 32, 12, 4

    cfg, params = init_params(pkey, vocab=VOCAB, hidden=HIDDEN, heads=2,
                              ffn=64, num_layers=2, max_pos=16,
                              num_classes=NUM_CLASSES, target_len=TARGET_LEN,
                              cls_token_id=1)
    kin = prepare_kernel_inputs(cfg, params, B, S)   # one-time, hoisted

    input_ids = jax.random.randint(ikey, (B, S), 0, VOCAB, dtype=jnp.int32)
    attention_mask = jnp.ones((B, S), jnp.int32).at[1, 6:].set(0)  # pad row 1

    forward = jax.jit(functools.partial(date_conversion_forward, cfg))
    logits = forward(kin, input_ids, attention_mask)
    logits = jax.block_until_ready(logits)

    assert logits.shape == (B, TARGET_LEN, NUM_CLASSES), logits.shape
    assert bool(jnp.all(jnp.isfinite(logits)))
    print("KERNEL_OK")
</pallas_src>

<mosaic_0001>
module attributes {stable_mosaic.version = 11 : i64} {
  func.func @_fused_kernel(%arg0: memref<16x1xi32, #tpu.memory_space<vmem>>, %arg1: memref<1x16xi32, #tpu.memory_space<vmem>>, %arg2: memref<16x16xf32, #tpu.memory_space<vmem>>, %arg3: memref<64x32xf32, #tpu.memory_space<vmem>>, %arg4: memref<16x32xf32, #tpu.memory_space<vmem>>, %arg5: memref<1x32xf32, #tpu.memory_space<vmem>>, %arg6: memref<1x32xf32, #tpu.memory_space<vmem>>, %arg7: memref<2x32x768xbf16, #tpu.memory_space<vmem>>, %arg8: memref<2x1x768xf32, #tpu.memory_space<vmem>>, %arg9: memref<2x256x32xbf16, #tpu.memory_space<vmem>>, %arg10: memref<2x1x32xf32, #tpu.memory_space<vmem>>, %arg11: memref<2x1x32xf32, #tpu.memory_space<vmem>>, %arg12: memref<2x1x32xf32, #tpu.memory_space<vmem>>, %arg13: memref<2x32x64xbf16, #tpu.memory_space<vmem>>, %arg14: memref<2x1x64xf32, #tpu.memory_space<vmem>>, %arg15: memref<2x64x32xbf16, #tpu.memory_space<vmem>>, %arg16: memref<2x1x32xf32, #tpu.memory_space<vmem>>, %arg17: memref<2x1x32xf32, #tpu.memory_space<vmem>>, %arg18: memref<2x1x32xf32, #tpu.memory_space<vmem>>, %arg19: memref<2x32xf32, #tpu.memory_space<vmem>>, %arg20: memref<64x192xbf16, #tpu.memory_space<vmem>>, %arg21: memref<1x192xf32, #tpu.memory_space<vmem>>, %arg22: memref<32x128xbf16, #tpu.memory_space<vmem>>, %arg23: memref<1x128xf32, #tpu.memory_space<vmem>>, %arg24: memref<128x32xf32, #tpu.memory_space<vmem>>, %arg25: memref<8x128xf32, #tpu.memory_space<vmem>>) attributes {dimension_semantics = [], scalar_prefetch = 0 : i64, scratch_operands = 0 : i64, tpu.core_type = #tpu.core_type<tc>} {
    %c0 = arith.constant 0 : index
    %c0_0 = arith.constant 0 : index
    %0 = vector.load %arg0[%c0, %c0_0] : memref<16x1xi32, #tpu.memory_space<vmem>>, vector<16x1xi32>
    %1 = tpu.iota {dimensions = array<i32: 1>} : vector<16x64xi32>
    %2 = vector.broadcast %0 : vector<16x1xi32> to vector<16x64xi32>
    %3 = arith.cmpi eq, %1, %2 : vector<16x64xi32>
    %4 = arith.extui %3 : vector<16x64xi1> to vector<16x64xi32>
    %5 = arith.sitofp %4 : vector<16x64xi32> to vector<16x64xf32>
    %c0_1 = arith.constant 0 : index
    %c0_2 = arith.constant 0 : index
    %6 = vector.load %arg3[%c0_1, %c0_2] : memref<64x32xf32, #tpu.memory_space<vmem>>, vector<64x32xf32>
    %cst = arith.constant dense<0.000000e+00> : vector<16x32xf32>
    %7 = tpu.matmul %5, %6, %cst {dimension_numbers = #tpu.dot_dimension_numbers<[1], [0], [0], [1], [0, 0, 1, 1], [], []>} : vector<16x64xf32>, vector<64x32xf32>, vector<16x32xf32> -> vector<16x32xf32>
    %c0_3 = arith.constant 0 : index
    %c0_4 = arith.constant 0 : index
    %8 = vector.load %arg4[%c0_3, %c0_4] : memref<16x32xf32, #tpu.memory_space<vmem>>, vector<16x32xf32>
    %9 = arith.addf %7, %8 : vector<16x32xf32>
    %c0_5 = arith.constant 0 : index
    %c0_6 = arith.constant 0 : index
    %10 = vector.load %arg5[%c0_5, %c0_6] : memref<1x32xf32, #tpu.memory_space<vmem>>, vector<1x32xf32>
    %c0_7 = arith.constant 0 : index
    %c0_8 = arith.constant 0 : index
    %11 = vector.load %arg6[%c0_7, %c0_8] : memref<1x32xf32, #tpu.memory_space<vmem>>, vector<1x32xf32>
    %cst_9 = arith.constant dense<0.000000e+00> : vector<16xf32>
    %12 = vector.multi_reduction <add>, %9, %cst_9 [1] : vector<16x32xf32> to vector<16xf32>
    %13 = vector.shape_cast %12 : vector<16xf32> to vector<16x1xf32>
    %cst_10 = arith.constant 3.200000e+01 : f32
    %14 = vector.broadcast %cst_10 : f32 to vector<16x1xf32>
    %15 = arith.divf %13, %14 : vector<16x1xf32>
    %16 = vector.broadcast %15 : vector<16x1xf32> to vector<16x32xf32>
    %17 = arith.subf %9, %16 : vector<16x32xf32>
    %18 = vector.broadcast %15 : vector<16x1xf32> to vector<16x32xf32>
    %19 = arith.subf %9, %18 : vector<16x32xf32>
    %20 = arith.mulf %17, %19 : vector<16x32xf32>
    %cst_11 = arith.constant dense<0.000000e+00> : vector<16xf32>
    %21 = vector.multi_reduction <add>, %20, %cst_11 [1] : vector<16x32xf32> to vector<16xf32>
    %22 = vector.shape_cast %21 : vector<16xf32> to vector<16x1xf32>
    %cst_12 = arith.constant 3.200000e+01 : f32
    %23 = vector.broadcast %cst_12 : f32 to vector<16x1xf32>
    %24 = arith.divf %22, %23 : vector<16x1xf32>
    %25 = vector.broadcast %15 : vector<16x1xf32> to vector<16x32xf32>
    %26 = arith.subf %9, %25 : vector<16x32xf32>
    %cst_13 = arith.constant 9.99999996E-13 : f32
    %27 = vector.broadcast %cst_13 : f32 to vector<16x1xf32>
    %28 = arith.addf %24, %27 : vector<16x1xf32>
    %29 = math.rsqrt %28 : vector<16x1xf32>
    %30 = vector.broadcast %29 : vector<16x1xf32> to vector<16x32xf32>
    %31 = arith.mulf %26, %30 : vector<16x32xf32>
    %32 = vector.broadcast %10 : vector<1x32xf32> to vector<16x32xf32>
    %33 = arith.mulf %31, %32 : vector<16x32xf32>
    %34 = vector.broadcast %11 : vector<1x32xf32> to vector<16x32xf32>
    %35 = arith.addf %33, %34 : vector<16x32xf32>
    %c0_14 = arith.constant 0 : index
    %c0_15 = arith.constant 0 : index
    %36 = vector.load %arg1[%c0_14, %c0_15] : memref<1x16xi32, #tpu.memory_space<vmem>>, vector<1x16xi32>
    %37 = arith.sitofp %36 : vector<1x16xi32> to vector<1x16xf32>
    %cst_16 = arith.constant 1.000000e+00 : f32
    %38 = vector.broadcast %cst_16 : f32 to vector<1x16xf32>
    %39 = arith.subf %38, %37 : vector<1x16xf32>
    %cst_17 = arith.constant -1.000000e+09 : f32
    %40 = vector.broadcast %cst_17 : f32 to vector<1x16xf32>
    %41 = arith.mulf %39, %40 : vector<1x16xf32>
    %c0_18 = arith.constant 0 : index
    %c0_19 = arith.constant 0 : index
    %42 = vector.load %arg2[%c0_18, %c0_19] : memref<16x16xf32, #tpu.memory_space<vmem>>, vector<16x16xf32>
    %43 = vector.broadcast %41 : vector<1x16xf32> to vector<16x16xf32>
    %44 = arith.addf %42, %43 : vector<16x16xf32>
    %45 = arith.truncf %35 : vector<16x32xf32> to vector<16x32xbf16>
    %c0_20 = arith.constant 0 : index
    %c0_21 = arith.constant 0 : index
    %c0_22 = arith.constant 0 : index
    %46 = vector.load %arg7[%c0_20, %c0_21, %c0_22] : memref<2x32x768xbf16, #tpu.memory_space<vmem>>, vector<1x32x768xbf16>
    %47 = vector.shape_cast %46 : vector<1x32x768xbf16> to vector<32x768xbf16>
    %cst_23 = arith.constant dense<0.000000e+00> : vector<16x768xf32>
    %48 = tpu.matmul %45, %47, %cst_23 {dimension_numbers = #tpu.dot_dimension_numbers<[1], [0], [0], [1], [0, 0, 1, 1], [], []>} : vector<16x32xbf16>, vector<32x768xbf16>, vector<16x768xf32> -> vector<16x768xf32>
    %c0_24 = arith.constant 0 : index
    %c0_25 = arith.constant 0 : index
    %c0_26 = arith.constant 0 : index
    %49 = vector.load %arg8[%c0_24, %c0_25, %c0_26] : memref<2x1x768xf32, #tpu.memory_space<vmem>>, vector<1x1x768xf32>
    %50 = vector.shape_cast %49 : vector<1x1x768xf32> to vector<1x768xf32>
    %51 = vector.broadcast %50 : vector<1x768xf32> to vector<16x768xf32>
    %52 = arith.addf %48, %51 : vector<16x768xf32>
    %53 = vector.extract_strided_slice %52 {offsets = [0, 0], sizes = [16, 128], strides = [1, 1]} : vector<16x768xf32> to vector<16x128xf32>
    %54 = vector.extract_strided_slice %52 {offsets = [0, 128], sizes = [16, 128], strides = [1, 1]} : vector<16x768xf32> to vector<16x128xf32>
    %55 = vector.extract_strided_slice %52 {offsets = [0, 256], sizes = [16, 128], strides = [1, 1]} : vector<16x768xf32> to vector<16x128xf32>
    %cst_27 = arith.constant dense<0.000000e+00> : vector<16x16xf32>
    %56 = tpu.matmul %53, %54, %cst_27 {dimension_numbers = #tpu.dot_dimension_numbers<[1], [1], [0], [0], [0, 0, 1, 0], [], []>} : vector<16x128xf32>, vector<16x128xf32>, vector<16x16xf32> -> vector<16x16xf32>
    %cst_28 = arith.constant 2.500000e-01 : f32
    %57 = vector.broadcast %cst_28 : f32 to vector<16x16xf32>
    %58 = arith.mulf %56, %57 : vector<16x16xf32>
    %59 = arith.addf %58, %44 : vector<16x16xf32>
    %cst_29 = arith.constant dense<0xFF800000> : vector<16xf32>
    %60 = vector.multi_reduction <maximumf>, %59, %cst_29 [1] : vector<16x16xf32> to vector<16xf32>
    %61 = vector.shape_cast %60 : vector<16xf32> to vector<16x1xf32>
    %62 = vector.broadcast %61 : vector<16x1xf32> to vector<16x16xf32>
    %63 = arith.subf %59, %62 : vector<16x16xf32>
    %64 = math.exp %63 : vector<16x16xf32>
    %cst_30 = arith.constant dense<0.000000e+00> : vector<16xf32>
    %65 = vector.multi_reduction <add>, %64, %cst_30 [1] : vector<16x16xf32> to vector<16xf32>
    %66 = vector.shape_cast %65 : vector<16xf32> to vector<16x1xf32>
    %67 = vector.broadcast %66 : vector<16x1xf32> to vector<16x16xf32>
    %68 = arith.divf %64, %67 : vector<16x16xf32>
    %cst_31 = arith.constant dense<0.000000e+00> : vector<16x128xf32>
    %69 = tpu.matmul %68, %55, %cst_31 {dimension_numbers = #tpu.dot_dimension_numbers<[1], [0], [0], [1], [0, 0, 1, 1], [], []>} : vector<16x16xf32>, vector<16x128xf32>, vector<16x128xf32> -> vector<16x128xf32>
    %70 = vector.extract_strided_slice %52 {offsets = [0, 384], sizes = [16, 128], strides = [1, 1]} : vector<16x768xf32> to vector<16x128xf32>
    %71 = vector.extract_strided_slice %52 {offsets = [0, 512], sizes = [16, 128], strides = [1, 1]} : vector<16x768xf32> to vector<16x128xf32>
    %72 = vector.extract_strided_slice %52 {offsets = [0, 640], sizes = [16, 128], strides = [1, 1]} : vector<16x768xf32> to vector<16x128xf32>
    %cst_32 = arith.constant dense<0.000000e+00> : vector<16x16xf32>
    %73 = tpu.matmul %70, %71, %cst_32 {dimension_numbers = #tpu.dot_dimension_numbers<[1], [1], [0], [0], [0, 0, 1, 0], [], []>} : vector<16x128xf32>, vector<16x128xf32>, vector<16x16xf32> -> vector<16x16xf32>
    %cst_33 = arith.constant 2.500000e-01 : f32
    %74 = vector.broadcast %cst_33 : f32 to vector<16x16xf32>
    %75 = arith.mulf %73, %74 : vector<16x16xf32>
    %76 = arith.addf %75, %44 : vector<16x16xf32>
    %cst_34 = arith.constant dense<0xFF800000> : vector<16xf32>
    %77 = vector.multi_reduction <maximumf>, %76, %cst_34 [1] : vector<16x16xf32> to vector<16xf32>
    %78 = vector.shape_cast %77 : vector<16xf32> to vector<16x1xf32>
    %79 = vector.broadcast %78 : vector<16x1xf32> to vector<16x16xf32>
    %80 = arith.subf %76, %79 : vector<16x16xf32>
    %81 = math.exp %80 : vector<16x16xf32>
    %cst_35 = arith.constant dense<0.000000e+00> : vector<16xf32>
    %82 = vector.multi_reduction <add>, %81, %cst_35 [1] : vector<16x16xf32> to vector<16xf32>
    %83 = vector.shape_cast %82 : vector<16xf32> to vector<16x1xf32>
    %84 = vector.broadcast %83 : vector<16x1xf32> to vector<16x16xf32>
    %85 = arith.divf %81, %84 : vector<16x16xf32>
    %cst_36 = arith.constant dense<0.000000e+00> : vector<16x128xf32>
    %86 = tpu.matmul %85, %72, %cst_36 {dimension_numbers = #tpu.dot_dimension_numbers<[1], [0], [0], [1], [0, 0, 1, 1], [], []>} : vector<16x16xf32>, vector<16x128xf32>, vector<16x128xf32> -> vector<16x128xf32>
    %87 = tpu.concatenate %69, %86 in 1 : vector<16x128xf32>, vector<16x128xf32> -> vector<16x256xf32>
    %88 = arith.truncf %87 : vector<16x256xf32> to vector<16x256xbf16>
    %c0_37 = arith.constant 0 : index
    %c0_38 = arith.constant 0 : index
    %c0_39 = arith.constant 0 : index
    %89 = vector.load %arg9[%c0_37, %c0_38, %c0_39] : memref<2x256x32xbf16, #tpu.memory_space<vmem>>, vector<1x256x32xbf16>
    %90 = vector.shape_cast %89 : vector<1x256x32xbf16> to vector<256x32xbf16>
    %cst_40 = arith.constant dense<0.000000e+00> : vector<16x32xf32>
    %91 = tpu.matmul %88, %90, %cst_40 {dimension_numbers = #tpu.dot_dimension_numbers<[1], [0], [0], [1], [0, 0, 1, 1], [], []>} : vector<16x256xbf16>, vector<256x32xbf16>, vector<16x32xf32> -> vector<16x32xf32>
    %c0_41 = arith.constant 0 : index
    %c0_42 = arith.constant 0 : index
    %c0_43 = arith.constant 0 : index
    %92 = vector.load %arg10[%c0_41, %c0_42, %c0_43] : memref<2x1x32xf32, #tpu.memory_space<vmem>>, vector<1x1x32xf32>
    %93 = vector.shape_cast %92 : vector<1x1x32xf32> to vector<1x32xf32>
    %94 = vector.broadcast %93 : vector<1x32xf32> to vector<16x32xf32>
    %95 = arith.addf %91, %94 : vector<16x32xf32>
    %96 = arith.addf %35, %95 : vector<16x32xf32>
    %c0_44 = arith.constant 0 : index
    %c0_45 = arith.constant 0 : index
    %c0_46 = arith.constant 0 : index
    %97 = vector.load %arg11[%c0_44, %c0_45, %c0_46] : memref<2x1x32xf32, #tpu.memory_space<vmem>>, vector<1x1x32xf32>
    %98 = vector.shape_cast %97 : vector<1x1x32xf32> to vector<1x32xf32>
    %c0_47 = arith.constant 0 : index
    %c0_48 = arith.constant 0 : index
    %c0_49 = arith.constant 0 : index
    %99 = vector.load %arg12[%c0_47, %c0_48, %c0_49] : memref<2x1x32xf32, #tpu.memory_space<vmem>>, vector<1x1x32xf32>
    %100 = vector.shape_cast %99 : vector<1x1x32xf32> to vector<1x32xf32>
    %cst_50 = arith.constant dense<0.000000e+00> : vector<16xf32>
    %101 = vector.multi_reduction <add>, %96, %cst_50 [1] : vector<16x32xf32> to vector<16xf32>
    %102 = vector.shape_cast %101 : vector<16xf32> to vector<16x1xf32>
    %cst_51 = arith.constant 3.200000e+01 : f32
    %103 = vector.broadcast %cst_51 : f32 to vector<16x1xf32>
    %104 = arith.divf %102, %103 : vector<16x1xf32>
    %105 = vector.broadcast %104 : vector<16x1xf32> to vector<16x32xf32>
    %106 = arith.subf %96, %105 : vector<16x32xf32>
    %107 = vector.broadcast %104 : vector<16x1xf32> to vector<16x32xf32>
    %108 = arith.subf %96, %107 : vector<16x32xf32>
    %109 = arith.mulf %106, %108 : vector<16x32xf32>
    %cst_52 = arith.constant dense<0.000000e+00> : vector<16xf32>
    %110 = vector.multi_reduction <add>, %109, %cst_52 [1] : vector<16x32xf32> to vector<16xf32>
    %111 = vector.shape_cast %110 : vector<16xf32> to vector<16x1xf32>
    %cst_53 = arith.constant 3.200000e+01 : f32
    %112 = vector.broadcast %cst_53 : f32 to vector<16x1xf32>
    %113 = arith.divf %111, %112 : vector<16x1xf32>
    %114 = vector.broadcast %104 : vector<16x1xf32> to vector<16x32xf32>
    %115 = arith.subf %96, %114 : vector<16x32xf32>
    %cst_54 = arith.constant 9.99999996E-13 : f32
    %116 = vector.broadcast %cst_54 : f32 to vector<16x1xf32>
    %117 = arith.addf %113, %116 : vector<16x1xf32>
    %118 = math.rsqrt %117 : vector<16x1xf32>
    %119 = vector.broadcast %118 : vector<16x1xf32> to vector<16x32xf32>
    %120 = arith.mulf %115, %119 : vector<16x32xf32>
    %121 = vector.broadcast %98 : vector<1x32xf32> to vector<16x32xf32>
    %122 = arith.mulf %120, %121 : vector<16x32xf32>
    %123 = vector.broadcast %100 : vector<1x32xf32> to vector<16x32xf32>
    %124 = arith.addf %122, %123 : vector<16x32xf32>
    %125 = arith.truncf %124 : vector<16x32xf32> to vector<16x32xbf16>
    %c0_55 = arith.constant 0 : index
    %c0_56 = arith.constant 0 : index
    %c0_57 = arith.constant 0 : index
    %126 = vector.load %arg13[%c0_55, %c0_56, %c0_57] : memref<2x32x64xbf16, #tpu.memory_space<vmem>>, vector<1x32x64xbf16>
    %127 = vector.shape_cast %126 : vector<1x32x64xbf16> to vector<32x64xbf16>
    %cst_58 = arith.constant dense<0.000000e+00> : vector<16x64xf32>
    %128 = tpu.matmul %125, %127, %cst_58 {dimension_numbers = #tpu.dot_dimension_numbers<[1], [0], [0], [1], [0, 0, 1, 1], [], []>} : vector<16x32xbf16>, vector<32x64xbf16>, vector<16x64xf32> -> vector<16x64xf32>
    %c0_59 = arith.constant 0 : index
    %c0_60 = arith.constant 0 : index
    %c0_61 = arith.constant 0 : index
    %129 = vector.load %arg14[%c0_59, %c0_60, %c0_61] : memref<2x1x64xf32, #tpu.memory_space<vmem>>, vector<1x1x64xf32>
    %130 = vector.shape_cast %129 : vector<1x1x64xf32> to vector<1x64xf32>
    %131 = vector.broadcast %130 : vector<1x64xf32> to vector<16x64xf32>
    %132 = arith.addf %128, %131 : vector<16x64xf32>
    %cst_62 = arith.constant 5.000000e-01 : f32
    %133 = vector.broadcast %cst_62 : f32 to vector<16x64xf32>
    %134 = arith.mulf %133, %132 : vector<16x64xf32>
    %cst_63 = arith.constant 4.471500e-02 : f32
    %135 = vector.broadcast %cst_63 : f32 to vector<16x64xf32>
    %136 = arith.mulf %135, %132 : vector<16x64xf32>
    %137 = arith.mulf %136, %132 : vector<16x64xf32>
    %138 = arith.mulf %137, %132 : vector<16x64xf32>
    %139 = arith.addf %132, %138 : vector<16x64xf32>
    %cst_64 = arith.constant 0.797884583 : f32
    %140 = vector.broadcast %cst_64 : f32 to vector<16x64xf32>
    %141 = arith.mulf %140, %139 : vector<16x64xf32>
    %142 = math.tanh %141 : vector<16x64xf32>
    %cst_65 = arith.constant 1.000000e+00 : f32
    %143 = vector.broadcast %cst_65 : f32 to vector<16x64xf32>
    %144 = arith.addf %143, %142 : vector<16x64xf32>
    %145 = arith.mulf %134, %144 : vector<16x64xf32>
    %146 = arith.truncf %145 : vector<16x64xf32> to vector<16x64xbf16>
    %c0_66 = arith.constant 0 : index
    %c0_67 = arith.constant 0 : index
    %c0_68 = arith.constant 0 : index
    %147 = vector.load %arg15[%c0_66, %c0_67, %c0_68] : memref<2x64x32xbf16, #tpu.memory_space<vmem>>, vector<1x64x32xbf16>
    %148 = vector.shape_cast %147 : vector<1x64x32xbf16> to vector<64x32xbf16>
    %cst_69 = arith.constant dense<0.000000e+00> : vector<16x32xf32>
    %149 = tpu.matmul %146, %148, %cst_69 {dimension_numbers = #tpu.dot_dimension_numbers<[1], [0], [0], [1], [0, 0, 1, 1], [], []>} : vector<16x64xbf16>, vector<64x32xbf16>, vector<16x32xf32> -> vector<16x32xf32>
    %c0_70 = arith.constant 0 : index
    %c0_71 = arith.constant 0 : index
    %c0_72 = arith.constant 0 : index
    %150 = vector.load %arg16[%c0_70, %c0_71, %c0_72] : memref<2x1x32xf32, #tpu.memory_space<vmem>>, vector<1x1x32xf32>
    %151 = vector.shape_cast %150 : vector<1x1x32xf32> to vector<1x32xf32>
    %152 = vector.broadcast %151 : vector<1x32xf32> to vector<16x32xf32>
    %153 = arith.addf %149, %152 : vector<16x32xf32>
    %154 = arith.addf %124, %153 : vector<16x32xf32>
    %c0_73 = arith.constant 0 : index
    %c0_74 = arith.constant 0 : index
    %c0_75 = arith.constant 0 : index
    %155 = vector.load %arg17[%c0_73, %c0_74, %c0_75] : memref<2x1x32xf32, #tpu.memory_space<vmem>>, vector<1x1x32xf32>
    %156 = vector.shape_cast %155 : vector<1x1x32xf32> to vector<1x32xf32>
    %c0_76 = arith.constant 0 : index
    %c0_77 = arith.constant 0 : index
    %c0_78 = arith.constant 0 : index
    %157 = vector.load %arg18[%c0_76, %c0_77, %c0_78] : memref<2x1x32xf32, #tpu.memory_space<vmem>>, vector<1x1x32xf32>
    %158 = vector.shape_cast %157 : vector<1x1x32xf32> to vector<1x32xf32>
    %cst_79 = arith.constant dense<0.000000e+00> : vector<16xf32>
    %159 = vector.multi_reduction <add>, %154, %cst_79 [1] : vector<16x32xf32> to vector<16xf32>
    %160 = vector.shape_cast %159 : vector<16xf32> to vector<16x1xf32>
    %cst_80 = arith.constant 3.200000e+01 : f32
    %161 = vector.broadcast %cst_80 : f32 to vector<16x1xf32>
    %162 = arith.divf %160, %161 : vector<16x1xf32>
    %163 = vector.broadcast %162 : vector<16x1xf32> to vector<16x32xf32>
    %164 = arith.subf %154, %163 : vector<16x32xf32>
    %165 = vector.broadcast %162 : vector<16x1xf32> to vector<16x32xf32>
    %166 = arith.subf %154, %165 : vector<16x32xf32>
    %167 = arith.mulf %164, %166 : vector<16x32xf32>
    %cst_81 = arith.constant dense<0.000000e+00> : vector<16xf32>
    %168 = vector.multi_reduction <add>, %167, %cst_81 [1] : vector<16x32xf32> to vector<16xf32>
    %169 = vector.shape_cast %168 : vector<16xf32> to vector<16x1xf32>
    %cst_82 = arith.constant 3.200000e+01 : f32
    %170 = vector.broadcast %cst_82 : f32 to vector<16x1xf32>
    %171 = arith.divf %169, %170 : vector<16x1xf32>
    %172 = vector.broadcast %162 : vector<16x1xf32> to vector<16x32xf32>
    %173 = arith.subf %154, %172 : vector<16x32xf32>
    %cst_83 = arith.constant 9.99999996E-13 : f32
    %174 = vector.broadcast %cst_83 : f32 to vector<16x1xf32>
    %175 = arith.addf %171, %174 : vector<16x1xf32>
    %176 = math.rsqrt %175 : vector<16x1xf32>
    %177 = vector.broadcast %176 : vector<16x1xf32> to vector<16x32xf32>
    %178 = arith.mulf %173, %177 : vector<16x32xf32>
    %179 = vector.broadcast %156 : vector<1x32xf32> to vector<16x32xf32>
    %180 = arith.mulf %178, %179 : vector<16x32xf32>
    %181 = vector.broadcast %158 : vector<1x32xf32> to vector<16x32xf32>
    %182 = arith.addf %180, %181 : vector<16x32xf32>
    %183 = arith.truncf %182 : vector<16x32xf32> to vector<16x32xbf16>
    %c1 = arith.constant 1 : index
    %c0_84 = arith.constant 0 : index
    %c0_85 = arith.constant 0 : index
    %184 = vector.load %arg7[%c1, %c0_84, %c0_85] : memref<2x32x768xbf16, #tpu.memory_space<vmem>>, vector<1x32x768xbf16>
    %185 = vector.shape_cast %184 : vector<1x32x768xbf16> to vector<32x768xbf16>
    %cst_86 = arith.constant dense<0.000000e+00> : vector<16x768xf32>
    %186 = tpu.matmul %183, %185, %cst_86 {dimension_numbers = #tpu.dot_dimension_numbers<[1], [0], [0], [1], [0, 0, 1, 1], [], []>} : vector<16x32xbf16>, vector<32x768xbf16>, vector<16x768xf32> -> vector<16x768xf32>
    %c1_87 = arith.constant 1 : index
    %c0_88 = arith.constant 0 : index
    %c0_89 = arith.constant 0 : index
    %187 = vector.load %arg8[%c1_87, %c0_88, %c0_89] : memref<2x1x768xf32, #tpu.memory_space<vmem>>, vector<1x1x768xf32>
    %188 = vector.shape_cast %187 : vector<1x1x768xf32> to vector<1x768xf32>
    %189 = vector.broadcast %188 : vector<1x768xf32> to vector<16x768xf32>
    %190 = arith.addf %186, %189 : vector<16x768xf32>
    %191 = vector.extract_strided_slice %190 {offsets = [0, 0], sizes = [16, 128], strides = [1, 1]} : vector<16x768xf32> to vector<16x128xf32>
    %192 = vector.extract_strided_slice %190 {offsets = [0, 128], sizes = [16, 128], strides = [1, 1]} : vector<16x768xf32> to vector<16x128xf32>
    %193 = vector.extract_strided_slice %190 {offsets = [0, 256], sizes = [16, 128], strides = [1, 1]} : vector<16x768xf32> to vector<16x128xf32>
    %cst_90 = arith.constant dense<0.000000e+00> : vector<16x16xf32>
    %194 = tpu.matmul %191, %192, %cst_90 {dimension_numbers = #tpu.dot_dimension_numbers<[1], [1], [0], [0], [0, 0, 1, 0], [], []>} : vector<16x128xf32>, vector<16x128xf32>, vector<16x16xf32> -> vector<16x16xf32>
    %cst_91 = arith.constant 2.500000e-01 : f32
    %195 = vector.broadcast %cst_91 : f32 to vector<16x16xf32>
    %196 = arith.mulf %194, %195 : vector<16x16xf32>
    %197 = arith.addf %196, %44 : vector<16x16xf32>
    %cst_92 = arith.constant dense<0xFF800000> : vector<16xf32>
    %198 = vector.multi_reduction <maximumf>, %197, %cst_92 [1] : vector<16x16xf32> to vector<16xf32>
    %199 = vector.shape_cast %198 : vector<16xf32> to vector<16x1xf32>
    %200 = vector.broadcast %199 : vector<16x1xf32> to vector<16x16xf32>
    %201 = arith.subf %197, %200 : vector<16x16xf32>
    %202 = math.exp %201 : vector<16x16xf32>
    %cst_93 = arith.constant dense<0.000000e+00> : vector<16xf32>
    %203 = vector.multi_reduction <add>, %202, %cst_93 [1] : vector<16x16xf32> to vector<16xf32>
    %204 = vector.shape_cast %203 : vector<16xf32> to vector<16x1xf32>
    %205 = vector.broadcast %204 : vector<16x1xf32> to vector<16x16xf32>
    %206 = arith.divf %202, %205 : vector<16x16xf32>
    %cst_94 = arith.constant dense<0.000000e+00> : vector<16x128xf32>
    %207 = tpu.matmul %206, %193, %cst_94 {dimension_numbers = #tpu.dot_dimension_numbers<[1], [0], [0], [1], [0, 0, 1, 1], [], []>} : vector<16x16xf32>, vector<16x128xf32>, vector<16x128xf32> -> vector<16x128xf32>
    %208 = vector.extract_strided_slice %190 {offsets = [0, 384], sizes = [16, 128], strides = [1, 1]} : vector<16x768xf32> to vector<16x128xf32>
    %209 = vector.extract_strided_slice %190 {offsets = [0, 512], sizes = [16, 128], strides = [1, 1]} : vector<16x768xf32> to vector<16x128xf32>
    %210 = vector.extract_strided_slice %190 {offsets = [0, 640], sizes = [16, 128], strides = [1, 1]} : vector<16x768xf32> to vector<16x128xf32>
    %cst_95 = arith.constant dense<0.000000e+00> : vector<16x16xf32>
    %211 = tpu.matmul %208, %209, %cst_95 {dimension_numbers = #tpu.dot_dimension_numbers<[1], [1], [0], [0], [0, 0, 1, 0], [], []>} : vector<16x128xf32>, vector<16x128xf32>, vector<16x16xf32> -> vector<16x16xf32>
    %cst_96 = arith.constant 2.500000e-01 : f32
    %212 = vector.broadcast %cst_96 : f32 to vector<16x16xf32>
    %213 = arith.mulf %211, %212 : vector<16x16xf32>
    %214 = arith.addf %213, %44 : vector<16x16xf32>
    %cst_97 = arith.constant dense<0xFF800000> : vector<16xf32>
    %215 = vector.multi_reduction <maximumf>, %214, %cst_97 [1] : vector<16x16xf32> to vector<16xf32>
    %216 = vector.shape_cast %215 : vector<16xf32> to vector<16x1xf32>
    %217 = vector.broadcast %216 : vector<16x1xf32> to vector<16x16xf32>
    %218 = arith.subf %214, %217 : vector<16x16xf32>
    %219 = math.exp %218 : vector<16x16xf32>
    %cst_98 = arith.constant dense<0.000000e+00> : vector<16xf32>
    %220 = vector.multi_reduction <add>, %219, %cst_98 [1] : vector<16x16xf32> to vector<16xf32>
    %221 = vector.shape_cast %220 : vector<16xf32> to vector<16x1xf32>
    %222 = vector.broadcast %221 : vector<16x1xf32> to vector<16x16xf32>
    %223 = arith.divf %219, %222 : vector<16x16xf32>
    %cst_99 = arith.constant dense<0.000000e+00> : vector<16x128xf32>
    %224 = tpu.matmul %223, %210, %cst_99 {dimension_numbers = #tpu.dot_dimension_numbers<[1], [0], [0], [1], [0, 0, 1, 1], [], []>} : vector<16x16xf32>, vector<16x128xf32>, vector<16x128xf32> -> vector<16x128xf32>
    %225 = tpu.concatenate %207, %224 in 1 : vector<16x128xf32>, vector<16x128xf32> -> vector<16x256xf32>
    %226 = arith.truncf %225 : vector<16x256xf32> to vector<16x256xbf16>
    %c1_100 = arith.constant 1 : index
    %c0_101 = arith.constant 0 : index
    %c0_102 = arith.constant 0 : index
    %227 = vector.load %arg9[%c1_100, %c0_101, %c0_102] : memref<2x256x32xbf16, #tpu.memory_space<vmem>>, vector<1x256x32xbf16>
    %228 = vector.shape_cast %227 : vector<1x256x32xbf16> to vector<256x32xbf16>
    %cst_103 = arith.constant dense<0.000000e+00> : vector<16x32xf32>
    %229 = tpu.matmul %226, %228, %cst_103 {dimension_numbers = #tpu.dot_dimension_numbers<[1], [0], [0], [1], [0, 0, 1, 1], [], []>} : vector<16x256xbf16>, vector<256x32xbf16>, vector<16x32xf32> -> vector<16x32xf32>
    %c1_104 = arith.constant 1 : index
    %c0_105 = arith.constant 0 : index
    %c0_106 = arith.constant 0 : index
    %230 = vector.load %arg10[%c1_104, %c0_105, %c0_106] : memref<2x1x32xf32, #tpu.memory_space<vmem>>, vector<1x1x32xf32>
    %231 = vector.shape_cast %230 : vector<1x1x32xf32> to vector<1x32xf32>
    %232 = vector.broadcast %231 : vector<1x32xf32> to vector<16x32xf32>
    %233 = arith.addf %229, %232 : vector<16x32xf32>
    %234 = arith.addf %182, %233 : vector<16x32xf32>
    %c1_107 = arith.constant 1 : index
    %c0_108 = arith.constant 0 : index
    %c0_109 = arith.constant 0 : index
    %235 = vector.load %arg11[%c1_107, %c0_108, %c0_109] : memref<2x1x32xf32, #tpu.memory_space<vmem>>, vector<1x1x32xf32>
    %236 = vector.shape_cast %235 : vector<1x1x32xf32> to vector<1x32xf32>
    %c1_110 = arith.constant 1 : index
    %c0_111 = arith.constant 0 : index
    %c0_112 = arith.constant 0 : index
    %237 = vector.load %arg12[%c1_110, %c0_111, %c0_112] : memref<2x1x32xf32, #tpu.memory_space<vmem>>, vector<1x1x32xf32>
    %238 = vector.shape_cast %237 : vector<1x1x32xf32> to vector<1x32xf32>
    %cst_113 = arith.constant dense<0.000000e+00> : vector<16xf32>
    %239 = vector.multi_reduction <add>, %234, %cst_113 [1] : vector<16x32xf32> to vector<16xf32>
    %240 = vector.shape_cast %239 : vector<16xf32> to vector<16x1xf32>
    %cst_114 = arith.constant 3.200000e+01 : f32
    %241 = vector.broadcast %cst_114 : f32 to vector<16x1xf32>
    %242 = arith.divf %240, %241 : vector<16x1xf32>
    %243 = vector.broadcast %242 : vector<16x1xf32> to vector<16x32xf32>
    %244 = arith.subf %234, %243 : vector<16x32xf32>
    %245 = vector.broadcast %242 : vector<16x1xf32> to vector<16x32xf32>
    %246 = arith.subf %234, %245 : vector<16x32xf32>
    %247 = arith.mulf %244, %246 : vector<16x32xf32>
    %cst_115 = arith.constant dense<0.000000e+00> : vector<16xf32>
    %248 = vector.multi_reduction <add>, %247, %cst_115 [1] : vector<16x32xf32> to vector<16xf32>
    %249 = vector.shape_cast %248 : vector<16xf32> to vector<16x1xf32>
    %cst_116 = arith.constant 3.200000e+01 : f32
    %250 = vector.broadcast %cst_116 : f32 to vector<16x1xf32>
    %251 = arith.divf %249, %250 : vector<16x1xf32>
    %252 = vector.broadcast %242 : vector<16x1xf32> to vector<16x32xf32>
    %253 = arith.subf %234, %252 : vector<16x32xf32>
    %cst_117 = arith.constant 9.99999996E-13 : f32
    %254 = vector.broadcast %cst_117 : f32 to vector<16x1xf32>
    %255 = arith.addf %251, %254 : vector<16x1xf32>
    %256 = math.rsqrt %255 : vector<16x1xf32>
    %257 = vector.broadcast %256 : vector<16x1xf32> to vector<16x32xf32>
    %258 = arith.mulf %253, %257 : vector<16x32xf32>
    %259 = vector.broadcast %236 : vector<1x32xf32> to vector<16x32xf32>
    %260 = arith.mulf %258, %259 : vector<16x32xf32>
    %261 = vector.broadcast %238 : vector<1x32xf32> to vector<16x32xf32>
    %262 = arith.addf %260, %261 : vector<16x32xf32>
    %263 = arith.truncf %262 : vector<16x32xf32> to vector<16x32xbf16>
    %c1_118 = arith.constant 1 : index
    %c0_119 = arith.constant 0 : index
    %c0_120 = arith.constant 0 : index
    %264 = vector.load %arg13[%c1_118, %c0_119, %c0_120] : memref<2x32x64xbf16, #tpu.memory_space<vmem>>, vector<1x32x64xbf16>
    %265 = vector.shape_cast %264 : vector<1x32x64xbf16> to vector<32x64xbf16>
    %cst_121 = arith.constant dense<0.000000e+00> : vector<16x64xf32>
    %266 = tpu.matmul %263, %265, %cst_121 {dimension_numbers = #tpu.dot_dimension_numbers<[1], [0], [0], [1], [0, 0, 1, 1], [], []>} : vector<16x32xbf16>, vector<32x64xbf16>, vector<16x64xf32> -> vector<16x64xf32>
    %c1_122 = arith.constant 1 : index
    %c0_123 = arith.constant 0 : index
    %c0_124 = arith.constant 0 : index
    %267 = vector.load %arg14[%c1_122, %c0_123, %c0_124] : memref<2x1x64xf32, #tpu.memory_space<vmem>>, vector<1x1x64xf32>
    %268 = vector.shape_cast %267 : vector<1x1x64xf32> to vector<1x64xf32>
    %269 = vector.broadcast %268 : vector<1x64xf32> to vector<16x64xf32>
    %270 = arith.addf %266, %269 : vector<16x64xf32>
    %cst_125 = arith.constant 5.000000e-01 : f32
    %271 = vector.broadcast %cst_125 : f32 to vector<16x64xf32>
    %272 = arith.mulf %271, %270 : vector<16x64xf32>
    %cst_126 = arith.constant 4.471500e-02 : f32
    %273 = vector.broadcast %cst_126 : f32 to vector<16x64xf32>
    %274 = arith.mulf %273, %270 : vector<16x64xf32>
    %275 = arith.mulf %274, %270 : vector<16x64xf32>
    %276 = arith.mulf %275, %270 : vector<16x64xf32>
    %277 = arith.addf %270, %276 : vector<16x64xf32>
    %cst_127 = arith.constant 0.797884583 : f32
    %278 = vector.broadcast %cst_127 : f32 to vector<16x64xf32>
    %279 = arith.mulf %278, %277 : vector<16x64xf32>
    %280 = math.tanh %279 : vector<16x64xf32>
    %cst_128 = arith.constant 1.000000e+00 : f32
    %281 = vector.broadcast %cst_128 : f32 to vector<16x64xf32>
    %282 = arith.addf %281, %280 : vector<16x64xf32>
    %283 = arith.mulf %272, %282 : vector<16x64xf32>
    %284 = arith.truncf %283 : vector<16x64xf32> to vector<16x64xbf16>
    %c1_129 = arith.constant 1 : index
    %c0_130 = arith.constant 0 : index
    %c0_131 = arith.constant 0 : index
    %285 = vector.load %arg15[%c1_129, %c0_130, %c0_131] : memref<2x64x32xbf16, #tpu.memory_space<vmem>>, vector<1x64x32xbf16>
    %286 = vector.shape_cast %285 : vector<1x64x32xbf16> to vector<64x32xbf16>
    %cst_132 = arith.constant dense<0.000000e+00> : vector<16x32xf32>
    %287 = tpu.matmul %284, %286, %cst_132 {dimension_numbers = #tpu.dot_dimension_numbers<[1], [0], [0], [1], [0, 0, 1, 1], [], []>} : vector<16x64xbf16>, vector<64x32xbf16>, vector<16x32xf32> -> vector<16x32xf32>
    %c1_133 = arith.constant 1 : index
    %c0_134 = arith.constant 0 : index
    %c0_135 = arith.constant 0 : index
    %288 = vector.load %arg16[%c1_133, %c0_134, %c0_135] : memref<2x1x32xf32, #tpu.memory_space<vmem>>, vector<1x1x32xf32>
    %289 = vector.shape_cast %288 : vector<1x1x32xf32> to vector<1x32xf32>
    %290 = vector.broadcast %289 : vector<1x32xf32> to vector<16x32xf32>
    %291 = arith.addf %287, %290 : vector<16x32xf32>
    %292 = arith.addf %262, %291 : vector<16x32xf32>
    %c1_136 = arith.constant 1 : index
    %c0_137 = arith.constant 0 : index
    %c0_138 = arith.constant 0 : index
    %293 = vector.load %arg17[%c1_136, %c0_137, %c0_138] : memref<2x1x32xf32, #tpu.memory_space<vmem>>, vector<1x1x32xf32>
    %294 = vector.shape_cast %293 : vector<1x1x32xf32> to vector<1x32xf32>
    %c1_139 = arith.constant 1 : index
    %c0_140 = arith.constant 0 : index
    %c0_141 = arith.constant 0 : index
    %295 = vector.load %arg18[%c1_139, %c0_140, %c0_141] : memref<2x1x32xf32, #tpu.memory_space<vmem>>, vector<1x1x32xf32>
    %296 = vector.shape_cast %295 : vector<1x1x32xf32> to vector<1x32xf32>
    %cst_142 = arith.constant dense<0.000000e+00> : vector<16xf32>
    %297 = vector.multi_reduction <add>, %292, %cst_142 [1] : vector<16x32xf32> to vector<16xf32>
    %298 = vector.shape_cast %297 : vector<16xf32> to vector<16x1xf32>
    %cst_143 = arith.constant 3.200000e+01 : f32
    %299 = vector.broadcast %cst_143 : f32 to vector<16x1xf32>
    %300 = arith.divf %298, %299 : vector<16x1xf32>
    %301 = vector.broadcast %300 : vector<16x1xf32> to vector<16x32xf32>
    %302 = arith.subf %292, %301 : vector<16x32xf32>
    %303 = vector.broadcast %300 : vector<16x1xf32> to vector<16x32xf32>
    %304 = arith.subf %292, %303 : vector<16x32xf32>
    %305 = arith.mulf %302, %304 : vector<16x32xf32>
    %cst_144 = arith.constant dense<0.000000e+00> : vector<16xf32>
    %306 = vector.multi_reduction <add>, %305, %cst_144 [1] : vector<16x32xf32> to vector<16xf32>
    %307 = vector.shape_cast %306 : vector<16xf32> to vector<16x1xf32>
    %cst_145 = arith.constant 3.200000e+01 : f32
    %308 = vector.broadcast %cst_145 : f32 to vector<16x1xf32>
    %309 = arith.divf %307, %308 : vector<16x1xf32>
    %310 = vector.broadcast %300 : vector<16x1xf32> to vector<16x32xf32>
    %311 = arith.subf %292, %310 : vector<16x32xf32>
    %cst_146 = arith.constant 9.99999996E-13 : f32
    %312 = vector.broadcast %cst_146 : f32 to vector<16x1xf32>
    %313 = arith.addf %309, %312 : vector<16x1xf32>
    %314 = math.rsqrt %313 : vector<16x1xf32>
    %315 = vector.broadcast %314 : vector<16x1xf32> to vector<16x32xf32>
    %316 = arith.mulf %311, %315 : vector<16x32xf32>
    %317 = vector.broadcast %294 : vector<1x32xf32> to vector<16x32xf32>
    %318 = arith.mulf %316, %317 : vector<16x32xf32>
    %319 = vector.broadcast %296 : vector<1x32xf32> to vector<16x32xf32>
    %320 = arith.addf %318, %319 : vector<16x32xf32>
    %321 = vector.extract_strided_slice %320 {offsets = [7, 0], sizes = [1, 32], strides = [1, 1]} : vector<16x32xf32> to vector<1x32xf32>
    %322 = vector.extract_strided_slice %320 {offsets = [15, 0], sizes = [1, 32], strides = [1, 1]} : vector<16x32xf32> to vector<1x32xf32>
    %323 = tpu.concatenate %321, %322 in 0 : vector<1x32xf32>, vector<1x32xf32> -> vector<2x32xf32>
    %c0_147 = arith.constant 0 : index
    %c0_148 = arith.constant 0 : index
    %324 = vector.load %arg19[%c0_147, %c0_148] : memref<2x32xf32, #tpu.memory_space<vmem>>, vector<2x32xf32>
    %c0_149 = arith.constant 0 : index
    %c0_150 = arith.constant 0 : index
    %325 = vector.load %arg21[%c0_149, %c0_150] : memref<1x192xf32, #tpu.memory_space<vmem>>, vector<1x192xf32>
    %326 = tpu.iota {dimensions = array<i32: 1>} : vector<2x128xi32>
    %327 = tpu.concatenate %324, %323 in 1 : vector<2x32xf32>, vector<2x32xf32> -> vector<2x64xf32>
    %328 = arith.truncf %327 : vector<2x64xf32> to vector<2x64xbf16>
    %c0_151 = arith.constant 0 : index
    %c0_152 = arith.constant 0 : index
    %329 = vector.load %arg20[%c0_151, %c0_152] : memref<64x192xbf16, #tpu.memory_space<vmem>>, vector<64x192xbf16>
    %cst_153 = arith.constant dense<0.000000e+00> : vector<2x192xf32>
    %330 = tpu.matmul %328, %329, %cst_153 {dimension_numbers = #tpu.dot_dimension_numbers<[1], [0], [0], [1], [0, 0, 1, 1], [], []>} : vector<2x64xbf16>, vector<64x192xbf16>, vector<2x192xf32> -> vector<2x192xf32>
    %331 = vector.broadcast %325 : vector<1x192xf32> to vector<2x192xf32>
    %332 = arith.addf %330, %331 : vector<2x192xf32>
    %333 = vector.extract_strided_slice %332 {offsets = [0, 0], sizes = [2, 32], strides = [1, 1]} : vector<2x192xf32> to vector<2x32xf32>
    %334 = vector.extract_strided_slice %332 {offsets = [0, 32], sizes = [2, 32], strides = [1, 1]} : vector<2x192xf32> to vector<2x32xf32>
    %335 = vector.extract_strided_slice %332 {offsets = [0, 64], sizes = [2, 32], strides = [1, 1]} : vector<2x192xf32> to vector<2x32xf32>
    %336 = vector.extract_strided_slice %332 {offsets = [0, 96], sizes = [2, 32], strides = [1, 1]} : vector<2x192xf32> to vector<2x32xf32>
    %337 = vector.extract_strided_slice %332 {offsets = [0, 128], sizes = [2, 32], strides = [1, 1]} : vector<2x192xf32> to vector<2x32xf32>
    %338 = vector.extract_strided_slice %332 {offsets = [0, 160], sizes = [2, 32], strides = [1, 1]} : vector<2x192xf32> to vector<2x32xf32>
    %339 = arith.addf %333, %336 : vector<2x32xf32>
    %340 = arith.negf %339 : vector<2x32xf32>
    %341 = math.exp %340 : vector<2x32xf32>
    %cst_154 = arith.constant 1.000000e+00 : f32
    %342 = vector.broadcast %cst_154 : f32 to vector<2x32xf32>
    %343 = arith.addf %342, %341 : vector<2x32xf32>
    %344 = arith.divf %342, %343 : vector<2x32xf32>
    %345 = arith.addf %334, %337 : vector<2x32xf32>
    %346 = arith.negf %345 : vector<2x32xf32>
    %347 = math.exp %346 : vector<2x32xf32>
    %cst_155 = arith.constant 1.000000e+00 : f32
    %348 = vector.broadcast %cst_155 : f32 to vector<2x32xf32>
    %349 = arith.addf %348, %347 : vector<2x32xf32>
    %350 = arith.divf %348, %349 : vector<2x32xf32>
    %351 = arith.mulf %344, %338 : vector<2x32xf32>
    %352 = arith.addf %335, %351 : vector<2x32xf32>
    %353 = math.tanh %352 : vector<2x32xf32>
    %cst_156 = arith.constant 1.000000e+00 : f32
    %354 = vector.broadcast %cst_156 : f32 to vector<2x32xf32>
    %355 = arith.subf %354, %350 : vector<2x32xf32>
    %356 = arith.mulf %355, %353 : vector<2x32xf32>
    %357 = arith.mulf %350, %323 : vector<2x32xf32>
    %358 = arith.addf %356, %357 : vector<2x32xf32>
    %359 = arith.truncf %358 : vector<2x32xf32> to vector<2x32xbf16>
    %c0_157 = arith.constant 0 : index
    %c0_158 = arith.constant 0 : index
    %360 = vector.load %arg22[%c0_157, %c0_158] : memref<32x128xbf16, #tpu.memory_space<vmem>>, vector<32x128xbf16>
    %cst_159 = arith.constant dense<0.000000e+00> : vector<2x128xf32>
    %361 = tpu.matmul %359, %360, %cst_159 {dimension_numbers = #tpu.dot_dimension_numbers<[1], [0], [0], [1], [0, 0, 1, 1], [], []>} : vector<2x32xbf16>, vector<32x128xbf16>, vector<2x128xf32> -> vector<2x128xf32>
    %c0_160 = arith.constant 0 : index
    %c0_161 = arith.constant 0 : index
    %362 = vector.load %arg23[%c0_160, %c0_161] : memref<1x128xf32, #tpu.memory_space<vmem>>, vector<1x128xf32>
    %363 = vector.broadcast %362 : vector<1x128xf32> to vector<2x128xf32>
    %364 = arith.addf %361, %363 : vector<2x128xf32>
    %c0_162 = arith.constant 0 : index
    %c0_163 = arith.constant 0 : index
    %365 = vector.load %arg25[%c0_162, %c0_163] : memref<8x128xf32, #tpu.memory_space<vmem>>, vector<2x128xf32>
    tpu.vector_store %arg25[%c0_162, %c0_163], %364 {strides = array<i32>} : memref<8x128xf32, #tpu.memory_space<vmem>>, vector<2x128xf32>,
    %cst_164 = arith.constant dense<0xFF800000> : vector<2xf32>
    %366 = vector.multi_reduction <maximumf>, %364, %cst_164 [1] : vector<2x128xf32> to vector<2xf32>
    %367 = vector.shape_cast %366 : vector<2xf32> to vector<2x1xf32>
    %368 = vector.broadcast %367 : vector<2x1xf32> to vector<2x128xf32>
    %369 = arith.cmpf oeq, %364, %368 : vector<2x128xf32>
    %c128_i32 = arith.constant 128 : i32
    %370 = vector.broadcast %c128_i32 : i32 to vector<2x128xi32>
    %371 = arith.select %369, %326, %370 : vector<2x128xi1>, vector<2x128xi32>
    %cst_165 = arith.constant dense<2147483647> : vector<2xi32>
    %372 = vector.multi_reduction <minsi>, %371, %cst_165 [1] : vector<2x128xi32> to vector<2xi32>
    %373 = vector.shape_cast %372 : vector<2xi32> to vector<2x1xi32>
    %374 = vector.broadcast %373 : vector<2x1xi32> to vector<2x128xi32>
    %375 = arith.cmpi eq, %326, %374 : vector<2x128xi32>
    %376 = arith.extui %375 : vector<2x128xi1> to vector<2x128xi32>
    %377 = arith.sitofp %376 : vector<2x128xi32> to vector<2x128xf32>
    %c0_166 = arith.constant 0 : index
    %c0_167 = arith.constant 0 : index
    %378 = vector.load %arg24[%c0_166, %c0_167] : memref<128x32xf32, #tpu.memory_space<vmem>>, vector<128x32xf32>
    %cst_168 = arith.constant dense<0.000000e+00> : vector<2x32xf32>
    %379 = tpu.matmul %377, %378, %cst_168 {dimension_numbers = #tpu.dot_dimension_numbers<[1], [0], [0], [1], [0, 0, 1, 1], [], []>} : vector<2x128xf32>, vector<128x32xf32>, vector<2x32xf32> -> vector<2x32xf32>
    %380 = tpu.concatenate %379, %358 in 1 : vector<2x32xf32>, vector<2x32xf32> -> vector<2x64xf32>
    %381 = arith.truncf %380 : vector<2x64xf32> to vector<2x64xbf16>
    %c0_169 = arith.constant 0 : index
    %c0_170 = arith.constant 0 : index
    %382 = vector.load %arg20[%c0_169, %c0_170] : memref<64x192xbf16, #tpu.memory_space<vmem>>, vector<64x192xbf16>
    %cst_171 = arith.constant dense<0.000000e+00> : vector<2x192xf32>
    %383 = tpu.matmul %381, %382, %cst_171 {dimension_numbers = #tpu.dot_dimension_numbers<[1], [0], [0], [1], [0, 0, 1, 1], [], []>} : vector<2x64xbf16>, vector<64x192xbf16>, vector<2x192xf32> -> vector<2x192xf32>
    %384 = vector.broadcast %325 : vector<1x192xf32> to vector<2x192xf32>
    %385 = arith.addf %383, %384 : vector<2x192xf32>
    %386 = vector.extract_strided_slice %385 {offsets = [0, 0], sizes = [2, 32], strides = [1, 1]} : vector<2x192xf32> to vector<2x32xf32>
    %387 = vector.extract_strided_slice %385 {offsets = [0, 32], sizes = [2, 32], strides = [1, 1]} : vector<2x192xf32> to vector<2x32xf32>
    %388 = vector.extract_strided_slice %385 {offsets = [0, 64], sizes = [2, 32], strides = [1, 1]} : vector<2x192xf32> to vector<2x32xf32>
    %389 = vector.extract_strided_slice %385 {offsets = [0, 96], sizes = [2, 32], strides = [1, 1]} : vector<2x192xf32> to vector<2x32xf32>
    %390 = vector.extract_strided_slice %385 {offsets = [0, 128], sizes = [2, 32], strides = [1, 1]} : vector<2x192xf32> to vector<2x32xf32>
    %391 = vector.extract_strided_slice %385 {offsets = [0, 160], sizes = [2, 32], strides = [1, 1]} : vector<2x192xf32> to vector<2x32xf32>
    %392 = arith.addf %386, %389 : vector<2x32xf32>
    %393 = arith.negf %392 : vector<2x32xf32>
    %394 = math.exp %393 : vector<2x32xf32>
    %cst_172 = arith.constant 1.000000e+00 : f32
    %395 = vector.broadcast %cst_172 : f32 to vector<2x32xf32>
    %396 = arith.addf %395, %394 : vector<2x32xf32>
    %397 = arith.divf %395, %396 : vector<2x32xf32>
    %398 = arith.addf %387, %390 : vector<2x32xf32>
    %399 = arith.negf %398 : vector<2x32xf32>
    %400 = math.exp %399 : vector<2x32xf32>
    %cst_173 = arith.constant 1.000000e+00 : f32
    %401 = vector.broadcast %cst_173 : f32 to vector<2x32xf32>
    %402 = arith.addf %401, %400 : vector<2x32xf32>
    %403 = arith.divf %401, %402 : vector<2x32xf32>
    %404 = arith.mulf %397, %391 : vector<2x32xf32>
    %405 = arith.addf %388, %404 : vector<2x32xf32>
    %406 = math.tanh %405 : vector<2x32xf32>
    %cst_174 = arith.constant 1.000000e+00 : f32
    %407 = vector.broadcast %cst_174 : f32 to vector<2x32xf32>
    %408 = arith.subf %407, %403 : vector<2x32xf32>
    %409 = arith.mulf %408, %406 : vector<2x32xf32>
    %410 = arith.mulf %403, %358 : vector<2x32xf32>
    %411 = arith.addf %409, %410 : vector<2x32xf32>
    %412 = arith.truncf %411 : vector<2x32xf32> to vector<2x32xbf16>
    %c0_175 = arith.constant 0 : index
    %c0_176 = arith.constant 0 : index
    %413 = vector.load %arg22[%c0_175, %c0_176] : memref<32x128xbf16, #tpu.memory_space<vmem>>, vector<32x128xbf16>
    %cst_177 = arith.constant dense<0.000000e+00> : vector<2x128xf32>
    %414 = tpu.matmul %412, %413, %cst_177 {dimension_numbers = #tpu.dot_dimension_numbers<[1], [0], [0], [1], [0, 0, 1, 1], [], []>} : vector<2x32xbf16>, vector<32x128xbf16>, vector<2x128xf32> -> vector<2x128xf32>
    %c0_178 = arith.constant 0 : index
    %c0_179 = arith.constant 0 : index
    %415 = vector.load %arg23[%c0_178, %c0_179] : memref<1x128xf32, #tpu.memory_space<vmem>>, vector<1x128xf32>
    %416 = vector.broadcast %415 : vector<1x128xf32> to vector<2x128xf32>
    %417 = arith.addf %414, %416 : vector<2x128xf32>
    %c2 = arith.constant 2 : index
    %c0_180 = arith.constant 0 : index
    %418 = vector.load %arg25[%c2, %c0_180] : memref<8x128xf32, #tpu.memory_space<vmem>>, vector<2x128xf32>
    tpu.vector_store %arg25[%c2, %c0_180], %417 {strides = array<i32>} : memref<8x128xf32, #tpu.memory_space<vmem>>, vector<2x128xf32>,
    %cst_181 = arith.constant dense<0xFF800000> : vector<2xf32>
    %419 = vector.multi_reduction <maximumf>, %417, %cst_181 [1] : vector<2x128xf32> to vector<2xf32>
    %420 = vector.shape_cast %419 : vector<2xf32> to vector<2x1xf32>
    %421 = vector.broadcast %420 : vector<2x1xf32> to vector<2x128xf32>
    %422 = arith.cmpf oeq, %417, %421 : vector<2x128xf32>
    %c128_i32_182 = arith.constant 128 : i32
    %423 = vector.broadcast %c128_i32_182 : i32 to vector<2x128xi32>
    %424 = arith.select %422, %326, %423 : vector<2x128xi1>, vector<2x128xi32>
    %cst_183 = arith.constant dense<2147483647> : vector<2xi32>
    %425 = vector.multi_reduction <minsi>, %424, %cst_183 [1] : vector<2x128xi32> to vector<2xi32>
    %426 = vector.shape_cast %425 : vector<2xi32> to vector<2x1xi32>
    %427 = vector.broadcast %426 : vector<2x1xi32> to vector<2x128xi32>
    %428 = arith.cmpi eq, %326, %427 : vector<2x128xi32>
    %429 = arith.extui %428 : vector<2x128xi1> to vector<2x128xi32>
    %430 = arith.sitofp %429 : vector<2x128xi32> to vector<2x128xf32>
    %c0_184 = arith.constant 0 : index
    %c0_185 = arith.constant 0 : index
    %431 = vector.load %arg24[%c0_184, %c0_185] : memref<128x32xf32, #tpu.memory_space<vmem>>, vector<128x32xf32>
    %cst_186 = arith.constant dense<0.000000e+00> : vector<2x32xf32>
    %432 = tpu.matmul %430, %431, %cst_186 {dimension_numbers = #tpu.dot_dimension_numbers<[1], [0], [0], [1], [0, 0, 1, 1], [], []>} : vector<2x128xf32>, vector<128x32xf32>, vector<2x32xf32> -> vector<2x32xf32>
    %433 = tpu.concatenate %432, %411 in 1 : vector<2x32xf32>, vector<2x32xf32> -> vector<2x64xf32>
    %434 = arith.truncf %433 : vector<2x64xf32> to vector<2x64xbf16>
    %c0_187 = arith.constant 0 : index
    %c0_188 = arith.constant 0 : index
    %435 = vector.load %arg20[%c0_187, %c0_188] : memref<64x192xbf16, #tpu.memory_space<vmem>>, vector<64x192xbf16>
    %cst_189 = arith.constant dense<0.000000e+00> : vector<2x192xf32>
    %436 = tpu.matmul %434, %435, %cst_189 {dimension_numbers = #tpu.dot_dimension_numbers<[1], [0], [0], [1], [0, 0, 1, 1], [], []>} : vector<2x64xbf16>, vector<64x192xbf16>, vector<2x192xf32> -> vector<2x192xf32>
    %437 = vector.broadcast %325 : vector<1x192xf32> to vector<2x192xf32>
    %438 = arith.addf %436, %437 : vector<2x192xf32>
    %439 = vector.extract_strided_slice %438 {offsets = [0, 0], sizes = [2, 32], strides = [1, 1]} : vector<2x192xf32> to vector<2x32xf32>
    %440 = vector.extract_strided_slice %438 {offsets = [0, 32], sizes = [2, 32], strides = [1, 1]} : vector<2x192xf32> to vector<2x32xf32>
    %441 = vector.extract_strided_slice %438 {offsets = [0, 64], sizes = [2, 32], strides = [1, 1]} : vector<2x192xf32> to vector<2x32xf32>
    %442 = vector.extract_strided_slice %438 {offsets = [0, 96], sizes = [2, 32], strides = [1, 1]} : vector<2x192xf32> to vector<2x32xf32>
    %443 = vector.extract_strided_slice %438 {offsets = [0, 128], sizes = [2, 32], strides = [1, 1]} : vector<2x192xf32> to vector<2x32xf32>
    %444 = vector.extract_strided_slice %438 {offsets = [0, 160], sizes = [2, 32], strides = [1, 1]} : vector<2x192xf32> to vector<2x32xf32>
    %445 = arith.addf %439, %442 : vector<2x32xf32>
    %446 = arith.negf %445 : vector<2x32xf32>
    %447 = math.exp %446 : vector<2x32xf32>
    %cst_190 = arith.constant 1.000000e+00 : f32
    %448 = vector.broadcast %cst_190 : f32 to vector<2x32xf32>
    %449 = arith.addf %448, %447 : vector<2x32xf32>
    %450 = arith.divf %448, %449 : vector<2x32xf32>
    %451 = arith.addf %440, %443 : vector<2x32xf32>
    %452 = arith.negf %451 : vector<2x32xf32>
    %453 = math.exp %452 : vector<2x32xf32>
    %cst_191 = arith.constant 1.000000e+00 : f32
    %454 = vector.broadcast %cst_191 : f32 to vector<2x32xf32>
    %455 = arith.addf %454, %453 : vector<2x32xf32>
    %456 = arith.divf %454, %455 : vector<2x32xf32>
    %457 = arith.mulf %450, %444 : vector<2x32xf32>
    %458 = arith.addf %441, %457 : vector<2x32xf32>
    %459 = math.tanh %458 : vector<2x32xf32>
    %cst_192 = arith.constant 1.000000e+00 : f32
    %460 = vector.broadcast %cst_192 : f32 to vector<2x32xf32>
    %461 = arith.subf %460, %456 : vector<2x32xf32>
    %462 = arith.mulf %461, %459 : vector<2x32xf32>
    %463 = arith.mulf %456, %411 : vector<2x32xf32>
    %464 = arith.addf %462, %463 : vector<2x32xf32>
    %465 = arith.truncf %464 : vector<2x32xf32> to vector<2x32xbf16>
    %c0_193 = arith.constant 0 : index
    %c0_194 = arith.constant 0 : index
    %466 = vector.load %arg22[%c0_193, %c0_194] : memref<32x128xbf16, #tpu.memory_space<vmem>>, vector<32x128xbf16>
    %cst_195 = arith.constant dense<0.000000e+00> : vector<2x128xf32>
    %467 = tpu.matmul %465, %466, %cst_195 {dimension_numbers = #tpu.dot_dimension_numbers<[1], [0], [0], [1], [0, 0, 1, 1], [], []>} : vector<2x32xbf16>, vector<32x128xbf16>, vector<2x128xf32> -> vector<2x128xf32>
    %c0_196 = arith.constant 0 : index
    %c0_197 = arith.constant 0 : index
    %468 = vector.load %arg23[%c0_196, %c0_197] : memref<1x128xf32, #tpu.memory_space<vmem>>, vector<1x128xf32>
    %469 = vector.broadcast %468 : vector<1x128xf32> to vector<2x128xf32>
    %470 = arith.addf %467, %469 : vector<2x128xf32>
    %c4 = arith.constant 4 : index
    %c0_198 = arith.constant 0 : index
    %471 = vector.load %arg25[%c4, %c0_198] : memref<8x128xf32, #tpu.memory_space<vmem>>, vector<2x128xf32>
    tpu.vector_store %arg25[%c4, %c0_198], %470 {strides = array<i32>} : memref<8x128xf32, #tpu.memory_space<vmem>>, vector<2x128xf32>,
    %cst_199 = arith.constant dense<0xFF800000> : vector<2xf32>
    %472 = vector.multi_reduction <maximumf>, %470, %cst_199 [1] : vector<2x128xf32> to vector<2xf32>
    %473 = vector.shape_cast %472 : vector<2xf32> to vector<2x1xf32>
    %474 = vector.broadcast %473 : vector<2x1xf32> to vector<2x128xf32>
    %475 = arith.cmpf oeq, %470, %474 : vector<2x128xf32>
    %c128_i32_200 = arith.constant 128 : i32
    %476 = vector.broadcast %c128_i32_200 : i32 to vector<2x128xi32>
    %477 = arith.select %475, %326, %476 : vector<2x128xi1>, vector<2x128xi32>
    %cst_201 = arith.constant dense<2147483647> : vector<2xi32>
    %478 = vector.multi_reduction <minsi>, %477, %cst_201 [1] : vector<2x128xi32> to vector<2xi32>
    %479 = vector.shape_cast %478 : vector<2xi32> to vector<2x1xi32>
    %480 = vector.broadcast %479 : vector<2x1xi32> to vector<2x128xi32>
    %481 = arith.cmpi eq, %326, %480 : vector<2x128xi32>
    %482 = arith.extui %481 : vector<2x128xi1> to vector<2x128xi32>
    %483 = arith.sitofp %482 : vector<2x128xi32> to vector<2x128xf32>
    %c0_202 = arith.constant 0 : index
    %c0_203 = arith.constant 0 : index
    %484 = vector.load %arg24[%c0_202, %c0_203] : memref<128x32xf32, #tpu.memory_space<vmem>>, vector<128x32xf32>
    %cst_204 = arith.constant dense<0.000000e+00> : vector<2x32xf32>
    %485 = tpu.matmul %483, %484, %cst_204 {dimension_numbers = #tpu.dot_dimension_numbers<[1], [0], [0], [1], [0, 0, 1, 1], [], []>} : vector<2x128xf32>, vector<128x32xf32>, vector<2x32xf32> -> vector<2x32xf32>
    %486 = tpu.concatenate %485, %464 in 1 : vector<2x32xf32>, vector<2x32xf32> -> vector<2x64xf32>
    %487 = arith.truncf %486 : vector<2x64xf32> to vector<2x64xbf16>
    %c0_205 = arith.constant 0 : index
    %c0_206 = arith.constant 0 : index
    %488 = vector.load %arg20[%c0_205, %c0_206] : memref<64x192xbf16, #tpu.memory_space<vmem>>, vector<64x192xbf16>
    %cst_207 = arith.constant dense<0.000000e+00> : vector<2x192xf32>
    %489 = tpu.matmul %487, %488, %cst_207 {dimension_numbers = #tpu.dot_dimension_numbers<[1], [0], [0], [1], [0, 0, 1, 1], [], []>} : vector<2x64xbf16>, vector<64x192xbf16>, vector<2x192xf32> -> vector<2x192xf32>
    %490 = vector.broadcast %325 : vector<1x192xf32> to vector<2x192xf32>
    %491 = arith.addf %489, %490 : vector<2x192xf32>
    %492 = vector.extract_strided_slice %491 {offsets = [0, 0], sizes = [2, 32], strides = [1, 1]} : vector<2x192xf32> to vector<2x32xf32>
    %493 = vector.extract_strided_slice %491 {offsets = [0, 32], sizes = [2, 32], strides = [1, 1]} : vector<2x192xf32> to vector<2x32xf32>
    %494 = vector.extract_strided_slice %491 {offsets = [0, 64], sizes = [2, 32], strides = [1, 1]} : vector<2x192xf32> to vector<2x32xf32>
    %495 = vector.extract_strided_slice %491 {offsets = [0, 96], sizes = [2, 32], strides = [1, 1]} : vector<2x192xf32> to vector<2x32xf32>
    %496 = vector.extract_strided_slice %491 {offsets = [0, 128], sizes = [2, 32], strides = [1, 1]} : vector<2x192xf32> to vector<2x32xf32>
    %497 = vector.extract_strided_slice %491 {offsets = [0, 160], sizes = [2, 32], strides = [1, 1]} : vector<2x192xf32> to vector<2x32xf32>
    %498 = arith.addf %492, %495 : vector<2x32xf32>
    %499 = arith.negf %498 : vector<2x32xf32>
    %500 = math.exp %499 : vector<2x32xf32>
    %cst_208 = arith.constant 1.000000e+00 : f32
    %501 = vector.broadcast %cst_208 : f32 to vector<2x32xf32>
    %502 = arith.addf %501, %500 : vector<2x32xf32>
    %503 = arith.divf %501, %502 : vector<2x32xf32>
    %504 = arith.addf %493, %496 : vector<2x32xf32>
    %505 = arith.negf %504 : vector<2x32xf32>
    %506 = math.exp %505 : vector<2x32xf32>
    %cst_209 = arith.constant 1.000000e+00 : f32
    %507 = vector.broadcast %cst_209 : f32 to vector<2x32xf32>
    %508 = arith.addf %507, %506 : vector<2x32xf32>
    %509 = arith.divf %507, %508 : vector<2x32xf32>
    %510 = arith.mulf %503, %497 : vector<2x32xf32>
    %511 = arith.addf %494, %510 : vector<2x32xf32>
    %512 = math.tanh %511 : vector<2x32xf32>
    %cst_210 = arith.constant 1.000000e+00 : f32
    %513 = vector.broadcast %cst_210 : f32 to vector<2x32xf32>
    %514 = arith.subf %513, %509 : vector<2x32xf32>
    %515 = arith.mulf %514, %512 : vector<2x32xf32>
    %516 = arith.mulf %509, %464 : vector<2x32xf32>
    %517 = arith.addf %515, %516 : vector<2x32xf32>
    %518 = arith.truncf %517 : vector<2x32xf32> to vector<2x32xbf16>
    %c0_211 = arith.constant 0 : index
    %c0_212 = arith.constant 0 : index
    %519 = vector.load %arg22[%c0_211, %c0_212] : memref<32x128xbf16, #tpu.memory_space<vmem>>, vector<32x128xbf16>
    %cst_213 = arith.constant dense<0.000000e+00> : vector<2x128xf32>
    %520 = tpu.matmul %518, %519, %cst_213 {dimension_numbers = #tpu.dot_dimension_numbers<[1], [0], [0], [1], [0, 0, 1, 1], [], []>} : vector<2x32xbf16>, vector<32x128xbf16>, vector<2x128xf32> -> vector<2x128xf32>
    %c0_214 = arith.constant 0 : index
    %c0_215 = arith.constant 0 : index
    %521 = vector.load %arg23[%c0_214, %c0_215] : memref<1x128xf32, #tpu.memory_space<vmem>>, vector<1x128xf32>
    %522 = vector.broadcast %521 : vector<1x128xf32> to vector<2x128xf32>
    %523 = arith.addf %520, %522 : vector<2x128xf32>
    %c6 = arith.constant 6 : index
    %c0_216 = arith.constant 0 : index
    %524 = vector.load %arg25[%c6, %c0_216] : memref<8x128xf32, #tpu.memory_space<vmem>>, vector<2x128xf32>
    tpu.vector_store %arg25[%c6, %c0_216], %523 {strides = array<i32>} : memref<8x128xf32, #tpu.memory_space<vmem>>, vector<2x128xf32>,
    return
  }
}

</mosaic_0001>

<llo_original>
// kernel: date_conversion_forward.1
$region0: #{date_conversion_forward.1}
  #allocation0 [shape = 'u32[]', space=smem, size = 0x4, offset = 0x4, fixed_abs, tag = 'smem constant byte address 0x4 - core index']
  #allocation1 [shape = 'u32[144,128]{1,0:T(1,128)}', space=vmem, size = 0x12000, scoped, tag = 'internal scratch']
  %s0 = inlined_call_operand.vmem [shape: s32[16,1], index: 0, kind: input, shape index: {}]
  %s1 = inlined_call_operand.vmem [shape: s32[1,16], index: 1, kind: input, shape index: {}]
  %s2 = inlined_call_operand.vmem [shape: f32[16,16], index: 2, kind: input, shape index: {}]
  %s3 = inlined_call_operand.vmem [shape: f32[64,32], index: 3, kind: input, shape index: {}]
  %s4 = inlined_call_operand.vmem [shape: f32[16,32], index: 4, kind: input, shape index: {}]
  %s5 = inlined_call_operand.vmem [shape: f32[1,32], index: 5, kind: input, shape index: {}]
  %s6 = inlined_call_operand.vmem [shape: f32[1,32], index: 6, kind: input, shape index: {}]
  %s7 = inlined_call_operand.vmem [shape: bf16[2,32,768], index: 7, kind: input, shape index: {}]
  %s8 = inlined_call_operand.vmem [shape: f32[2,1,768], index: 8, kind: input, shape index: {}]
  %s9 = inlined_call_operand.vmem [shape: bf16[2,256,32], index: 9, kind: input, shape index: {}]
  %s10 = inlined_call_operand.vmem [shape: f32[2,1,32], index: 10, kind: input, shape index: {}]
  %s11 = inlined_call_operand.vmem [shape: f32[2,1,32], index: 11, kind: input, shape index: {}]
  %s12 = inlined_call_operand.vmem [shape: f32[2,1,32], index: 12, kind: input, shape index: {}]
  %s13 = inlined_call_operand.vmem [shape: bf16[2,32,64], index: 13, kind: input, shape index: {}]
  %s14 = inlined_call_operand.vmem [shape: f32[2,1,64], index: 14, kind: input, shape index: {}]
  %s15 = inlined_call_operand.vmem [shape: bf16[2,64,32], index: 15, kind: input, shape index: {}]
  %s16 = inlined_call_operand.vmem [shape: f32[2,1,32], index: 16, kind: input, shape index: {}]
  %s17 = inlined_call_operand.vmem [shape: f32[2,1,32], index: 17, kind: input, shape index: {}]
  %s18 = inlined_call_operand.vmem [shape: f32[2,1,32], index: 18, kind: input, shape index: {}]
  %s19 = inlined_call_operand.vmem [shape: f32[2,32], index: 19, kind: input, shape index: {}]
  %s20 = inlined_call_operand.vmem [shape: bf16[64,192], index: 20, kind: input, shape index: {}]
  %s21 = inlined_call_operand.vmem [shape: f32[1,192], index: 21, kind: input, shape index: {}]
  %s22 = inlined_call_operand.vmem [shape: bf16[32,128], index: 22, kind: input, shape index: {}]
  %s23 = inlined_call_operand.vmem [shape: f32[1,128], index: 23, kind: input, shape index: {}]
  %s24 = inlined_call_operand.vmem [shape: f32[128,32], index: 24, kind: input, shape index: {}]
  %s25 = inlined_call_operand.vmem [shape: f32[8,128], index: 25, kind: output, shape index: {}]
  %s26 = sld [smem:[#allocation0]]
  $region110: #{date_conversion_forward.1} parent=0
    _
  %s28 = ssub.s32 1, %s26
  %s29 = scalar_select 0, %s28, %s26
  // Predicated region
  $region2: #{date_conversion_forward.1} parent=0 // pred_check
    _
  $region3: #{date_conversion_forward.1} parent=0 // pred_check_branch
    %31 = sbr.rel (0) target = $region5
  $region4: #{date_conversion_forward.1} parent=0 // pred_region
    _
  $region5: #{date_conversion_forward.1} parent=0 // pred_fallthru
    _
  // Predicated region
  $region6: #{date_conversion_forward.1} parent=0 // pred_check
    _
  $region7: #{date_conversion_forward.1} parent=0 // pred_check_branch
    %33 = sbr.rel (0) target = $region9
  $region8: #{date_conversion_forward.1} parent=0 // pred_region
    _
  $region9: #{date_conversion_forward.1} parent=0 // pred_fallthru
    _
  // Predicated region
  $region10: #{date_conversion_forward.1} parent=0 // pred_check
    _
  $region11: #{date_conversion_forward.1} parent=0 // pred_check_branch
    %35 = sbr.rel (0) target = $region13
  $region12: #{date_conversion_forward.1} parent=0 // pred_region
    _
  $region13: #{date_conversion_forward.1} parent=0 // pred_fallthru
    _
  // Predicated region
  $region14: #{date_conversion_forward.1} parent=0 // pred_check
    _
  $region15: #{date_conversion_forward.1} parent=0 // pred_check_branch
    %37 = sbr.rel (0) target = $region17
  $region16: #{date_conversion_forward.1} parent=0 // pred_region
    _
  $region17: #{date_conversion_forward.1} parent=0 // pred_fallthru
    _
  // Predicated region
  $region18: #{date_conversion_forward.1} parent=0 // pred_check
    _
  $region19: #{date_conversion_forward.1} parent=0 // pred_check_branch
    %39 = sbr.rel (0) target = $region21
  $region20: #{date_conversion_forward.1} parent=0 // pred_region
    _
  $region21: #{date_conversion_forward.1} parent=0 // pred_fallthru
    _
  // Predicated region
  $region22: #{date_conversion_forward.1} parent=0 // pred_check
    _
  $region23: #{date_conversion_forward.1} parent=0 // pred_check_branch
    %41 = sbr.rel (0) target = $region25
  $region24: #{date_conversion_forward.1} parent=0 // pred_region
    _
  $region25: #{date_conversion_forward.1} parent=0 // pred_fallthru
    _
  // Predicated region
  $region26: #{date_conversion_forward.1} parent=0 // pred_check
    _
  $region27: #{date_conversion_forward.1} parent=0 // pred_check_branch
    %43 = sbr.rel (0) target = $region29
  $region28: #{date_conversion_forward.1} parent=0 // pred_region
    _
  $region29: #{date_conversion_forward.1} parent=0 // pred_fallthru
    _
  // Predicated region
  $region30: #{date_conversion_forward.1} parent=0 // pred_check
    _
  $region31: #{date_conversion_forward.1} parent=0 // pred_check_branch
    %45 = sbr.rel (0) target = $region33
  $region32: #{date_conversion_forward.1} parent=0 // pred_region
    _
  $region33: #{date_conversion_forward.1} parent=0 // pred_fallthru
    _
  // Predicated region
  $region34: #{date_conversion_forward.1} parent=0 // pred_check
    _
  $region35: #{date_conversion_forward.1} parent=0 // pred_check_branch
    %47 = sbr.rel (0) target = $region37
  $region36: #{date_conversion_forward.1} parent=0 // pred_region
    _
  $region37: #{date_conversion_forward.1} parent=0 // pred_fallthru
    _
  // Predicated region
  $region38: #{date_conversion_forward.1} parent=0 // pred_check
    _
  $region39: #{date_conversion_forward.1} parent=0 // pred_check_branch
    %49 = sbr.rel (0) target = $region41
  $region40: #{date_conversion_forward.1} parent=0 // pred_region
    _
  $region41: #{date_conversion_forward.1} parent=0 // pred_fallthru
    _
  // Predicated region
  $region42: #{date_conversion_forward.1} parent=0 // pred_check
    _
  $region43: #{date_conversion_forward.1} parent=0 // pred_check_branch
    %51 = sbr.rel (0) target = $region45
  $region44: #{date_conversion_forward.1} parent=0 // pred_region
    _
  $region45: #{date_conversion_forward.1} parent=0 // pred_fallthru
    _
  // Predicated region
  $region46: #{date_conversion_forward.1} parent=0 // pred_check
    _
  $region47: #{date_conversion_forward.1} parent=0 // pred_check_branch
    %53 = sbr.rel (0) target = $region49
  $region48: #{date_conversion_forward.1} parent=0 // pred_region
    _
  $region49: #{date_conversion_forward.1} parent=0 // pred_fallthru
    _
  // Predicated region
  $region50: #{date_conversion_forward.1} parent=0 // pred_check
    _
  $region51: #{date_conversion_forward.1} parent=0 // pred_check_branch
    %55 = sbr.rel (0) target = $region53
  $region52: #{date_conversion_forward.1} parent=0 // pred_region
    _
  $region53: #{date_conversion_forward.1} parent=0 // pred_fallthru
    _
  // Predicated region
  $region54: #{date_conversion_forward.1} parent=0 // pred_check
    _
  $region55: #{date_conversion_forward.1} parent=0 // pred_check_branch
    %57 = sbr.rel (0) target = $region57
  $region56: #{date_conversion_forward.1} parent=0 // pred_region
    _
  $region57: #{date_conversion_forward.1} parent=0 // pred_fallthru
    _
  // Predicated region
  $region58: #{date_conversion_forward.1} parent=0 // pred_check
    _
  $region59: #{date_conversion_forward.1} parent=0 // pred_check_branch
    %59 = sbr.rel (0) target = $region61
  $region60: #{date_conversion_forward.1} parent=0 // pred_region
    _
  $region61: #{date_conversion_forward.1} parent=0 // pred_fallthru
    _
  // Predicated region
  $region62: #{date_conversion_forward.1} parent=0 // pred_check
    _
  $region63: #{date_conversion_forward.1} parent=0 // pred_check_branch
    %61 = sbr.rel (0) target = $region65
  $region64: #{date_conversion_forward.1} parent=0 // pred_region
    _
  $region65: #{date_conversion_forward.1} parent=0 // pred_fallthru
    _
  // Predicated region
  $region66: #{date_conversion_forward.1} parent=0 // pred_check
    _
  $region67: #{date_conversion_forward.1} parent=0 // pred_check_branch
    %63 = sbr.rel (0) target = $region69
  $region68: #{date_conversion_forward.1} parent=0 // pred_region
    _
  $region69: #{date_conversion_forward.1} parent=0 // pred_fallthru
    _
  // Predicated region
  $region70: #{date_conversion_forward.1} parent=0 // pred_check
    _
  $region71: #{date_conversion_forward.1} parent=0 // pred_check_branch
    %65 = sbr.rel (0) target = $region73
  $region72: #{date_conversion_forward.1} parent=0 // pred_region
    _
  $region73: #{date_conversion_forward.1} parent=0 // pred_fallthru
    _
  // Predicated region
  $region74: #{date_conversion_forward.1} parent=0 // pred_check
    _
  $region75: #{date_conversion_forward.1} parent=0 // pred_check_branch
    %67 = sbr.rel (0) target = $region77
  $region76: #{date_conversion_forward.1} parent=0 // pred_region
    _
  $region77: #{date_conversion_forward.1} parent=0 // pred_fallthru
    _
  // Predicated region
  $region78: #{date_conversion_forward.1} parent=0 // pred_check
    _
  $region79: #{date_conversion_forward.1} parent=0 // pred_check_branch
    %69 = sbr.rel (0) target = $region81
  $region80: #{date_conversion_forward.1} parent=0 // pred_region
    _
  $region81: #{date_conversion_forward.1} parent=0 // pred_fallthru
    _
  // Predicated region
  $region82: #{date_conversion_forward.1} parent=0 // pred_check
    _
  $region83: #{date_conversion_forward.1} parent=0 // pred_check_branch
    %71 = sbr.rel (0) target = $region85
  $region84: #{date_conversion_forward.1} parent=0 // pred_region
    _
  $region85: #{date_conversion_forward.1} parent=0 // pred_fallthru
    _
  // Predicated region
  $region86: #{date_conversion_forward.1} parent=0 // pred_check
    _
  $region87: #{date_conversion_forward.1} parent=0 // pred_check_branch
    %73 = sbr.rel (0) target = $region89
  $region88: #{date_conversion_forward.1} parent=0 // pred_region
    _
  $region89: #{date_conversion_forward.1} parent=0 // pred_fallthru
    _
  // Predicated region
  $region90: #{date_conversion_forward.1} parent=0 // pred_check
    _
  $region91: #{date_conversion_forward.1} parent=0 // pred_check_branch
    %75 = sbr.rel (0) target = $region93
  $region92: #{date_conversion_forward.1} parent=0 // pred_region
    _
  $region93: #{date_conversion_forward.1} parent=0 // pred_fallthru
    _
  // Predicated region
  $region94: #{date_conversion_forward.1} parent=0 // pred_check
    _
  $region95: #{date_conversion_forward.1} parent=0 // pred_check_branch
    %77 = sbr.rel (0) target = $region97
  $region96: #{date_conversion_forward.1} parent=0 // pred_region
    _
  $region97: #{date_conversion_forward.1} parent=0 // pred_fallthru
    _
  // Predicated region
  $region98: #{date_conversion_forward.1} parent=0 // pred_check
    _
  $region99: #{date_conversion_forward.1} parent=0 // pred_check_branch
    %79 = sbr.rel (0) target = $region101
  $region100: #{date_conversion_forward.1} parent=0 // pred_region
    _
  $region101: #{date_conversion_forward.1} parent=0 // pred_fallthru
    _
  %v81 = vld [vmem:[%s0] sm:$0xff]
  %v82 = vld [vmem:[%s0 + $0x8] sm:$0xff]
  %v83 = vlaneseq
  %v84 = vand.u32 %v83, 127
  %85 = vset.pattern.permute.xlu0 0
  %86 = vperm.xlu0 %85, %v81
  %v87 = vpop.permute.xlu0 %86
  %88 = vset.pattern.permute.xlu0 0
  %89 = vperm.xlu0 %88, %v82
  %v90 = vpop.permute.xlu0 %89
  %vm91 = vcmp.eq.s32.totalorder %v84, %v87
  %vm92 = vcmp.eq.s32.totalorder %v84, %v90
  %v93 = vsel %vm91, 1, 0
  %v94 = vsel %vm92, 1, 0
  %v95 = vcvt.s32.f32 %v93
  %v96 = vcvt.s32.f32 %v94
  %v97 = vld [vmem:[%s3] sm:$0xff]
  %v98 = vld [vmem:[%s3 + $0x8] sm:$0xff]
  %v99 = vld [vmem:[%s3 + $0x10] sm:$0xff]
  %v100 = vld [vmem:[%s3 + $0x18] sm:$0xff]
  %v101 = vld [vmem:[%s3 + $0x20] sm:$0xff]
  %v102 = vld [vmem:[%s3 + $0x28] sm:$0xff]
  %v103 = vld [vmem:[%s3 + $0x30] sm:$0xff]
  %v104 = vld [vmem:[%s3 + $0x38] sm:$0xff]
  %v105 = vld [vmem:[%s4] sm:$0xff]
  %v106 = vld [vmem:[%s4 + $0x8] sm:$0xff]
  %vm107 = vcmask 523264
  %v109 = vsel %vm107, %v95, 0
  %v112 = vsel %vm107, %v96, 0
  %114 = vmatprep.subr.mxu0 0.0
  %115 = vmatpush1.msra.mxu0 %v97
  %116 = vmatprep.subr.mxu0 0.0
  %117 = vmatpush1.msra.mxu0 %v98
  %118 = vmatprep.subr.mxu0 0.0
  %119 = vmatpush1.msra.mxu0 %v99
  %120 = vmatprep.subr.mxu0 0.0
  %121 = vmatpush1.msra.mxu0 %v100
  %122 = vmatprep.subr.mxu0 0.0
  %123 = vmatpush1.msra.mxu0 %v101
  %124 = vmatprep.subr.mxu0 0.0
  %125 = vmatpush1.msra.mxu0 %v102
  %126 = vmatprep.subr.mxu0 0.0
  %127 = vmatpush1.msra.mxu0 %v103
  %128 = vmatprep.subr.mxu0 0.0
  %129 = vmatpush1.msra.mxu0 %v104
  %130 = vmatprep.subr.mxu0 0.0
  %131 = vmatpush1.msra.mxu0 0.0
  %132 = vmatprep.subr.mxu0 0.0
  %133 = vmatpush1.msra.mxu0 0.0
  %134 = vmatprep.subr.mxu0 0.0
  %135 = vmatpush1.msra.mxu0 0.0
  %136 = vmatprep.subr.mxu0 0.0
  %137 = vmatpush1.msra.mxu0 0.0
  %138 = vmatprep.subr.mxu0 0.0
  %139 = vmatpush1.msra.mxu0 0.0
  %140 = vmatprep.subr.mxu0 0.0
  %141 = vmatpush1.msra.mxu0 0.0
  %142 = vmatprep.subr.mxu0 0.0
  %143 = vmatpush1.msra.mxu0 0.0
  %144 = vmatprep.subr.mxu0 0.0
  %145 = vmatpush1.msra.mxu0 0.0
  %146 = vmatprep.subr.mxu0 0.0
  %147 = vmatpush1.msra.mxu0 0.0
  %148 = vmatprep.subr.mxu0 0.0
  %149 = vmatpush1.msra.mxu0 0.0
  %150 = vmatprep.subr.mxu0 0.0
  %151 = vmatpush1.msra.mxu0 0.0
  %152 = vmatprep.subr.mxu0 0.0
  %153 = vmatpush1.msra.mxu0 0.0
  %154 = vmatprep.subr.mxu0 0.0
  %155 = vmatpush1.msra.mxu0 0.0
  %156 = vmatprep.subr.mxu0 0.0
  %157 = vmatpush1.msra.mxu0 0.0
  %158 = vmatprep.subr.mxu0 0.0
  %159 = vmatpush1.msra.mxu0 0.0
  %160 = vmatprep.subr.mxu0 0.0
  %161 = vmatpush1.msra.mxu0 0.0
  %162 = vmatprep.subr.mxu0 0.0
  %163 = vmatpush1.msra.mxu0 0.0
  %164 = vmatprep.subr.mxu0 0.0
  %165 = vmatpush1.msra.mxu0 0.0
  %166 = vmatprep.subr.mxu0 0.0
  %167 = vmatpush1.msra.mxu0 0.0
  %168 = vmatprep.subr.mxu0 0.0
  %169 = vmatpush1.msra.mxu0 0.0
  %170 = vmatprep.subr.mxu0 0.0
  %171 = vmatpush1.msra.mxu0 0.0
  %172 = vmatprep.subr.mxu0 0.0
  %173 = vmatpush1.msra.mxu0 0.0
  %174 = vmatprep.subr.mxu0 0.0
  %175 = vmatpush1.msra.mxu0 0.0
  %176 = vmatprep.subr.mxu0 0.0
  %177 = vmatpush1.msra.mxu0 0.0
  %178 = vmatprep.mubr.f32.mxu0 0.0
  %179 = vmatmul.mubr.f32.gmra.mrb[0].mxu0 %v109
  %v180 = vpop.f32.mrb[0].mxu0
  %v181 = vadd.f32 %v105, %v180
  %v182 = vpop.f32.mrb[0].mxu0
  %183 = vmatprep.mubr.f32.mxu0 0.0
  %184 = vmatmul.mubr.f32.gmra.mrb[0].mxu0 %v112
  %v185 = vpop.f32.mrb[0].mxu0
  %v186 = vadd.f32 %v106, %v185
  %v187 = vpop.f32.mrb[0].mxu0
  %188 = vdwg.mxu0
  %v189 = vld [vmem:[%s5] sm:$0x1]
  %v190 = vld [vmem:[%s6] sm:$0x1]
  %vm191 = vcmask 261120
  %v192 = vsel %vm191, %v181, 0.0
  %193 = vadd.xlane.f32.xlu0 %v192
  %v194 = vpop.xlane.xlu0 %193
  %v195 = vsel %vm191, %v186, 0.0
  %196 = vadd.xlane.f32.xlu0 %v195
  %v197 = vpop.xlane.xlu0 %196
  %v198 = vrcp.pop 32.0
  %v199 = vmul.f32 %v194, %v198
  %v200 = vmul.f32 %v197, %v198
  %v201 = vsub.f32 %v181, %v199
  %v202 = vsub.f32 %v186, %v200
  %v203 = vmul.f32 %v201, %v201
  %v204 = vmul.f32 %v202, %v202
  %v205 = vsel %vm191, %v203, 0.0
  %206 = vadd.xlane.f32.xlu0 %v205
  %v207 = vpop.xlane.xlu0 %206
  %v208 = vsel %vm191, %v204, 0.0
  %209 = vadd.xlane.f32.xlu0 %v208
  %v210 = vpop.xlane.xlu0 %209
  %v211 = vmul.f32 %v207, %v198
  %v212 = vmul.f32 %v210, %v198
  %v213 = vadd.f32 %v211, 1e-12
  %v214 = vadd.f32 %v212, 1e-12
  %v215 = vrsqrt.pop %v213
  %v216 = vrsqrt.pop %v214
  %v217 = vmul.f32 %v201, %v215
  %v218 = vmul.f32 %v202, %v216
  %v220 = vlaneseq
  %v221 = vshrl.u32 %v220, 7
  %v222 = vsub.s32 0, %v221
  %v223 = vrot.slane %v189, %v222
  %v225 = vmul.f32 %v217, %v223
  %v226 = vmul.f32 %v218, %v223
  %v228 = vlaneseq
  %v229 = vshrl.u32 %v228, 7
  %v230 = vsub.s32 0, %v229
  %v231 = vrot.slane %v190, %v230
  %v233 = vadd.f32 %v225, %v231
  %v234 = vadd.f32 %v226, %v231
  %v235 = vld [vmem:[%s1] sm:$0x1]
  %v236 = vcvt.s32.f32 %v235
  %v237 = vsub.f32 1.0, %v236
  %v238 = vmul.f32 %v237, -1e+09
  %v239 = vld [vmem:[%s2] sm:$0xff]
  %v240 = vld [vmem:[%s2 + $0x8] sm:$0xff]
  %v242 = vlaneseq
  %v243 = vshrl.u32 %v242, 7
  %v244 = vsub.s32 0, %v243
  %v245 = vrot.slane %v238, %v244
  %v247 = vadd.f32 %v239, %v245
  %v248 = vadd.f32 %v240, %v245
  %v249 = vpack.c.bf16 %v234, %v233
  %v250 = vld [vmem:[%s7] sm:$0xff]
  %v251 = vld [vmem:[%s7 + $0x8] sm:$0xff]
  %v252 = vld [vmem:[%s7 + $0x10] sm:$0xff]
  %v253 = vld [vmem:[%s7 + $0x18] sm:$0xff]
  %v254 = vld [vmem:[%s7 + $0x20] sm:$0xff]
  %v255 = vld [vmem:[%s7 + $0x28] sm:$0xff]
  %v256 = vld [vmem:[%s7 + $0x30] sm:$0xff]
  %v257 = vld [vmem:[%s7 + $0x38] sm:$0xff]
  %v258 = vld [vmem:[%s7 + $0x40] sm:$0xff]
  %v259 = vld [vmem:[%s7 + $0x48] sm:$0xff]
  %v260 = vld [vmem:[%s7 + $0x50] sm:$0xff]
  %v261 = vld [vmem:[%s7 + $0x58] sm:$0xff]
  %v262 = vld [vmem:[%s8] sm:$0x3f]
  %v264 = vlaneseq
  %v265 = vshrl.u32 %v264, 7
  %v266 = vsub.s32 0, %v265
  %v267 = vrot.slane %v262, %v266
  %v268 = vlaneseq
  %v269 = vshrl.u32 %v268, 7
  %v270 = vsub.s32 1, %v269
  %v271 = vrot.slane %v262, %v270
  %v272 = vlaneseq
  %v273 = vshrl.u32 %v272, 7
  %v274 = vsub.s32 2, %v273
  %v275 = vrot.slane %v262, %v274
  %v276 = vlaneseq
  %v277 = vshrl.u32 %v276, 7
  %v278 = vsub.s32 3, %v277
  %v279 = vrot.slane %v262, %v278
  %v280 = vlaneseq
  %v281 = vshrl.u32 %v280, 7
  %v282 = vsub.s32 4, %v281
  %v283 = vrot.slane %v262, %v282
  %v284 = vlaneseq
  %v285 = vshrl.u32 %v284, 7
  %v286 = vsub.s32 5, %v285
  %v287 = vrot.slane %v262, %v286
  %v306 = vunpack.c.l.b16 %v250
  %v307 = vunpack.c.h.b16 %v250
  %v308 = vunpack.c.l.b16 %v251
  %v309 = vunpack.c.h.b16 %v251
  %v310 = vunpack.c.l.b16 %v252
  %v311 = vunpack.c.h.b16 %v252
  %v312 = vunpack.c.l.b16 %v253
  %v313 = vunpack.c.h.b16 %v253
  %v314 = vunpack.c.l.b16 %v254
  %v315 = vunpack.c.h.b16 %v254
  %v316 = vunpack.c.l.b16 %v255
  %v317 = vunpack.c.h.b16 %v255
  %v318 = vunpack.c.l.b16 %v256
  %v319 = vunpack.c.h.b16 %v256
  %v320 = vunpack.c.l.b16 %v257
  %v321 = vunpack.c.h.b16 %v257
  %v322 = vunpack.c.l.b16 %v258
  %v323 = vunpack.c.h.b16 %v258
  %v324 = vunpack.c.l.b16 %v259
  %v325 = vunpack.c.h.b16 %v259
  %v326 = vunpack.c.l.b16 %v260
  %v327 = vunpack.c.h.b16 %v260
  %v328 = vunpack.c.l.b16 %v261
  %v329 = vunpack.c.h.b16 %v261
  %v330 = vpack.c.b16 %v312, %v306
  %v331 = vpack.c.b16 %v313, %v307
  %v332 = vpack.c.b16 %v314, %v308
  %v333 = vpack.c.b16 %v315, %v309
  %v334 = vpack.c.b16 %v316, %v310
  %v335 = vpack.c.b16 %v317, %v311
  %v336 = vpack.c.b16 %v324, %v318
  %v337 = vpack.c.b16 %v325, %v319
  %v338 = vpack.c.b16 %v326, %v320
  %v339 = vpack.c.b16 %v327, %v321
  %v340 = vpack.c.b16 %v328, %v322
  %v341 = vpack.c.b16 %v329, %v323
  %v355 = vsel %vm191, %v249, 0
  %357 = vmatprep.subr.bf16.mxu0 %v331
  %358 = vmatpush1.bf16.msra.mxu0 %v330
  %359 = vmatprep.subr.bf16.mxu0 %v337
  %360 = vmatpush1.bf16.msra.mxu0 %v336
  %361 = vmatprep.subr.bf16.mxu0 0
  %362 = vmatpush1.bf16.msra.mxu0 0
  %363 = vmatprep.subr.bf16.mxu0 0
  %364 = vmatpush1.bf16.msra.mxu0 0
  %365 = vmatprep.subr.bf16.mxu0 0
  %366 = vmatpush1.bf16.msra.mxu0 0
  %367 = vmatprep.subr.bf16.mxu0 0
  %368 = vmatpush1.bf16.msra.mxu0 0
  %369 = vmatprep.subr.bf16.mxu0 0
  %370 = vmatpush1.bf16.msra.mxu0 0
  %371 = vmatprep.subr.bf16.mxu0 0
  %372 = vmatpush1.bf16.msra.mxu0 0
  %373 = vmatprep.subr.bf16.mxu0 0
  %374 = vmatpush1.bf16.msra.mxu0 0
  %375 = vmatprep.subr.bf16.mxu0 0
  %376 = vmatpush1.bf16.msra.mxu0 0
  %377 = vmatprep.subr.bf16.mxu0 0
  %378 = vmatpush1.bf16.msra.mxu0 0
  %379 = vmatprep.subr.bf16.mxu0 0
  %380 = vmatpush1.bf16.msra.mxu0 0
  %381 = vmatprep.subr.bf16.mxu0 0
  %382 = vmatpush1.bf16.msra.mxu0 0
  %383 = vmatprep.subr.bf16.mxu0 0
  %384 = vmatpush1.bf16.msra.mxu0 0
  %385 = vmatprep.subr.bf16.mxu0 0
  %386 = vmatpush1.bf16.msra.mxu0 0
  %387 = vmatprep.subr.bf16.mxu0 0
  %388 = vmatpush1.bf16.msra.mxu0 0
  %389 = vmatprep.mubr.bf16.mxu0 0
  %390 = vmatmul.mubr.bf16.gmra.mrb[0].mxu0 %v355
  %v391 = vpop.f32.mrb[0].mxu0
  %v392 = vadd.f32 %v267, %v391
  %v393 = vpop.f32.mrb[0].mxu0
  %v394 = vadd.f32 %v271, %v393
  %v395 = vpop.f32.mrb[0].mxu0
  %v396 = vadd.f32 %v267, %v395
  %v397 = vpop.f32.mrb[0].mxu0
  %v398 = vadd.f32 %v271, %v397
  %399 = vdwg.mxu0
  %400 = vmatprep.subr.bf16.mxu0 %v333
  %401 = vmatpush1.bf16.msra.mxu0 %v332
  %402 = vmatprep.subr.bf16.mxu0 %v339
  %403 = vmatpush1.bf16.msra.mxu0 %v338
  %404 = vmatprep.subr.bf16.mxu0 0
  %405 = vmatpush1.bf16.msra.mxu0 0
  %406 = vmatprep.subr.bf16.mxu0 0
  %407 = vmatpush1.bf16.msra.mxu0 0
  %408 = vmatprep.subr.bf16.mxu0 0
  %409 = vmatpush1.bf16.msra.mxu0 0
  %410 = vmatprep.subr.bf16.mxu0 0
  %411 = vmatpush1.bf16.msra.mxu0 0
  %412 = vmatprep.subr.bf16.mxu0 0
  %413 = vmatpush1.bf16.msra.mxu0 0
  %414 = vmatprep.subr.bf16.mxu0 0
  %415 = vmatpush1.bf16.msra.mxu0 0
  %416 = vmatprep.subr.bf16.mxu0 0
  %417 = vmatpush1.bf16.msra.mxu0 0
  %418 = vmatprep.subr.bf16.mxu0 0
  %419 = vmatpush1.bf16.msra.mxu0 0
  %420 = vmatprep.subr.bf16.mxu0 0
  %421 = vmatpush1.bf16.msra.mxu0 0
  %422 = vmatprep.subr.bf16.mxu0 0
  %423 = vmatpush1.bf16.msra.mxu0 0
  %424 = vmatprep.subr.bf16.mxu0 0
  %425 = vmatpush1.bf16.msra.mxu0 0
  %426 = vmatprep.subr.bf16.mxu0 0
  %427 = vmatpush1.bf16.msra.mxu0 0
  %428 = vmatprep.subr.bf16.mxu0 0
  %429 = vmatpush1.bf16.msra.mxu0 0
  %430 = vmatprep.subr.bf16.mxu0 0
  %431 = vmatpush1.bf16.msra.mxu0 0
  %432 = vmatprep.mubr.bf16.mxu0 0
  %433 = vmatmul.mubr.bf16.gmra.mrb[0].mxu0 %v355
  %v434 = vpop.f32.mrb[0].mxu0
  %v435 = vadd.f32 %v275, %v434
  %v436 = vpop.f32.mrb[0].mxu0
  %v437 = vadd.f32 %v279, %v436
  %v438 = vpop.f32.mrb[0].mxu0
  %v439 = vadd.f32 %v275, %v438
  %v440 = vpop.f32.mrb[0].mxu0
  %v441 = vadd.f32 %v279, %v440
  %442 = vdwg.mxu0
  %443 = vmatprep.subr.bf16.mxu0 %v335
  %444 = vmatpush1.bf16.msra.mxu0 %v334
  %445 = vmatprep.subr.bf16.mxu0 %v341
  %446 = vmatpush1.bf16.msra.mxu0 %v340
  %447 = vmatprep.subr.bf16.mxu0 0
  %448 = vmatpush1.bf16.msra.mxu0 0
  %449 = vmatprep.subr.bf16.mxu0 0
  %450 = vmatpush1.bf16.msra.mxu0 0
  %451 = vmatprep.subr.bf16.mxu0 0
  %452 = vmatpush1.bf16.msra.mxu0 0
  %453 = vmatprep.subr.bf16.mxu0 0
  %454 = vmatpush1.bf16.msra.mxu0 0
  %455 = vmatprep.subr.bf16.mxu0 0
  %456 = vmatpush1.bf16.msra.mxu0 0
  %457 = vmatprep.subr.bf16.mxu0 0
  %458 = vmatpush1.bf16.msra.mxu0 0
  %459 = vmatprep.subr.bf16.mxu0 0
  %460 = vmatpush1.bf16.msra.mxu0 0
  %461 = vmatprep.subr.bf16.mxu0 0
  %462 = vmatpush1.bf16.msra.mxu0 0
  %463 = vmatprep.subr.bf16.mxu0 0
  %464 = vmatpush1.bf16.msra.mxu0 0
  %465 = vmatprep.subr.bf16.mxu0 0
  %466 = vmatpush1.bf16.msra.mxu0 0
  %467 = vmatprep.subr.bf16.mxu0 0
  %468 = vmatpush1.bf16.msra.mxu0 0
  %469 = vmatprep.subr.bf16.mxu0 0
  %470 = vmatpush1.bf16.msra.mxu0 0
  %471 = vmatprep.subr.bf16.mxu0 0
  %472 = vmatpush1.bf16.msra.mxu0 0
  %473 = vmatprep.subr.bf16.mxu0 0
  %474 = vmatpush1.bf16.msra.mxu0 0
  %475 = vmatprep.mubr.bf16.mxu0 0
  %476 = vmatmul.mubr.bf16.gmra.mrb[0].mxu0 %v355
  %v477 = vpop.f32.mrb[0].mxu0
  %v478 = vadd.f32 %v283, %v477
  %v479 = vpop.f32.mrb[0].mxu0
  %v480 = vadd.f32 %v287, %v479
  %v481 = vpop.f32.mrb[0].mxu0
  %v482 = vadd.f32 %v283, %v481
  %v483 = vpop.f32.mrb[0].mxu0
  %v484 = vadd.f32 %v287, %v483
  %485 = vdwg.mxu0
  %486 = vmatprep.subr.mxu0 0.0
  %487 = vmatpush1.xpose.msra.mxu0 %v394
  %488 = vmatprep.subr.mxu0 0.0
  %489 = vmatpush1.xpose.msra.mxu0 %v398
  %490 = vmatprep.subr.mxu0 0.0
  %491 = vmatpush1.xpose.msra.mxu0 0.0
  %492 = vmatprep.subr.mxu0 0.0
  %493 = vmatpush1.xpose.msra.mxu0 0.0
  %494 = vmatprep.subr.mxu0 0.0
  %495 = vmatpush1.xpose.msra.mxu0 0.0
  %496 = vmatprep.subr.mxu0 0.0
  %497 = vmatpush1.xpose.msra.mxu0 0.0
  %498 = vmatprep.subr.mxu0 0.0
  %499 = vmatpush1.xpose.msra.mxu0 0.0
  %500 = vmatprep.subr.mxu0 0.0
  %501 = vmatpush1.xpose.msra.mxu0 0.0
  %502 = vmatprep.subr.mxu0 0.0
  %503 = vmatpush1.xpose.msra.mxu0 0.0
  %504 = vmatprep.subr.mxu0 0.0
  %505 = vmatpush1.xpose.msra.mxu0 0.0
  %506 = vmatprep.subr.mxu0 0.0
  %507 = vmatpush1.xpose.msra.mxu0 0.0
  %508 = vmatprep.subr.mxu0 0.0
  %509 = vmatpush1.xpose.msra.mxu0 0.0
  %510 = vmatprep.subr.mxu0 0.0
  %511 = vmatpush1.xpose.msra.mxu0 0.0
  %512 = vmatprep.subr.mxu0 0.0
  %513 = vmatpush1.xpose.msra.mxu0 0.0
  %514 = vmatprep.subr.mxu0 0.0
  %515 = vmatpush1.xpose.msra.mxu0 0.0
  %516 = vmatprep.subr.mxu0 0.0
  %517 = vmatpush1.xpose.msra.mxu0 0.0
  %518 = vmatprep.subr.mxu0 0.0
  %519 = vmatpush1.xpose.msra.mxu0 0.0
  %520 = vmatprep.subr.mxu0 0.0
  %521 = vmatpush1.xpose.msra.mxu0 0.0
  %522 = vmatprep.subr.mxu0 0.0
  %523 = vmatpush1.xpose.msra.mxu0 0.0
  %524 = vmatprep.subr.mxu0 0.0
  %525 = vmatpush1.xpose.msra.mxu0 0.0
  %526 = vmatprep.subr.mxu0 0.0
  %527 = vmatpush1.xpose.msra.mxu0 0.0
  %528 = vmatprep.subr.mxu0 0.0
  %529 = vmatpush1.xpose.msra.mxu0 0.0
  %530 = vmatprep.subr.mxu0 0.0
  %531 = vmatpush1.xpose.msra.mxu0 0.0
  %532 = vmatprep.subr.mxu0 0.0
  %533 = vmatpush1.xpose.msra.mxu0 0.0
  %534 = vmatprep.subr.mxu0 0.0
  %535 = vmatpush1.xpose.msra.mxu0 0.0
  %536 = vmatprep.subr.mxu0 0.0
  %537 = vmatpush1.xpose.msra.mxu0 0.0
  %538 = vmatprep.subr.mxu0 0.0
  %539 = vmatpush1.xpose.msra.mxu0 0.0
  %540 = vmatprep.subr.mxu0 0.0
  %541 = vmatpush1.xpose.msra.mxu0 0.0
  %542 = vmatprep.subr.mxu0 0.0
  %543 = vmatpush1.xpose.msra.mxu0 0.0
  %544 = vmatprep.subr.mxu0 0.0
  %545 = vmatpush1.xpose.msra.mxu0 0.0
  %546 = vmatprep.subr.mxu0 0.0
  %547 = vmatpush1.xpose.msra.mxu0 0.0
  %548 = vmatprep.subr.mxu0 0.0
  %549 = vmatpush1.xpose.msra.mxu0 0.0
  %550 = vmatprep.mubr.f32.mxu0 0.0
  %551 = vmatmul.mubr.f32.gmra.mrb[0].mxu0 %v392
  %v552 = vpop.f32.mrb[0].mxu0
  %v553 = vadd.f32 0.0, %v552
  %v554 = vpop.f32.mrb[0].mxu0
  %555 = vmatprep.mubr.f32.mxu0 0.0
  %556 = vmatmul.mubr.f32.gmra.mrb[0].mxu0 %v396
  %v557 = vpop.f32.mrb[0].mxu0
  %v558 = vadd.f32 0.0, %v557
  %v559 = vpop.f32.mrb[0].mxu0
  %560 = vdwg.mxu0
  %v561 = vmul.f32 %v553, 0.25
  %v562 = vmul.f32 %v558, 0.25
  %v563 = vadd.f32 %v561, %v247
  %v564 = vadd.f32 %v562, %v248
  %vm565 = vcmask 130048
  %v566 = vsel %vm565, %v563, -inf
  %567 = vmax.xlane.f32.xlu0 %v566
  %v568 = vpop.xlane.xlu0 %567
  %v569 = vsel %vm565, %v564, -inf
  %570 = vmax.xlane.f32.xlu0 %v569
  %v571 = vpop.xlane.xlu0 %570
  %v572 = vsub.f32 %v563, %v568
  %v573 = vsub.f32 %v564, %v571
  %v574 = vmul.f32 %v572, 1.442695
  %v575 = vpow.pop %v574
  %v576 = vmul.f32 %v573, 1.442695
  %v577 = vpow.pop %v576
  %v578 = vsel %vm565, %v575, 0.0
  %579 = vadd.xlane.f32.xlu0 %v578
  %v580 = vpop.xlane.xlu0 %579
  %v581 = vsel %vm565, %v577, 0.0
  %582 = vadd.xlane.f32.xlu0 %v581
  %v583 = vpop.xlane.xlu0 %582
  %v584 = vrcp.pop %v580
  %v585 = vmul.f32 %v575, %v584
  %v586 = vrcp.pop %v583
  %v587 = vmul.f32 %v577, %v586
  %v589 = vsel %vm565, %v585, 0
  %v592 = vsel %vm565, %v587, 0
  %594 = vmatprep.subr.mxu0 0.0
  %595 = vmatpush1.msra.mxu0 %v435
  %596 = vmatprep.subr.mxu0 0.0
  %597 = vmatpush1.msra.mxu0 %v439
  %598 = vmatprep.subr.mxu0 0.0
  %599 = vmatpush1.msra.mxu0 0.0
  %600 = vmatprep.subr.mxu0 0.0
  %601 = vmatpush1.msra.mxu0 0.0
  %602 = vmatprep.subr.mxu0 0.0
  %603 = vmatpush1.msra.mxu0 0.0
  %604 = vmatprep.subr.mxu0 0.0
  %605 = vmatpush1.msra.mxu0 0.0
  %606 = vmatprep.subr.mxu0 0.0
  %607 = vmatpush1.msra.mxu0 0.0
  %608 = vmatprep.subr.mxu0 0.0
  %609 = vmatpush1.msra.mxu0 0.0
  %610 = vmatprep.subr.mxu0 0.0
  %611 = vmatpush1.msra.mxu0 0.0
  %612 = vmatprep.subr.mxu0 0.0
  %613 = vmatpush1.msra.mxu0 0.0
  %614 = vmatprep.subr.mxu0 0.0
  %615 = vmatpush1.msra.mxu0 0.0
  %616 = vmatprep.subr.mxu0 0.0
  %617 = vmatpush1.msra.mxu0 0.0
  %618 = vmatprep.subr.mxu0 0.0
  %619 = vmatpush1.msra.mxu0 0.0
  %620 = vmatprep.subr.mxu0 0.0
  %621 = vmatpush1.msra.mxu0 0.0
  %622 = vmatprep.subr.mxu0 0.0
  %623 = vmatpush1.msra.mxu0 0.0
  %624 = vmatprep.subr.mxu0 0.0
  %625 = vmatpush1.msra.mxu0 0.0
  %626 = vmatprep.subr.mxu0 0.0
  %627 = vmatpush1.msra.mxu0 0.0
  %628 = vmatprep.subr.mxu0 0.0
  %629 = vmatpush1.msra.mxu0 0.0
  %630 = vmatprep.subr.mxu0 0.0
  %631 = vmatpush1.msra.mxu0 0.0
  %632 = vmatprep.subr.mxu0 0.0
  %633 = vmatpush1.msra.mxu0 0.0
  %634 = vmatprep.subr.mxu0 0.0
  %635 = vmatpush1.msra.mxu0 0.0
  %636 = vmatprep.subr.mxu0 0.0
  %637 = vmatpush1.msra.mxu0 0.0
  %638 = vmatprep.subr.mxu0 0.0
  %639 = vmatpush1.msra.mxu0 0.0
  %640 = vmatprep.subr.mxu0 0.0
  %641 = vmatpush1.msra.mxu0 0.0
  %642 = vmatprep.subr.mxu0 0.0
  %643 = vmatpush1.msra.mxu0 0.0
  %644 = vmatprep.subr.mxu0 0.0
  %645 = vmatpush1.msra.mxu0 0.0
  %646 = vmatprep.subr.mxu0 0.0
  %647 = vmatpush1.msra.mxu0 0.0
  %648 = vmatprep.subr.mxu0 0.0
  %649 = vmatpush1.msra.mxu0 0.0
  %650 = vmatprep.subr.mxu0 0.0
  %651 = vmatpush1.msra.mxu0 0.0
  %652 = vmatprep.subr.mxu0 0.0
  %653 = vmatpush1.msra.mxu0 0.0
  %654 = vmatprep.subr.mxu0 0.0
  %655 = vmatpush1.msra.mxu0 0.0
  %656 = vmatprep.subr.mxu0 0.0
  %657 = vmatpush1.msra.mxu0 0.0
  %658 = vmatprep.mubr.f32.mxu0 0.0
  %659 = vmatmul.mubr.f32.gmra.mrb[0].mxu0 %v589
  %v660 = vpop.f32.mrb[0].mxu0
  %v661 = vadd.f32 0.0, %v660
  %v662 = vpop.f32.mrb[0].mxu0
  %663 = vmatprep.mubr.f32.mxu0 0.0
  %664 = vmatmul.mubr.f32.gmra.mrb[0].mxu0 %v592
  %v665 = vpop.f32.mrb[0].mxu0
  %v666 = vadd.f32 0.0, %v665
  %v667 = vpop.f32.mrb[0].mxu0
  %668 = vdwg.mxu0
  %669 = vmatprep.subr.mxu0 0.0
  %670 = vmatpush1.xpose.msra.mxu0 %v478
  %671 = vmatprep.subr.mxu0 0.0
  %672 = vmatpush1.xpose.msra.mxu0 %v482
  %673 = vmatprep.subr.mxu0 0.0
  %674 = vmatpush1.xpose.msra.mxu0 0.0
  %675 = vmatprep.subr.mxu0 0.0
  %676 = vmatpush1.xpose.msra.mxu0 0.0
  %677 = vmatprep.subr.mxu0 0.0
  %678 = vmatpush1.xpose.msra.mxu0 0.0
  %679 = vmatprep.subr.mxu0 0.0
  %680 = vmatpush1.xpose.msra.mxu0 0.0
  %681 = vmatprep.subr.mxu0 0.0
  %682 = vmatpush1.xpose.msra.mxu0 0.0
  %683 = vmatprep.subr.mxu0 0.0
  %684 = vmatpush1.xpose.msra.mxu0 0.0
  %685 = vmatprep.subr.mxu0 0.0
  %686 = vmatpush1.xpose.msra.mxu0 0.0
  %687 = vmatprep.subr.mxu0 0.0
  %688 = vmatpush1.xpose.msra.mxu0 0.0
  %689 = vmatprep.subr.mxu0 0.0
  %690 = vmatpush1.xpose.msra.mxu0 0.0
  %691 = vmatprep.subr.mxu0 0.0
  %692 = vmatpush1.xpose.msra.mxu0 0.0
  %693 = vmatprep.subr.mxu0 0.0
  %694 = vmatpush1.xpose.msra.mxu0 0.0
  %695 = vmatprep.subr.mxu0 0.0
  %696 = vmatpush1.xpose.msra.mxu0 0.0
  %697 = vmatprep.subr.mxu0 0.0
  %698 = vmatpush1.xpose.msra.mxu0 0.0
  %699 = vmatprep.subr.mxu0 0.0
  %700 = vmatpush1.xpose.msra.mxu0 0.0
  %701 = vmatprep.subr.mxu0 0.0
  %702 = vmatpush1.xpose.msra.mxu0 0.0
  %703 = vmatprep.subr.mxu0 0.0
  %704 = vmatpush1.xpose.msra.mxu0 0.0
  %705 = vmatprep.subr.mxu0 0.0
  %706 = vmatpush1.xpose.msra.mxu0 0.0
  %707 = vmatprep.subr.mxu0 0.0
  %708 = vmatpush1.xpose.msra.mxu0 0.0
  %709 = vmatprep.subr.mxu0 0.0
  %710 = vmatpush1.xpose.msra.mxu0 0.0
  %711 = vmatprep.subr.mxu0 0.0
  %712 = vmatpush1.xpose.msra.mxu0 0.0
  %713 = vmatprep.subr.mxu0 0.0
  %714 = vmatpush1.xpose.msra.mxu0 0.0
  %715 = vmatprep.subr.mxu0 0.0
  %716 = vmatpush1.xpose.msra.mxu0 0.0
  %717 = vmatprep.subr.mxu0 0.0
  %718 = vmatpush1.xpose.msra.mxu0 0.0
  %719 = vmatprep.subr.mxu0 0.0
  %720 = vmatpush1.xpose.msra.mxu0 0.0
  %721 = vmatprep.subr.mxu0 0.0
  %722 = vmatpush1.xpose.msra.mxu0 0.0
  %723 = vmatprep.subr.mxu0 0.0
  %724 = vmatpush1.xpose.msra.mxu0 0.0
  %725 = vmatprep.subr.mxu0 0.0
  %726 = vmatpush1.xpose.msra.mxu0 0.0
  %727 = vmatprep.subr.mxu0 0.0
  %728 = vmatpush1.xpose.msra.mxu0 0.0
  %729 = vmatprep.subr.mxu0 0.0
  %730 = vmatpush1.xpose.msra.mxu0 0.0
  %731 = vmatprep.subr.mxu0 0.0
  %732 = vmatpush1.xpose.msra.mxu0 0.0
  %733 = vmatprep.mubr.f32.mxu0 0.0
  %734 = vmatmul.mubr.f32.gmra.mrb[0].mxu0 %v437
  %v735 = vpop.f32.mrb[0].mxu0
  %v736 = vadd.f32 0.0, %v735
  %v737 = vpop.f32.mrb[0].mxu0
  %738 = vmatprep.mubr.f32.mxu0 0.0
  %739 = vmatmul.mubr.f32.gmra.mrb[0].mxu0 %v441
  %v740 = vpop.f32.mrb[0].mxu0
  %v741 = vadd.f32 0.0, %v740
  %v742 = vpop.f32.mrb[0].mxu0
  %743 = vdwg.mxu0
  %v744 = vmul.f32 %v736, 0.25
  %v745 = vmul.f32 %v741, 0.25
  %v746 = vadd.f32 %v744, %v247
  %v747 = vadd.f32 %v745, %v248
  %v748 = vsel %vm565, %v746, -inf
  %749 = vmax.xlane.f32.xlu0 %v748
  %v750 = vpop.xlane.xlu0 %749
  %v751 = vsel %vm565, %v747, -inf
  %752 = vmax.xlane.f32.xlu0 %v751
  %v753 = vpop.xlane.xlu0 %752
  %v754 = vsub.f32 %v746, %v750
  %v755 = vsub.f32 %v747, %v753
  %v756 = vmul.f32 %v754, 1.442695
  %v757 = vpow.pop %v756
  %v758 = vmul.f32 %v755, 1.442695
  %v759 = vpow.pop %v758
  %v760 = vsel %vm565, %v757, 0.0
  %761 = vadd.xlane.f32.xlu0 %v760
  %v762 = vpop.xlane.xlu0 %761
  %v763 = vsel %vm565, %v759, 0.0
  %764 = vadd.xlane.f32.xlu0 %v763
  %v765 = vpop.xlane.xlu0 %764
  %v766 = vrcp.pop %v762
  %v767 = vmul.f32 %v757, %v766
  %v768 = vrcp.pop %v765
  %v769 = vmul.f32 %v759, %v768
  %v771 = vsel %vm565, %v767, 0
  %v774 = vsel %vm565, %v769, 0
  %776 = vmatprep.subr.mxu0 0.0
  %777 = vmatpush1.msra.mxu0 %v480
  %778 = vmatprep.subr.mxu0 0.0
  %779 = vmatpush1.msra.mxu0 %v484
  %780 = vmatprep.subr.mxu0 0.0
  %781 = vmatpush1.msra.mxu0 0.0
  %782 = vmatprep.subr.mxu0 0.0
  %783 = vmatpush1.msra.mxu0 0.0
  %784 = vmatprep.subr.mxu0 0.0
  %785 = vmatpush1.msra.mxu0 0.0
  %786 = vmatprep.subr.mxu0 0.0
  %787 = vmatpush1.msra.mxu0 0.0
  %788 = vmatprep.subr.mxu0 0.0
  %789 = vmatpush1.msra.mxu0 0.0
  %790 = vmatprep.subr.mxu0 0.0
  %791 = vmatpush1.msra.mxu0 0.0
  %792 = vmatprep.subr.mxu0 0.0
  %793 = vmatpush1.msra.mxu0 0.0
  %794 = vmatprep.subr.mxu0 0.0
  %795 = vmatpush1.msra.mxu0 0.0
  %796 = vmatprep.subr.mxu0 0.0
  %797 = vmatpush1.msra.mxu0 0.0
  %798 = vmatprep.subr.mxu0 0.0
  %799 = vmatpush1.msra.mxu0 0.0
  %800 = vmatprep.subr.mxu0 0.0
  %801 = vmatpush1.msra.mxu0 0.0
  %802 = vmatprep.subr.mxu0 0.0
  %803 = vmatpush1.msra.mxu0 0.0
  %804 = vmatprep.subr.mxu0 0.0
  %805 = vmatpush1.msra.mxu0 0.0
  %806 = vmatprep.subr.mxu0 0.0
  %807 = vmatpush1.msra.mxu0 0.0
  %808 = vmatprep.subr.mxu0 0.0
  %809 = vmatpush1.msra.mxu0 0.0
  %810 = vmatprep.subr.mxu0 0.0
  %811 = vmatpush1.msra.mxu0 0.0
  %812 = vmatprep.subr.mxu0 0.0
  %813 = vmatpush1.msra.mxu0 0.0
  %814 = vmatprep.subr.mxu0 0.0
  %815 = vmatpush1.msra.mxu0 0.0
  %816 = vmatprep.subr.mxu0 0.0
  %817 = vmatpush1.msra.mxu0 0.0
  %818 = vmatprep.subr.mxu0 0.0
  %819 = vmatpush1.msra.mxu0 0.0
  %820 = vmatprep.subr.mxu0 0.0
  %821 = vmatpush1.msra.mxu0 0.0
  %822 = vmatprep.subr.mxu0 0.0
  %823 = vmatpush1.msra.mxu0 0.0
  %824 = vmatprep.subr.mxu0 0.0
  %825 = vmatpush1.msra.mxu0 0.0
  %826 = vmatprep.subr.mxu0 0.0
  %827 = vmatpush1.msra.mxu0 0.0
  %828 = vmatprep.subr.mxu0 0.0
  %829 = vmatpush1.msra.mxu0 0.0
  %830 = vmatprep.subr.mxu0 0.0
  %831 = vmatpush1.msra.mxu0 0.0
  %832 = vmatprep.subr.mxu0 0.0
  %833 = vmatpush1.msra.mxu0 0.0
  %834 = vmatprep.subr.mxu0 0.0
  %835 = vmatpush1.msra.mxu0 0.0
  %836 = vmatprep.subr.mxu0 0.0
  %837 = vmatpush1.msra.mxu0 0.0
  %838 = vmatprep.subr.mxu0 0.0
  %839 = vmatpush1.msra.mxu0 0.0
  %840 = vmatprep.mubr.f32.mxu0 0.0
  %841 = vmatmul.mubr.f32.gmra.mrb[0].mxu0 %v771
  %v842 = vpop.f32.mrb[0].mxu0
  %v843 = vadd.f32 0.0, %v842
  %v844 = vpop.f32.mrb[0].mxu0
  %845 = vmatprep.mubr.f32.mxu0 0.0
  %846 = vmatmul.mubr.f32.gmra.mrb[0].mxu0 %v774
  %v847 = vpop.f32.mrb[0].mxu0
  %v848 = vadd.f32 0.0, %v847
  %v849 = vpop.f32.mrb[0].mxu0
  %850 = vdwg.mxu0
  %v851 = vpack.c.bf16 %v666, %v661
  %v852 = vpack.c.bf16 %v848, %v843
  %v853 = vld [vmem:[%s9] sm:$0xf]
  %v854 = vld [vmem:[%s9 + $0x4] sm:$0xf]
  %v855 = vld [vmem:[%s9 + $0x8] sm:$0xf]
  %v856 = vld [vmem:[%s9 + $0xc] sm:$0xf]
  %v857 = vld [vmem:[%s9 + $0x10] sm:$0xf]
  %v858 = vld [vmem:[%s9 + $0x14] sm:$0xf]
  %v859 = vld [vmem:[%s9 + $0x18] sm:$0xf]
  %v860 = vld [vmem:[%s9 + $0x1c] sm:$0xf]
  %v861 = vld [vmem:[%s9 + $0x20] sm:$0xf]
  %v862 = vld [vmem:[%s9 + $0x24] sm:$0xf]
  %v863 = vld [vmem:[%s9 + $0x28] sm:$0xf]
  %v864 = vld [vmem:[%s9 + $0x2c] sm:$0xf]
  %v865 = vld [vmem:[%s9 + $0x30] sm:$0xf]
  %v866 = vld [vmem:[%s9 + $0x34] sm:$0xf]
  %v867 = vld [vmem:[%s9 + $0x38] sm:$0xf]
  %v868 = vld [vmem:[%s9 + $0x3c] sm:$0xf]
  %v869 = vld [vmem:[%s9 + $0x40] sm:$0xf]
  %v870 = vld [vmem:[%s9 + $0x44] sm:$0xf]
  %v871 = vld [vmem:[%s9 + $0x48] sm:$0xf]
  %v872 = vld [vmem:[%s9 + $0x4c] sm:$0xf]
  %v873 = vld [vmem:[%s9 + $0x50] sm:$0xf]
  %v874 = vld [vmem:[%s9 + $0x54] sm:$0xf]
  %v875 = vld [vmem:[%s9 + $0x58] sm:$0xf]
  %v876 = vld [vmem:[%s9 + $0x5c] sm:$0xf]
  %v877 = vld [vmem:[%s9 + $0x60] sm:$0xf]
  %v878 = vld [vmem:[%s9 + $0x64] sm:$0xf]
  %v879 = vld [vmem:[%s9 + $0x68] sm:$0xf]
  %v880 = vld [vmem:[%s9 + $0x6c] sm:$0xf]
  %v881 = vld [vmem:[%s9 + $0x70] sm:$0xf]
  %v882 = vld [vmem:[%s9 + $0x74] sm:$0xf]
  %v883 = vld [vmem:[%s9 + $0x78] sm:$0xf]
  %v884 = vld [vmem:[%s9 + $0x7c] sm:$0xf]
  %v885 = vld [vmem:[%s10] sm:$0x1]
  %v887 = vlaneseq
  %v888 = vshrl.u32 %v887, 7
  %v889 = vsub.s32 0, %v888
  %v890 = vrot.slane %v885, %v889
  %v924 = vunpack.c.l.b16 %v853
  %v925 = vunpack.c.l.b16 %v854
  %v926 = vunpack.c.l.b16 %v855
  %v927 = vunpack.c.l.b16 %v856
  %v928 = vunpack.c.l.b16 %v857
  %v929 = vunpack.c.l.b16 %v858
  %v930 = vunpack.c.l.b16 %v859
  %v931 = vunpack.c.l.b16 %v860
  %v932 = vunpack.c.l.b16 %v861
  %v933 = vunpack.c.l.b16 %v862
  %v934 = vunpack.c.l.b16 %v863
  %v935 = vunpack.c.l.b16 %v864
  %v936 = vunpack.c.l.b16 %v865
  %v937 = vunpack.c.l.b16 %v866
  %v938 = vunpack.c.l.b16 %v867
  %v939 = vunpack.c.l.b16 %v868
  %v940 = vunpack.c.l.b16 %v869
  %v941 = vunpack.c.l.b16 %v870
  %v942 = vunpack.c.l.b16 %v871
  %v943 = vunpack.c.l.b16 %v872
  %v944 = vunpack.c.l.b16 %v873
  %v945 = vunpack.c.l.b16 %v874
  %v946 = vunpack.c.l.b16 %v875
  %v947 = vunpack.c.l.b16 %v876
  %v948 = vunpack.c.l.b16 %v877
  %v949 = vunpack.c.l.b16 %v878
  %v950 = vunpack.c.l.b16 %v879
  %v951 = vunpack.c.l.b16 %v880
  %v952 = vunpack.c.l.b16 %v881
  %v953 = vunpack.c.l.b16 %v882
  %v954 = vunpack.c.l.b16 %v883
  %v955 = vunpack.c.l.b16 %v884
  %v956 = vpack.c.b16 %v925, %v924
  %v957 = vpack.c.b16 %v927, %v926
  %v958 = vpack.c.b16 %v929, %v928
  %v959 = vpack.c.b16 %v931, %v930
  %v960 = vpack.c.b16 %v933, %v932
  %v961 = vpack.c.b16 %v935, %v934
  %v962 = vpack.c.b16 %v937, %v936
  %v963 = vpack.c.b16 %v939, %v938
  %v964 = vpack.c.b16 %v941, %v940
  %v965 = vpack.c.b16 %v943, %v942
  %v966 = vpack.c.b16 %v945, %v944
  %v967 = vpack.c.b16 %v947, %v946
  %v968 = vpack.c.b16 %v949, %v948
  %v969 = vpack.c.b16 %v951, %v950
  %v970 = vpack.c.b16 %v953, %v952
  %v971 = vpack.c.b16 %v955, %v954
  %988 = vmatprep.subr.bf16.mxu0 0
  %989 = vmatpush1.bf16.msra.mxu0 %v956
  %990 = vmatprep.subr.bf16.mxu0 0
  %991 = vmatpush1.bf16.msra.mxu0 %v957
  %992 = vmatprep.subr.bf16.mxu0 0
  %993 = vmatpush1.bf16.msra.mxu0 %v958
  %994 = vmatprep.subr.bf16.mxu0 0
  %995 = vmatpush1.bf16.msra.mxu0 %v959
  %996 = vmatprep.subr.bf16.mxu0 0
  %997 = vmatpush1.bf16.msra.mxu0 %v960
  %998 = vmatprep.subr.bf16.mxu0 0
  %999 = vmatpush1.bf16.msra.mxu0 %v961
  %1000 = vmatprep.subr.bf16.mxu0 0
  %1001 = vmatpush1.bf16.msra.mxu0 %v962
  %1002 = vmatprep.subr.bf16.mxu0 0
  %1003 = vmatpush1.bf16.msra.mxu0 %v963
  %1004 = vmatprep.subr.bf16.mxu0 0
  %1005 = vmatpush1.bf16.msra.mxu0 %v964
  %1006 = vmatprep.subr.bf16.mxu0 0
  %1007 = vmatpush1.bf16.msra.mxu0 %v965
  %1008 = vmatprep.subr.bf16.mxu0 0
  %1009 = vmatpush1.bf16.msra.mxu0 %v966
  %1010 = vmatprep.subr.bf16.mxu0 0
  %1011 = vmatpush1.bf16.msra.mxu0 %v967
  %1012 = vmatprep.subr.bf16.mxu0 0
  %1013 = vmatpush1.bf16.msra.mxu0 %v968
  %1014 = vmatprep.subr.bf16.mxu0 0
  %1015 = vmatpush1.bf16.msra.mxu0 %v969
  %1016 = vmatprep.subr.bf16.mxu0 0
  %1017 = vmatpush1.bf16.msra.mxu0 %v970
  %1018 = vmatprep.subr.bf16.mxu0 0
  %1019 = vmatpush1.bf16.msra.mxu0 %v971
  %1020 = vmatprep.mubr.bf16.mxu0 %v852
  %1021 = vmatmul.mubr.bf16.gmra.mrb[0].mxu0 %v851
  %v1022 = vpop.f32.mrb[0].mxu0
  %v1023 = vadd.f32 %v890, %v1022
  %v1024 = vpop.f32.mrb[0].mxu0
  %v1025 = vpop.f32.mrb[0].mxu0
  %v1026 = vadd.f32 %v890, %v1025
  %v1027 = vpop.f32.mrb[0].mxu0
  %1028 = vdwg.mxu0
  %v1029 = vadd.f32 %v233, %v1023
  %v1030 = vadd.f32 %v234, %v1026
  %v1031 = vld [vmem:[%s11] sm:$0x1]
  %v1032 = vld [vmem:[%s12] sm:$0x1]
  %v1033 = vsel %vm191, %v1029, 0.0
  %1034 = vadd.xlane.f32.xlu0 %v1033
  %v1035 = vpop.xlane.xlu0 %1034
  %v1036 = vsel %vm191, %v1030, 0.0
  %1037 = vadd.xlane.f32.xlu0 %v1036
  %v1038 = vpop.xlane.xlu0 %1037
  %v1039 = vmul.f32 %v1035, %v198
  %v1040 = vmul.f32 %v1038, %v198
  %v1041 = vsub.f32 %v1029, %v1039
  %v1042 = vsub.f32 %v1030, %v1040
  %v1043 = vmul.f32 %v1041, %v1041
  %v1044 = vmul.f32 %v1042, %v1042
  %v1045 = vsel %vm191, %v1043, 0.0
  %1046 = vadd.xlane.f32.xlu0 %v1045
  %v1047 = vpop.xlane.xlu0 %1046
  %v1048 = vsel %vm191, %v1044, 0.0
  %1049 = vadd.xlane.f32.xlu0 %v1048
  %v1050 = vpop.xlane.xlu0 %1049
  %v1051 = vmul.f32 %v1047, %v198
  %v1052 = vmul.f32 %v1050, %v198
  %v1053 = vadd.f32 %v1051, 1e-12
  %v1054 = vadd.f32 %v1052, 1e-12
  %v1055 = vrsqrt.pop %v1053
  %v1056 = vrsqrt.pop %v1054
  %v1057 = vmul.f32 %v1041, %v1055
  %v1058 = vmul.f32 %v1042, %v1056
  %v1060 = vlaneseq
  %v1061 = vshrl.u32 %v1060, 7
  %v1062 = vsub.s32 0, %v1061
  %v1063 = vrot.slane %v1031, %v1062
  %v1065 = vmul.f32 %v1057, %v1063
  %v1066 = vmul.f32 %v1058, %v1063
  %v1068 = vlaneseq
  %v1069 = vshrl.u32 %v1068, 7
  %v1070 = vsub.s32 0, %v1069
  %v1071 = vrot.slane %v1032, %v1070
  %v1073 = vadd.f32 %v1065, %v1071
  %v1074 = vadd.f32 %v1066, %v1071
  %v1075 = vpack.c.bf16 %v1074, %v1073
  %v1076 = vld [vmem:[%s13] sm:$0xf]
  %v1077 = vld [vmem:[%s13 + $0x4] sm:$0xf]
  %v1078 = vld [vmem:[%s13 + $0x8] sm:$0xf]
  %v1079 = vld [vmem:[%s13 + $0xc] sm:$0xf]
  %v1080 = vld [vmem:[%s14] sm:$0x1]
  %v1082 = vlaneseq
  %v1083 = vshrl.u32 %v1082, 7
  %v1084 = vsub.s32 0, %v1083
  %v1085 = vrot.slane %v1080, %v1084
  %v1091 = vunpack.c.l.b16 %v1076
  %v1092 = vunpack.c.l.b16 %v1077
  %v1093 = vunpack.c.l.b16 %v1078
  %v1094 = vunpack.c.l.b16 %v1079
  %v1095 = vpack.c.b16 %v1092, %v1091
  %v1096 = vpack.c.b16 %v1094, %v1093
  %v1100 = vsel %vm191, %v1075, 0
  %1102 = vmatprep.subr.bf16.mxu0 0
  %1103 = vmatpush1.bf16.msra.mxu0 %v1095
  %1104 = vmatprep.subr.bf16.mxu0 0
  %1105 = vmatpush1.bf16.msra.mxu0 %v1096
  %1106 = vmatprep.subr.bf16.mxu0 0
  %1107 = vmatpush1.bf16.msra.mxu0 0
  %1108 = vmatprep.subr.bf16.mxu0 0
  %1109 = vmatpush1.bf16.msra.mxu0 0
  %1110 = vmatprep.subr.bf16.mxu0 0
  %1111 = vmatpush1.bf16.msra.mxu0 0
  %1112 = vmatprep.subr.bf16.mxu0 0
  %1113 = vmatpush1.bf16.msra.mxu0 0
  %1114 = vmatprep.subr.bf16.mxu0 0
  %1115 = vmatpush1.bf16.msra.mxu0 0
  %1116 = vmatprep.subr.bf16.mxu0 0
  %1117 = vmatpush1.bf16.msra.mxu0 0
  %1118 = vmatprep.subr.bf16.mxu0 0
  %1119 = vmatpush1.bf16.msra.mxu0 0
  %1120 = vmatprep.subr.bf16.mxu0 0
  %1121 = vmatpush1.bf16.msra.mxu0 0
  %1122 = vmatprep.subr.bf16.mxu0 0
  %1123 = vmatpush1.bf16.msra.mxu0 0
  %1124 = vmatprep.subr.bf16.mxu0 0
  %1125 = vmatpush1.bf16.msra.mxu0 0
  %1126 = vmatprep.subr.bf16.mxu0 0
  %1127 = vmatpush1.bf16.msra.mxu0 0
  %1128 = vmatprep.subr.bf16.mxu0 0
  %1129 = vmatpush1.bf16.msra.mxu0 0
  %1130 = vmatprep.subr.bf16.mxu0 0
  %1131 = vmatpush1.bf16.msra.mxu0 0
  %1132 = vmatprep.subr.bf16.mxu0 0
  %1133 = vmatpush1.bf16.msra.mxu0 0
  %1134 = vmatprep.mubr.bf16.mxu0 0
  %1135 = vmatmul.mubr.bf16.gmra.mrb[0].mxu0 %v1100
  %v1136 = vpop.f32.mrb[0].mxu0
  %v1137 = vadd.f32 %v1085, %v1136
  %v1138 = vpop.f32.mrb[0].mxu0
  %v1139 = vpop.f32.mrb[0].mxu0
  %v1140 = vadd.f32 %v1085, %v1139
  %v1141 = vpop.f32.mrb[0].mxu0
  %1142 = vdwg.mxu0
  %v1143 = vmul.f32 %v1137, 0.5
  %v1144 = vmul.f32 %v1140, 0.5
  %v1145 = vmul.f32 %v1137, 0.044715
  %v1146 = vmul.f32 %v1140, 0.044715
  %v1147 = vmul.f32 %v1145, %v1137
  %v1148 = vmul.f32 %v1146, %v1140
  %v1149 = vmul.f32 %v1147, %v1137
  %v1150 = vmul.f32 %v1148, %v1140
  %v1151 = vadd.f32 %v1137, %v1149
  %v1152 = vadd.f32 %v1140, %v1150
  %v1153 = vmul.f32 %v1151, 0.7978846
  %v1154 = vmul.f32 %v1152, 0.7978846
  %v1155 = vtanh.pop %v1153
  %v1156 = vtanh.pop %v1154
  %v1157 = vadd.f32 %v1155, 1.0
  %v1158 = vadd.f32 %v1156, 1.0
  %v1159 = vmul.f32 %v1143, %v1157
  %v1160 = vmul.f32 %v1144, %v1158
  %v1161 = vpack.c.bf16 %v1160, %v1159
  %v1162 = vld [vmem:[%s15] sm:$0xf]
  %v1163 = vld [vmem:[%s15 + $0x4] sm:$0xf]
  %v1164 = vld [vmem:[%s15 + $0x8] sm:$0xf]
  %v1165 = vld [vmem:[%s15 + $0xc] sm:$0xf]
  %v1166 = vld [vmem:[%s15 + $0x10] sm:$0xf]
  %v1167 = vld [vmem:[%s15 + $0x14] sm:$0xf]
  %v1168 = vld [vmem:[%s15 + $0x18] sm:$0xf]
  %v1169 = vld [vmem:[%s15 + $0x1c] sm:$0xf]
  %v1170 = vld [vmem:[%s16] sm:$0x1]
  %v1172 = vlaneseq
  %v1173 = vshrl.u32 %v1172, 7
  %v1174 = vsub.s32 0, %v1173
  %v1175 = vrot.slane %v1170, %v1174
  %v1185 = vunpack.c.l.b16 %v1162
  %v1186 = vunpack.c.l.b16 %v1163
  %v1187 = vunpack.c.l.b16 %v1164
  %v1188 = vunpack.c.l.b16 %v1165
  %v1189 = vunpack.c.l.b16 %v1166
  %v1190 = vunpack.c.l.b16 %v1167
  %v1191 = vunpack.c.l.b16 %v1168
  %v1192 = vunpack.c.l.b16 %v1169
  %v1193 = vpack.c.b16 %v1186, %v1185
  %v1194 = vpack.c.b16 %v1188, %v1187
  %v1195 = vpack.c.b16 %v1190, %v1189
  %v1196 = vpack.c.b16 %v1192, %v1191
  %v1202 = vsel %vm107, %v1161, 0
  %1204 = vmatprep.subr.bf16.mxu0 0
  %1205 = vmatpush1.bf16.msra.mxu0 %v1193
  %1206 = vmatprep.subr.bf16.mxu0 0
  %1207 = vmatpush1.bf16.msra.mxu0 %v1194
  %1208 = vmatprep.subr.bf16.mxu0 0
  %1209 = vmatpush1.bf16.msra.mxu0 %v1195
  %1210 = vmatprep.subr.bf16.mxu0 0
  %1211 = vmatpush1.bf16.msra.mxu0 %v1196
  %1212 = vmatprep.subr.bf16.mxu0 0
  %1213 = vmatpush1.bf16.msra.mxu0 0
  %1214 = vmatprep.subr.bf16.mxu0 0
  %1215 = vmatpush1.bf16.msra.mxu0 0
  %1216 = vmatprep.subr.bf16.mxu0 0
  %1217 = vmatpush1.bf16.msra.mxu0 0
  %1218 = vmatprep.subr.bf16.mxu0 0
  %1219 = vmatpush1.bf16.msra.mxu0 0
  %1220 = vmatprep.subr.bf16.mxu0 0
  %1221 = vmatpush1.bf16.msra.mxu0 0
  %1222 = vmatprep.subr.bf16.mxu0 0
  %1223 = vmatpush1.bf16.msra.mxu0 0
  %1224 = vmatprep.subr.bf16.mxu0 0
  %1225 = vmatpush1.bf16.msra.mxu0 0
  %1226 = vmatprep.subr.bf16.mxu0 0
  %1227 = vmatpush1.bf16.msra.mxu0 0
  %1228 = vmatprep.subr.bf16.mxu0 0
  %1229 = vmatpush1.bf16.msra.mxu0 0
  %1230 = vmatprep.subr.bf16.mxu0 0
  %1231 = vmatpush1.bf16.msra.mxu0 0
  %1232 = vmatprep.subr.bf16.mxu0 0
  %1233 = vmatpush1.bf16.msra.mxu0 0
  %1234 = vmatprep.subr.bf16.mxu0 0
  %1235 = vmatpush1.bf16.msra.mxu0 0
  %1236 = vmatprep.mubr.bf16.mxu0 0
  %1237 = vmatmul.mubr.bf16.gmra.mrb[0].mxu0 %v1202
  %v1238 = vpop.f32.mrb[0].mxu0
  %v1239 = vadd.f32 %v1175, %v1238
  %v1240 = vpop.f32.mrb[0].mxu0
  %v1241 = vpop.f32.mrb[0].mxu0
  %v1242 = vadd.f32 %v1175, %v1241
  %v1243 = vpop.f32.mrb[0].mxu0
  %1244 = vdwg.mxu0
  %v1245 = vadd.f32 %v1073, %v1239
  %v1246 = vadd.f32 %v1074, %v1242
  %v1247 = vld [vmem:[%s17] sm:$0x1]
  %v1248 = vld [vmem:[%s18] sm:$0x1]
  %v1249 = vsel %vm191, %v1245, 0.0
  %1250 = vadd.xlane.f32.xlu0 %v1249
  %v1251 = vpop.xlane.xlu0 %1250
  %v1252 = vsel %vm191, %v1246, 0.0
  %1253 = vadd.xlane.f32.xlu0 %v1252
  %v1254 = vpop.xlane.xlu0 %1253
  %v1255 = vmul.f32 %v1251, %v198
  %v1256 = vmul.f32 %v1254, %v198
  %v1257 = vsub.f32 %v1245, %v1255
  %v1258 = vsub.f32 %v1246, %v1256
  %v1259 = vmul.f32 %v1257, %v1257
  %v1260 = vmul.f32 %v1258, %v1258
  %v1261 = vsel %vm191, %v1259, 0.0
  %1262 = vadd.xlane.f32.xlu0 %v1261
  %v1263 = vpop.xlane.xlu0 %1262
  %v1264 = vsel %vm191, %v1260, 0.0
  %1265 = vadd.xlane.f32.xlu0 %v1264
  %v1266 = vpop.xlane.xlu0 %1265
  %v1267 = vmul.f32 %v1263, %v198
  %v1268 = vmul.f32 %v1266, %v198
  %v1269 = vadd.f32 %v1267, 1e-12
  %v1270 = vadd.f32 %v1268, 1e-12
  %v1271 = vrsqrt.pop %v1269
  %v1272 = vrsqrt.pop %v1270
  %v1273 = vmul.f32 %v1257, %v1271
  %v1274 = vmul.f32 %v1258, %v1272
  %v1276 = vlaneseq
  %v1277 = vshrl.u32 %v1276, 7
  %v1278 = vsub.s32 0, %v1277
  %v1279 = vrot.slane %v1247, %v1278
  %v1281 = vmul.f32 %v1273, %v1279
  %v1282 = vmul.f32 %v1274, %v1279
  %v1284 = vlaneseq
  %v1285 = vshrl.u32 %v1284, 7
  %v1286 = vsub.s32 0, %v1285
  %v1287 = vrot.slane %v1248, %v1286
  %v1289 = vadd.f32 %v1281, %v1287
  %v1290 = vadd.f32 %v1282, %v1287
  %v1291 = vpack.c.bf16 %v1290, %v1289
  %s1292 = scalar_lea.vmem %s7, 96
  %v1293 = vld [vmem:[%s1292] sm:$0xff]
  %v1294 = vld [vmem:[%s1292 + $0x8] sm:$0xff]
  %v1295 = vld [vmem:[%s1292 + $0x10] sm:$0xff]
  %v1296 = vld [vmem:[%s1292 + $0x18] sm:$0xff]
  %v1297 = vld [vmem:[%s1292 + $0x20] sm:$0xff]
  %v1298 = vld [vmem:[%s1292 + $0x28] sm:$0xff]
  %v1299 = vld [vmem:[%s1292 + $0x30] sm:$0xff]
  %v1300 = vld [vmem:[%s1292 + $0x38] sm:$0xff]
  %v1301 = vld [vmem:[%s1292 + $0x40] sm:$0xff]
  %v1302 = vld [vmem:[%s1292 + $0x48] sm:$0xff]
  %v1303 = vld [vmem:[%s1292 + $0x50] sm:$0xff]
  %v1304 = vld [vmem:[%s1292 + $0x58] sm:$0xff]
  %s1305 = scalar_lea.vmem %s8, 6
  %v1306 = vld [vmem:[%s1305] sm:$0x3f]
  %v1308 = vlaneseq
  %v1309 = vshrl.u32 %v1308, 7
  %v1310 = vsub.s32 0, %v1309
  %v1311 = vrot.slane %v1306, %v1310
  %v1312 = vlaneseq
  %v1313 = vshrl.u32 %v1312, 7
  %v1314 = vsub.s32 1, %v1313
  %v1315 = vrot.slane %v1306, %v1314
  %v1316 = vlaneseq
  %v1317 = vshrl.u32 %v1316, 7
  %v1318 = vsub.s32 2, %v1317
  %v1319 = vrot.slane %v1306, %v1318
  %v1320 = vlaneseq
  %v1321 = vshrl.u32 %v1320, 7
  %v1322 = vsub.s32 3, %v1321
  %v1323 = vrot.slane %v1306, %v1322
  %v1324 = vlaneseq
  %v1325 = vshrl.u32 %v1324, 7
  %v1326 = vsub.s32 4, %v1325
  %v1327 = vrot.slane %v1306, %v1326
  %v1328 = vlaneseq
  %v1329 = vshrl.u32 %v1328, 7
  %v1330 = vsub.s32 5, %v1329
  %v1331 = vrot.slane %v1306, %v1330
  %v1350 = vunpack.c.l.b16 %v1293
  %v1351 = vunpack.c.h.b16 %v1293
  %v1352 = vunpack.c.l.b16 %v1294
  %v1353 = vunpack.c.h.b16 %v1294
  %v1354 = vunpack.c.l.b16 %v1295
  %v1355 = vunpack.c.h.b16 %v1295
  %v1356 = vunpack.c.l.b16 %v1296
  %v1357 = vunpack.c.h.b16 %v1296
  %v1358 = vunpack.c.l.b16 %v1297
  %v1359 = vunpack.c.h.b16 %v1297
  %v1360 = vunpack.c.l.b16 %v1298
  %v1361 = vunpack.c.h.b16 %v1298
  %v1362 = vunpack.c.l.b16 %v1299
  %v1363 = vunpack.c.h.b16 %v1299
  %v1364 = vunpack.c.l.b16 %v1300
  %v1365 = vunpack.c.h.b16 %v1300
  %v1366 = vunpack.c.l.b16 %v1301
  %v1367 = vunpack.c.h.b16 %v1301
  %v1368 = vunpack.c.l.b16 %v1302
  %v1369 = vunpack.c.h.b16 %v1302
  %v1370 = vunpack.c.l.b16 %v1303
  %v1371 = vunpack.c.h.b16 %v1303
  %v1372 = vunpack.c.l.b16 %v1304
  %v1373 = vunpack.c.h.b16 %v1304
  %v1374 = vpack.c.b16 %v1356, %v1350
  %v1375 = vpack.c.b16 %v1357, %v1351
  %v1376 = vpack.c.b16 %v1358, %v1352
  %v1377 = vpack.c.b16 %v1359, %v1353
  %v1378 = vpack.c.b16 %v1360, %v1354
  %v1379 = vpack.c.b16 %v1361, %v1355
  %v1380 = vpack.c.b16 %v1368, %v1362
  %v1381 = vpack.c.b16 %v1369, %v1363
  %v1382 = vpack.c.b16 %v1370, %v1364
  %v1383 = vpack.c.b16 %v1371, %v1365
  %v1384 = vpack.c.b16 %v1372, %v1366
  %v1385 = vpack.c.b16 %v1373, %v1367
  %v1399 = vsel %vm191, %v1291, 0
  %1401 = vmatprep.subr.bf16.mxu0 %v1375
  %1402 = vmatpush1.bf16.msra.mxu0 %v1374
  %1403 = vmatprep.subr.bf16.mxu0 %v1381
  %1404 = vmatpush1.bf16.msra.mxu0 %v1380
  %1405 = vmatprep.subr.bf16.mxu0 0
  %1406 = vmatpush1.bf16.msra.mxu0 0
  %1407 = vmatprep.subr.bf16.mxu0 0
  %1408 = vmatpush1.bf16.msra.mxu0 0
  %1409 = vmatprep.subr.bf16.mxu0 0
  %1410 = vmatpush1.bf16.msra.mxu0 0
  %1411 = vmatprep.subr.bf16.mxu0 0
  %1412 = vmatpush1.bf16.msra.mxu0 0
  %1413 = vmatprep.subr.bf16.mxu0 0
  %1414 = vmatpush1.bf16.msra.mxu0 0
  %1415 = vmatprep.subr.bf16.mxu0 0
  %1416 = vmatpush1.bf16.msra.mxu0 0
  %1417 = vmatprep.subr.bf16.mxu0 0
  %1418 = vmatpush1.bf16.msra.mxu0 0
  %1419 = vmatprep.subr.bf16.mxu0 0
  %1420 = vmatpush1.bf16.msra.mxu0 0
  %1421 = vmatprep.subr.bf16.mxu0 0
  %1422 = vmatpush1.bf16.msra.mxu0 0
  %1423 = vmatprep.subr.bf16.mxu0 0
  %1424 = vmatpush1.bf16.msra.mxu0 0
  %1425 = vmatprep.subr.bf16.mxu0 0
  %1426 = vmatpush1.bf16.msra.mxu0 0
  %1427 = vmatprep.subr.bf16.mxu0 0
  %1428 = vmatpush1.bf16.msra.mxu0 0
  %1429 = vmatprep.subr.bf16.mxu0 0
  %1430 = vmatpush1.bf16.msra.mxu0 0
  %1431 = vmatprep.subr.bf16.mxu0 0
  %1432 = vmatpush1.bf16.msra.mxu0 0
  %1433 = vmatprep.mubr.bf16.mxu0 0
  %1434 = vmatmul.mubr.bf16.gmra.mrb[0].mxu0 %v1399
  %v1435 = vpop.f32.mrb[0].mxu0
  %v1436 = vadd.f32 %v1311, %v1435
  %v1437 = vpop.f32.mrb[0].mxu0
  %v1438 = vadd.f32 %v1315, %v1437
  %v1439 = vpop.f32.mrb[0].mxu0
  %v1440 = vadd.f32 %v1311, %v1439
  %v1441 = vpop.f32.mrb[0].mxu0
  %v1442 = vadd.f32 %v1315, %v1441
  %1443 = vdwg.mxu0
  %1444 = vmatprep.subr.bf16.mxu0 %v1377
  %1445 = vmatpush1.bf16.msra.mxu0 %v1376
  %1446 = vmatprep.subr.bf16.mxu0 %v1383
  %1447 = vmatpush1.bf16.msra.mxu0 %v1382
  %1448 = vmatprep.subr.bf16.mxu0 0
  %1449 = vmatpush1.bf16.msra.mxu0 0
  %1450 = vmatprep.subr.bf16.mxu0 0
  %1451 = vmatpush1.bf16.msra.mxu0 0
  %1452 = vmatprep.subr.bf16.mxu0 0
  %1453 = vmatpush1.bf16.msra.mxu0 0
  %1454 = vmatprep.subr.bf16.mxu0 0
  %1455 = vmatpush1.bf16.msra.mxu0 0
  %1456 = vmatprep.subr.bf16.mxu0 0
  %1457 = vmatpush1.bf16.msra.mxu0 0
  %1458 = vmatprep.subr.bf16.mxu0 0
  %1459 = vmatpush1.bf16.msra.mxu0 0
  %1460 = vmatprep.subr.bf16.mxu0 0
  %1461 = vmatpush1.bf16.msra.mxu0 0
  %1462 = vmatprep.subr.bf16.mxu0 0
  %1463 = vmatpush1.bf16.msra.mxu0 0
  %1464 = vmatprep.subr.bf16.mxu0 0
  %1465 = vmatpush1.bf16.msra.mxu0 0
  %1466 = vmatprep.subr.bf16.mxu0 0
  %1467 = vmatpush1.bf16.msra.mxu0 0
  %1468 = vmatprep.subr.bf16.mxu0 0
  %1469 = vmatpush1.bf16.msra.mxu0 0
  %1470 = vmatprep.subr.bf16.mxu0 0
  %1471 = vmatpush1.bf16.msra.mxu0 0
  %1472 = vmatprep.subr.bf16.mxu0 0
  %1473 = vmatpush1.bf16.msra.mxu0 0
  %1474 = vmatprep.subr.bf16.mxu0 0
  %1475 = vmatpush1.bf16.msra.mxu0 0
  %1476 = vmatprep.mubr.bf16.mxu0 0
  %1477 = vmatmul.mubr.bf16.gmra.mrb[0].mxu0 %v1399
  %v1478 = vpop.f32.mrb[0].mxu0
  %v1479 = vadd.f32 %v1319, %v1478
  %v1480 = vpop.f32.mrb[0].mxu0
  %v1481 = vadd.f32 %v1323, %v1480
  %v1482 = vpop.f32.mrb[0].mxu0
  %v1483 = vadd.f32 %v1319, %v1482
  %v1484 = vpop.f32.mrb[0].mxu0
  %v1485 = vadd.f32 %v1323, %v1484
  %1486 = vdwg.mxu0
  %1487 = vmatprep.subr.bf16.mxu0 %v1379
  %1488 = vmatpush1.bf16.msra.mxu0 %v1378
  %1489 = vmatprep.subr.bf16.mxu0 %v1385
  %1490 = vmatpush1.bf16.msra.mxu0 %v1384
  %1491 = vmatprep.subr.bf16.mxu0 0
  %1492 = vmatpush1.bf16.msra.mxu0 0
  %1493 = vmatprep.subr.bf16.mxu0 0
  %1494 = vmatpush1.bf16.msra.mxu0 0
  %1495 = vmatprep.subr.bf16.mxu0 0
  %1496 = vmatpush1.bf16.msra.mxu0 0
  %1497 = vmatprep.subr.bf16.mxu0 0
  %1498 = vmatpush1.bf16.msra.mxu0 0
  %1499 = vmatprep.subr.bf16.mxu0 0
  %1500 = vmatpush1.bf16.msra.mxu0 0
  %1501 = vmatprep.subr.bf16.mxu0 0
  %1502 = vmatpush1.bf16.msra.mxu0 0
  %1503 = vmatprep.subr.bf16.mxu0 0
  %1504 = vmatpush1.bf16.msra.mxu0 0
  %1505 = vmatprep.subr.bf16.mxu0 0
  %1506 = vmatpush1.bf16.msra.mxu0 0
  %1507 = vmatprep.subr.bf16.mxu0 0
  %1508 = vmatpush1.bf16.msra.mxu0 0
  %1509 = vmatprep.subr.bf16.mxu0 0
  %1510 = vmatpush1.bf16.msra.mxu0 0
  %1511 = vmatprep.subr.bf16.mxu0 0
  %1512 = vmatpush1.bf16.msra.mxu0 0
  %1513 = vmatprep.subr.bf16.mxu0 0
  %1514 = vmatpush1.bf16.msra.mxu0 0
  %1515 = vmatprep.subr.bf16.mxu0 0
  %1516 = vmatpush1.bf16.msra.mxu0 0
  %1517 = vmatprep.subr.bf16.mxu0 0
  %1518 = vmatpush1.bf16.msra.mxu0 0
  %1519 = vmatprep.mubr.bf16.mxu0 0
  %1520 = vmatmul.mubr.bf16.gmra.mrb[0].mxu0 %v1399
  %v1521 = vpop.f32.mrb[0].mxu0
  %v1522 = vadd.f32 %v1327, %v1521
  %v1523 = vpop.f32.mrb[0].mxu0
  %v1524 = vadd.f32 %v1331, %v1523
  %v1525 = vpop.f32.mrb[0].mxu0
  %v1526 = vadd.f32 %v1327, %v1525
  %v1527 = vpop.f32.mrb[0].mxu0
  %v1528 = vadd.f32 %v1331, %v1527
  %1529 = vdwg.mxu0
  %1530 = vmatprep.subr.mxu0 0.0
  %1531 = vmatpush1.xpose.msra.mxu0 %v1438
  %1532 = vmatprep.subr.mxu0 0.0
  %1533 = vmatpush1.xpose.msra.mxu0 %v1442
  %1534 = vmatprep.subr.mxu0 0.0
  %1535 = vmatpush1.xpose.msra.mxu0 0.0
  %1536 = vmatprep.subr.mxu0 0.0
  %1537 = vmatpush1.xpose.msra.mxu0 0.0
  %1538 = vmatprep.subr.mxu0 0.0
  %1539 = vmatpush1.xpose.msra.mxu0 0.0
  %1540 = vmatprep.subr.mxu0 0.0
  %1541 = vmatpush1.xpose.msra.mxu0 0.0
  %1542 = vmatprep.subr.mxu0 0.0
  %1543 = vmatpush1.xpose.msra.mxu0 0.0
  %1544 = vmatprep.subr.mxu0 0.0
  %1545 = vmatpush1.xpose.msra.mxu0 0.0
  %1546 = vmatprep.subr.mxu0 0.0
  %1547 = vmatpush1.xpose.msra.mxu0 0.0
  %1548 = vmatprep.subr.mxu0 0.0
  %1549 = vmatpush1.xpose.msra.mxu0 0.0
  %1550 = vmatprep.subr.mxu0 0.0
  %1551 = vmatpush1.xpose.msra.mxu0 0.0
  %1552 = vmatprep.subr.mxu0 0.0
  %1553 = vmatpush1.xpose.msra.mxu0 0.0
  %1554 = vmatprep.subr.mxu0 0.0
  %1555 = vmatpush1.xpose.msra.mxu0 0.0
  %1556 = vmatprep.subr.mxu0 0.0
  %1557 = vmatpush1.xpose.msra.mxu0 0.0
  %1558 = vmatprep.subr.mxu0 0.0
  %1559 = vmatpush1.xpose.msra.mxu0 0.0
  %1560 = vmatprep.subr.mxu0 0.0
  %1561 = vmatpush1.xpose.msra.mxu0 0.0
  %1562 = vmatprep.subr.mxu0 0.0
  %1563 = vmatpush1.xpose.msra.mxu0 0.0
  %1564 = vmatprep.subr.mxu0 0.0
  %1565 = vmatpush1.xpose.msra.mxu0 0.0
  %1566 = vmatprep.subr.mxu0 0.0
  %1567 = vmatpush1.xpose.msra.mxu0 0.0
  %1568 = vmatprep.subr.mxu0 0.0
  %1569 = vmatpush1.xpose.msra.mxu0 0.0
  %1570 = vmatprep.subr.mxu0 0.0
  %1571 = vmatpush1.xpose.msra.mxu0 0.0
  %1572 = vmatprep.subr.mxu0 0.0
  %1573 = vmatpush1.xpose.msra.mxu0 0.0
  %1574 = vmatprep.subr.mxu0 0.0
  %1575 = vmatpush1.xpose.msra.mxu0 0.0
  %1576 = vmatprep.subr.mxu0 0.0
  %1577 = vmatpush1.xpose.msra.mxu0 0.0
  %1578 = vmatprep.subr.mxu0 0.0
  %1579 = vmatpush1.xpose.msra.mxu0 0.0
  %1580 = vmatprep.subr.mxu0 0.0
  %1581 = vmatpush1.xpose.msra.mxu0 0.0
  %1582 = vmatprep.subr.mxu0 0.0
  %1583 = vmatpush1.xpose.msra.mxu0 0.0
  %1584 = vmatprep.subr.mxu0 0.0
  %1585 = vmatpush1.xpose.msra.mxu0 0.0
  %1586 = vmatprep.subr.mxu0 0.0
  %1587 = vmatpush1.xpose.msra.mxu0 0.0
  %1588 = vmatprep.subr.mxu0 0.0
  %1589 = vmatpush1.xpose.msra.mxu0 0.0
  %1590 = vmatprep.subr.mxu0 0.0
  %1591 = vmatpush1.xpose.msra.mxu0 0.0
  %1592 = vmatprep.subr.mxu0 0.0
  %1593 = vmatpush1.xpose.msra.mxu0 0.0
  %1594 = vmatprep.mubr.f32.mxu0 0.0
  %1595 = vmatmul.mubr.f32.gmra.mrb[0].mxu0 %v1436
  %v1596 = vpop.f32.mrb[0].mxu0
  %v1597 = vadd.f32 0.0, %v1596
  %v1598 = vpop.f32.mrb[0].mxu0
  %1599 = vmatprep.mubr.f32.mxu0 0.0
  %1600 = vmatmul.mubr.f32.gmra.mrb[0].mxu0 %v1440
  %v1601 = vpop.f32.mrb[0].mxu0
  %v1602 = vadd.f32 0.0, %v1601
  %v1603 = vpop.f32.mrb[0].mxu0
  %1604 = vdwg.mxu0
  %v1605 = vmul.f32 %v1597, 0.25
  %v1606 = vmul.f32 %v1602, 0.25
  %v1607 = vadd.f32 %v1605, %v247
  %v1608 = vadd.f32 %v1606, %v248
  %v1609 = vsel %vm565, %v1607, -inf
  %1610 = vmax.xlane.f32.xlu0 %v1609
  %v1611 = vpop.xlane.xlu0 %1610
  %v1612 = vsel %vm565, %v1608, -inf
  %1613 = vmax.xlane.f32.xlu0 %v1612
  %v1614 = vpop.xlane.xlu0 %1613
  %v1615 = vsub.f32 %v1607, %v1611
  %v1616 = vsub.f32 %v1608, %v1614
  %v1617 = vmul.f32 %v1615, 1.442695
  %v1618 = vpow.pop %v1617
  %v1619 = vmul.f32 %v1616, 1.442695
  %v1620 = vpow.pop %v1619
  %v1621 = vsel %vm565, %v1618, 0.0
  %1622 = vadd.xlane.f32.xlu0 %v1621
  %v1623 = vpop.xlane.xlu0 %1622
  %v1624 = vsel %vm565, %v1620, 0.0
  %1625 = vadd.xlane.f32.xlu0 %v1624
  %v1626 = vpop.xlane.xlu0 %1625
  %v1627 = vrcp.pop %v1623
  %v1628 = vmul.f32 %v1618, %v1627
  %v1629 = vrcp.pop %v1626
  %v1630 = vmul.f32 %v1620, %v1629
  %v1632 = vsel %vm565, %v1628, 0
  %v1635 = vsel %vm565, %v1630, 0
  %1637 = vmatprep.subr.mxu0 0.0
  %1638 = vmatpush1.msra.mxu0 %v1479
  %1639 = vmatprep.subr.mxu0 0.0
  %1640 = vmatpush1.msra.mxu0 %v1483
  %1641 = vmatprep.subr.mxu0 0.0
  %1642 = vmatpush1.msra.mxu0 0.0
  %1643 = vmatprep.subr.mxu0 0.0
  %1644 = vmatpush1.msra.mxu0 0.0
  %1645 = vmatprep.subr.mxu0 0.0
  %1646 = vmatpush1.msra.mxu0 0.0
  %1647 = vmatprep.subr.mxu0 0.0
  %1648 = vmatpush1.msra.mxu0 0.0
  %1649 = vmatprep.subr.mxu0 0.0
  %1650 = vmatpush1.msra.mxu0 0.0
  %1651 = vmatprep.subr.mxu0 0.0
  %1652 = vmatpush1.msra.mxu0 0.0
  %1653 = vmatprep.subr.mxu0 0.0
  %1654 = vmatpush1.msra.mxu0 0.0
  %1655 = vmatprep.subr.mxu0 0.0
  %1656 = vmatpush1.msra.mxu0 0.0
  %1657 = vmatprep.subr.mxu0 0.0
  %1658 = vmatpush1.msra.mxu0 0.0
  %1659 = vmatprep.subr.mxu0 0.0
  %1660 = vmatpush1.msra.mxu0 0.0
  %1661 = vmatprep.subr.mxu0 0.0
  %1662 = vmatpush1.msra.mxu0 0.0
  %1663 = vmatprep.subr.mxu0 0.0
  %1664 = vmatpush1.msra.mxu0 0.0
  %1665 = vmatprep.subr.mxu0 0.0
  %1666 = vmatpush1.msra.mxu0 0.0
  %1667 = vmatprep.subr.mxu0 0.0
  %1668 = vmatpush1.msra.mxu0 0.0
  %1669 = vmatprep.subr.mxu0 0.0
  %1670 = vmatpush1.msra.mxu0 0.0
  %1671 = vmatprep.subr.mxu0 0.0
  %1672 = vmatpush1.msra.mxu0 0.0
  %1673 = vmatprep.subr.mxu0 0.0
  %1674 = vmatpush1.msra.mxu0 0.0
  %1675 = vmatprep.subr.mxu0 0.0
  %1676 = vmatpush1.msra.mxu0 0.0
  %1677 = vmatprep.subr.mxu0 0.0
  %1678 = vmatpush1.msra.mxu0 0.0
  %1679 = vmatprep.subr.mxu0 0.0
  %1680 = vmatpush1.msra.mxu0 0.0
  %1681 = vmatprep.subr.mxu0 0.0
  %1682 = vmatpush1.msra.mxu0 0.0
  %1683 = vmatprep.subr.mxu0 0.0
  %1684 = vmatpush1.msra.mxu0 0.0
  %1685 = vmatprep.subr.mxu0 0.0
  %1686 = vmatpush1.msra.mxu0 0.0
  %1687 = vmatprep.subr.mxu0 0.0
  %1688 = vmatpush1.msra.mxu0 0.0
  %1689 = vmatprep.subr.mxu0 0.0
  %1690 = vmatpush1.msra.mxu0 0.0
  %1691 = vmatprep.subr.mxu0 0.0
  %1692 = vmatpush1.msra.mxu0 0.0
  %1693 = vmatprep.subr.mxu0 0.0
  %1694 = vmatpush1.msra.mxu0 0.0
  %1695 = vmatprep.subr.mxu0 0.0
  %1696 = vmatpush1.msra.mxu0 0.0
  %1697 = vmatprep.subr.mxu0 0.0
  %1698 = vmatpush1.msra.mxu0 0.0
  %1699 = vmatprep.subr.mxu0 0.0
  %1700 = vmatpush1.msra.mxu0 0.0
  %1701 = vmatprep.mubr.f32.mxu0 0.0
  %1702 = vmatmul.mubr.f32.gmra.mrb[0].mxu0 %v1632
  %v1703 = vpop.f32.mrb[0].mxu0
  %v1704 = vadd.f32 0.0, %v1703
  %v1705 = vpop.f32.mrb[0].mxu0
  %1706 = vmatprep.mubr.f32.mxu0 0.0
  %1707 = vmatmul.mubr.f32.gmra.mrb[0].mxu0 %v1635
  %v1708 = vpop.f32.mrb[0].mxu0
  %v1709 = vadd.f32 0.0, %v1708
  %v1710 = vpop.f32.mrb[0].mxu0
  %1711 = vdwg.mxu0
  %1712 = vmatprep.subr.mxu0 0.0
  %1713 = vmatpush1.xpose.msra.mxu0 %v1522
  %1714 = vmatprep.subr.mxu0 0.0
  %1715 = vmatpush1.xpose.msra.mxu0 %v1526
  %1716 = vmatprep.subr.mxu0 0.0
  %1717 = vmatpush1.xpose.msra.mxu0 0.0
  %1718 = vmatprep.subr.mxu0 0.0
  %1719 = vmatpush1.xpose.msra.mxu0 0.0
  %1720 = vmatprep.subr.mxu0 0.0
  %1721 = vmatpush1.xpose.msra.mxu0 0.0
  %1722 = vmatprep.subr.mxu0 0.0
  %1723 = vmatpush1.xpose.msra.mxu0 0.0
  %1724 = vmatprep.subr.mxu0 0.0
  %1725 = vmatpush1.xpose.msra.mxu0 0.0
  %1726 = vmatprep.subr.mxu0 0.0
  %1727 = vmatpush1.xpose.msra.mxu0 0.0
  %1728 = vmatprep.subr.mxu0 0.0
  %1729 = vmatpush1.xpose.msra.mxu0 0.0
  %1730 = vmatprep.subr.mxu0 0.0
  %1731 = vmatpush1.xpose.msra.mxu0 0.0
  %1732 = vmatprep.subr.mxu0 0.0
  %1733 = vmatpush1.xpose.msra.mxu0 0.0
  %1734 = vmatprep.subr.mxu0 0.0
  %1735 = vmatpush1.xpose.msra.mxu0 0.0
  %1736 = vmatprep.subr.mxu0 0.0
  %1737 = vmatpush1.xpose.msra.mxu0 0.0
  %1738 = vmatprep.subr.mxu0 0.0
  %1739 = vmatpush1.xpose.msra.mxu0 0.0
  %1740 = vmatprep.subr.mxu0 0.0
  %1741 = vmatpush1.xpose.msra.mxu0 0.0
  %1742 = vmatprep.subr.mxu0 0.0
  %1743 = vmatpush1.xpose.msra.mxu0 0.0
  %1744 = vmatprep.subr.mxu0 0.0
  %1745 = vmatpush1.xpose.msra.mxu0 0.0
  %1746 = vmatprep.subr.mxu0 0.0
  %1747 = vmatpush1.xpose.msra.mxu0 0.0
  %1748 = vmatprep.subr.mxu0 0.0
  %1749 = vmatpush1.xpose.msra.mxu0 0.0
  %1750 = vmatprep.subr.mxu0 0.0
  %1751 = vmatpush1.xpose.msra.mxu0 0.0
  %1752 = vmatprep.subr.mxu0 0.0
  %1753 = vmatpush1.xpose.msra.mxu0 0.0
  %1754 = vmatprep.subr.mxu0 0.0
  %1755 = vmatpush1.xpose.msra.mxu0 0.0
  %1756 = vmatprep.subr.mxu0 0.0
  %1757 = vmatpush1.xpose.msra.mxu0 0.0
  %1758 = vmatprep.subr.mxu0 0.0
  %1759 = vmatpush1.xpose.msra.mxu0 0.0
  %1760 = vmatprep.subr.mxu0 0.0
  %1761 = vmatpush1.xpose.msra.mxu0 0.0
  %1762 = vmatprep.subr.mxu0 0.0
  %1763 = vmatpush1.xpose.msra.mxu0 0.0
  %1764 = vmatprep.subr.mxu0 0.0
  %1765 = vmatpush1.xpose.msra.mxu0 0.0
  %1766 = vmatprep.subr.mxu0 0.0
  %1767 = vmatpush1.xpose.msra.mxu0 0.0
  %1768 = vmatprep.subr.mxu0 0.0
  %1769 = vmatpush1.xpose.msra.mxu0 0.0
  %1770 = vmatprep.subr.mxu0 0.0
  %1771 = vmatpush1.xpose.msra.mxu0 0.0
  %1772 = vmatprep.subr.mxu0 0.0
  %1773 = vmatpush1.xpose.msra.mxu0 0.0
  %1774 = vmatprep.subr.mxu0 0.0
  %1775 = vmatpush1.xpose.msra.mxu0 0.0
  %1776 = vmatprep.mubr.f32.mxu0 0.0
  %1777 = vmatmul.mubr.f32.gmra.mrb[0].mxu0 %v1481
  %v1778 = vpop.f32.mrb[0].mxu0
  %v1779 = vadd.f32 0.0, %v1778
  %v1780 = vpop.f32.mrb[0].mxu0
  %1781 = vmatprep.mubr.f32.mxu0 0.0
  %1782 = vmatmul.mubr.f32.gmra.mrb[0].mxu0 %v1485
  %v1783 = vpop.f32.mrb[0].mxu0
  %v1784 = vadd.f32 0.0, %v1783
  %v1785 = vpop.f32.mrb[0].mxu0
  %1786 = vdwg.mxu0
  %v1787 = vmul.f32 %v1779, 0.25
  %v1788 = vmul.f32 %v1784, 0.25
  %v1789 = vadd.f32 %v1787, %v247
  %v1790 = vadd.f32 %v1788, %v248
  %v1791 = vsel %vm565, %v1789, -inf
  %1792 = vmax.xlane.f32.xlu0 %v1791
  %v1793 = vpop.xlane.xlu0 %1792
  %v1794 = vsel %vm565, %v1790, -inf
  %1795 = vmax.xlane.f32.xlu0 %v1794
  %v1796 = vpop.xlane.xlu0 %1795
  %v1797 = vsub.f32 %v1789, %v1793
  %v1798 = vsub.f32 %v1790, %v1796
  %v1799 = vmul.f32 %v1797, 1.442695
  %v1800 = vpow.pop %v1799
  %v1801 = vmul.f32 %v1798, 1.442695
  %v1802 = vpow.pop %v1801
  %v1803 = vsel %vm565, %v1800, 0.0
  %1804 = vadd.xlane.f32.xlu0 %v1803
  %v1805 = vpop.xlane.xlu0 %1804
  %v1806 = vsel %vm565, %v1802, 0.0
  %1807 = vadd.xlane.f32.xlu0 %v1806
  %v1808 = vpop.xlane.xlu0 %1807
  %v1809 = vrcp.pop %v1805
  %v1810 = vmul.f32 %v1800, %v1809
  %v1811 = vrcp.pop %v1808
  %v1812 = vmul.f32 %v1802, %v1811
  %v1814 = vsel %vm565, %v1810, 0
  %v1817 = vsel %vm565, %v1812, 0
  %1819 = vmatprep.subr.mxu0 0.0
  %1820 = vmatpush1.msra.mxu0 %v1524
  %1821 = vmatprep.subr.mxu0 0.0
  %1822 = vmatpush1.msra.mxu0 %v1528
  %1823 = vmatprep.subr.mxu0 0.0
  %1824 = vmatpush1.msra.mxu0 0.0
  %1825 = vmatprep.subr.mxu0 0.0
  %1826 = vmatpush1.msra.mxu0 0.0
  %1827 = vmatprep.subr.mxu0 0.0
  %1828 = vmatpush1.msra.mxu0 0.0
  %1829 = vmatprep.subr.mxu0 0.0
  %1830 = vmatpush1.msra.mxu0 0.0
  %1831 = vmatprep.subr.mxu0 0.0
  %1832 = vmatpush1.msra.mxu0 0.0
  %1833 = vmatprep.subr.mxu0 0.0
  %1834 = vmatpush1.msra.mxu0 0.0
  %1835 = vmatprep.subr.mxu0 0.0
  %1836 = vmatpush1.msra.mxu0 0.0
  %1837 = vmatprep.subr.mxu0 0.0
  %1838 = vmatpush1.msra.mxu0 0.0
  %1839 = vmatprep.subr.mxu0 0.0
  %1840 = vmatpush1.msra.mxu0 0.0
  %1841 = vmatprep.subr.mxu0 0.0
  %1842 = vmatpush1.msra.mxu0 0.0
  %1843 = vmatprep.subr.mxu0 0.0
  %1844 = vmatpush1.msra.mxu0 0.0
  %1845 = vmatprep.subr.mxu0 0.0
  %1846 = vmatpush1.msra.mxu0 0.0
  %1847 = vmatprep.subr.mxu0 0.0
  %1848 = vmatpush1.msra.mxu0 0.0
  %1849 = vmatprep.subr.mxu0 0.0
  %1850 = vmatpush1.msra.mxu0 0.0
  %1851 = vmatprep.subr.mxu0 0.0
  %1852 = vmatpush1.msra.mxu0 0.0
  %1853 = vmatprep.subr.mxu0 0.0
  %1854 = vmatpush1.msra.mxu0 0.0
  %1855 = vmatprep.subr.mxu0 0.0
  %1856 = vmatpush1.msra.mxu0 0.0
  %1857 = vmatprep.subr.mxu0 0.0
  %1858 = vmatpush1.msra.mxu0 0.0
  %1859 = vmatprep.subr.mxu0 0.0
  %1860 = vmatpush1.msra.mxu0 0.0
  %1861 = vmatprep.subr.mxu0 0.0
  %1862 = vmatpush1.msra.mxu0 0.0
  %1863 = vmatprep.subr.mxu0 0.0
  %1864 = vmatpush1.msra.mxu0 0.0
  %1865 = vmatprep.subr.mxu0 0.0
  %1866 = vmatpush1.msra.mxu0 0.0
  %1867 = vmatprep.subr.mxu0 0.0
  %1868 = vmatpush1.msra.mxu0 0.0
  %1869 = vmatprep.subr.mxu0 0.0
  %1870 = vmatpush1.msra.mxu0 0.0
  %1871 = vmatprep.subr.mxu0 0.0
  %1872 = vmatpush1.msra.mxu0 0.0
  %1873 = vmatprep.subr.mxu0 0.0
  %1874 = vmatpush1.msra.mxu0 0.0
  %1875 = vmatprep.subr.mxu0 0.0
  %1876 = vmatpush1.msra.mxu0 0.0
  %1877 = vmatprep.subr.mxu0 0.0
  %1878 = vmatpush1.msra.mxu0 0.0
  %1879 = vmatprep.subr.mxu0 0.0
  %1880 = vmatpush1.msra.mxu0 0.0
  %1881 = vmatprep.subr.mxu0 0.0
  %1882 = vmatpush1.msra.mxu0 0.0
  %1883 = vmatprep.mubr.f32.mxu0 0.0
  %1884 = vmatmul.mubr.f32.gmra.mrb[0].mxu0 %v1814
  %v1885 = vpop.f32.mrb[0].mxu0
  %v1886 = vadd.f32 0.0, %v1885
  %v1887 = vpop.f32.mrb[0].mxu0
  %1888 = vmatprep.mubr.f32.mxu0 0.0
  %1889 = vmatmul.mubr.f32.gmra.mrb[0].mxu0 %v1817
  %v1890 = vpop.f32.mrb[0].mxu0
  %v1891 = vadd.f32 0.0, %v1890
  %v1892 = vpop.f32.mrb[0].mxu0
  %1893 = vdwg.mxu0
  %v1894 = vpack.c.bf16 %v1709, %v1704
  %v1895 = vpack.c.bf16 %v1891, %v1886
  %s1896 = scalar_lea.vmem %s9, 128
  %v1897 = vld [vmem:[%s1896] sm:$0xf]
  %v1898 = vld [vmem:[%s1896 + $0x4] sm:$0xf]
  %v1899 = vld [vmem:[%s1896 + $0x8] sm:$0xf]
  %v1900 = vld [vmem:[%s1896 + $0xc] sm:$0xf]
  %v1901 = vld [vmem:[%s1896 + $0x10] sm:$0xf]
  %v1902 = vld [vmem:[%s1896 + $0x14] sm:$0xf]
  %v1903 = vld [vmem:[%s1896 + $0x18] sm:$0xf]
  %v1904 = vld [vmem:[%s1896 + $0x1c] sm:$0xf]
  %v1905 = vld [vmem:[%s1896 + $0x20] sm:$0xf]
  %v1906 = vld [vmem:[%s1896 + $0x24] sm:$0xf]
  %v1907 = vld [vmem:[%s1896 + $0x28] sm:$0xf]
  %v1908 = vld [vmem:[%s1896 + $0x2c] sm:$0xf]
  %v1909 = vld [vmem:[%s1896 + $0x30] sm:$0xf]
  %v1910 = vld [vmem:[%s1896 + $0x34] sm:$0xf]
  %v1911 = vld [vmem:[%s1896 + $0x38] sm:$0xf]
  %v1912 = vld [vmem:[%s1896 + $0x3c] sm:$0xf]
  %v1913 = vld [vmem:[%s1896 + $0x40] sm:$0xf]
  %v1914 = vld [vmem:[%s1896 + $0x44] sm:$0xf]
  %v1915 = vld [vmem:[%s1896 + $0x48] sm:$0xf]
  %v1916 = vld [vmem:[%s1896 + $0x4c] sm:$0xf]
  %v1917 = vld [vmem:[%s1896 + $0x50] sm:$0xf]
  %v1918 = vld [vmem:[%s1896 + $0x54] sm:$0xf]
  %v1919 = vld [vmem:[%s1896 + $0x58] sm:$0xf]
  %v1920 = vld [vmem:[%s1896 + $0x5c] sm:$0xf]
  %v1921 = vld [vmem:[%s1896 + $0x60] sm:$0xf]
  %v1922 = vld [vmem:[%s1896 + $0x64] sm:$0xf]
  %v1923 = vld [vmem:[%s1896 + $0x68] sm:$0xf]
  %v1924 = vld [vmem:[%s1896 + $0x6c] sm:$0xf]
  %v1925 = vld [vmem:[%s1896 + $0x70] sm:$0xf]
  %v1926 = vld [vmem:[%s1896 + $0x74] sm:$0xf]
  %v1927 = vld [vmem:[%s1896 + $0x78] sm:$0xf]
  %v1928 = vld [vmem:[%s1896 + $0x7c] sm:$0xf]
  %s1929 = scalar_lea.vmem %s10, 1
  %v1930 = vld [vmem:[%s1929] sm:$0x1]
  %v1932 = vlaneseq
  %v1933 = vshrl.u32 %v1932, 7
  %v1934 = vsub.s32 0, %v1933
  %v1935 = vrot.slane %v1930, %v1934
  %v1969 = vunpack.c.l.b16 %v1897
  %v1970 = vunpack.c.l.b16 %v1898
  %v1971 = vunpack.c.l.b16 %v1899
  %v1972 = vunpack.c.l.b16 %v1900
  %v1973 = vunpack.c.l.b16 %v1901
  %v1974 = vunpack.c.l.b16 %v1902
  %v1975 = vunpack.c.l.b16 %v1903
  %v1976 = vunpack.c.l.b16 %v1904
  %v1977 = vunpack.c.l.b16 %v1905
  %v1978 = vunpack.c.l.b16 %v1906
  %v1979 = vunpack.c.l.b16 %v1907
  %v1980 = vunpack.c.l.b16 %v1908
  %v1981 = vunpack.c.l.b16 %v1909
  %v1982 = vunpack.c.l.b16 %v1910
  %v1983 = vunpack.c.l.b16 %v1911
  %v1984 = vunpack.c.l.b16 %v1912
  %v1985 = vunpack.c.l.b16 %v1913
  %v1986 = vunpack.c.l.b16 %v1914
  %v1987 = vunpack.c.l.b16 %v1915
  %v1988 = vunpack.c.l.b16 %v1916
  %v1989 = vunpack.c.l.b16 %v1917
  %v1990 = vunpack.c.l.b16 %v1918
  %v1991 = vunpack.c.l.b16 %v1919
  %v1992 = vunpack.c.l.b16 %v1920
  %v1993 = vunpack.c.l.b16 %v1921
  %v1994 = vunpack.c.l.b16 %v1922
  %v1995 = vunpack.c.l.b16 %v1923
  %v1996 = vunpack.c.l.b16 %v1924
  %v1997 = vunpack.c.l.b16 %v1925
  %v1998 = vunpack.c.l.b16 %v1926
  %v1999 = vunpack.c.l.b16 %v1927
  %v2000 = vunpack.c.l.b16 %v1928
  %v2001 = vpack.c.b16 %v1970, %v1969
  %v2002 = vpack.c.b16 %v1972, %v1971
  %v2003 = vpack.c.b16 %v1974, %v1973
  %v2004 = vpack.c.b16 %v1976, %v1975
  %v2005 = vpack.c.b16 %v1978, %v1977
  %v2006 = vpack.c.b16 %v1980, %v1979
  %v2007 = vpack.c.b16 %v1982, %v1981
  %v2008 = vpack.c.b16 %v1984, %v1983
  %v2009 = vpack.c.b16 %v1986, %v1985
  %v2010 = vpack.c.b16 %v1988, %v1987
  %v2011 = vpack.c.b16 %v1990, %v1989
  %v2012 = vpack.c.b16 %v1992, %v1991
  %v2013 = vpack.c.b16 %v1994, %v1993
  %v2014 = vpack.c.b16 %v1996, %v1995
  %v2015 = vpack.c.b16 %v1998, %v1997
  %v2016 = vpack.c.b16 %v2000, %v1999
  %2033 = vmatprep.subr.bf16.mxu0 0
  %2034 = vmatpush1.bf16.msra.mxu0 %v2001
  %2035 = vmatprep.subr.bf16.mxu0 0
  %2036 = vmatpush1.bf16.msra.mxu0 %v2002
  %2037 = vmatprep.subr.bf16.mxu0 0
  %2038 = vmatpush1.bf16.msra.mxu0 %v2003
  %2039 = vmatprep.subr.bf16.mxu0 0
  %2040 = vmatpush1.bf16.msra.mxu0 %v2004
  %2041 = vmatprep.subr.bf16.mxu0 0
  %2042 = vmatpush1.bf16.msra.mxu0 %v2005
  %2043 = vmatprep.subr.bf16.mxu0 0
  %2044 = vmatpush1.bf16.msra.mxu0 %v2006
  %2045 = vmatprep.subr.bf16.mxu0 0
  %2046 = vmatpush1.bf16.msra.mxu0 %v2007
  %2047 = vmatprep.subr.bf16.mxu0 0
  %2048 = vmatpush1.bf16.msra.mxu0 %v2008
  %2049 = vmatprep.subr.bf16.mxu0 0
  %2050 = vmatpush1.bf16.msra.mxu0 %v2009
  %2051 = vmatprep.subr.bf16.mxu0 0
  %2052 = vmatpush1.bf16.msra.mxu0 %v2010
  %2053 = vmatprep.subr.bf16.mxu0 0
  %2054 = vmatpush1.bf16.msra.mxu0 %v2011
  %2055 = vmatprep.subr.bf16.mxu0 0
  %2056 = vmatpush1.bf16.msra.mxu0 %v2012
  %2057 = vmatprep.subr.bf16.mxu0 0
  %2058 = vmatpush1.bf16.msra.mxu0 %v2013
  %2059 = vmatprep.subr.bf16.mxu0 0
  %2060 = vmatpush1.bf16.msra.mxu0 %v2014
  %2061 = vmatprep.subr.bf16.mxu0 0
  %2062 = vmatpush1.bf16.msra.mxu0 %v2015
  %2063 = vmatprep.subr.bf16.mxu0 0
  %2064 = vmatpush1.bf16.msra.mxu0 %v2016
  %2065 = vmatprep.mubr.bf16.mxu0 %v1895
  %2066 = vmatmul.mubr.bf16.gmra.mrb[0].mxu0 %v1894
  %v2067 = vpop.f32.mrb[0].mxu0
  %v2068 = vadd.f32 %v1935, %v2067
  %v2069 = vpop.f32.mrb[0].mxu0
  %v2070 = vpop.f32.mrb[0].mxu0
  %v2071 = vadd.f32 %v1935, %v2070
  %v2072 = vpop.f32.mrb[0].mxu0
  %2073 = vdwg.mxu0
  %v2074 = vadd.f32 %v1289, %v2068
  %v2075 = vadd.f32 %v1290, %v2071
  %s2076 = scalar_lea.vmem %s11, 1
  %v2077 = vld [vmem:[%s2076] sm:$0x1]
  %s2078 = scalar_lea.vmem %s12, 1
  %v2079 = vld [vmem:[%s2078] sm:$0x1]
  %v2080 = vsel %vm191, %v2074, 0.0
  %2081 = vadd.xlane.f32.xlu0 %v2080
  %v2082 = vpop.xlane.xlu0 %2081
  %v2083 = vsel %vm191, %v2075, 0.0
  %2084 = vadd.xlane.f32.xlu0 %v2083
  %v2085 = vpop.xlane.xlu0 %2084
  %v2086 = vmul.f32 %v2082, %v198
  %v2087 = vmul.f32 %v2085, %v198
  %v2088 = vsub.f32 %v2074, %v2086
  %v2089 = vsub.f32 %v2075, %v2087
  %v2090 = vmul.f32 %v2088, %v2088
  %v2091 = vmul.f32 %v2089, %v2089
  %v2092 = vsel %vm191, %v2090, 0.0
  %2093 = vadd.xlane.f32.xlu0 %v2092
  %v2094 = vpop.xlane.xlu0 %2093
  %v2095 = vsel %vm191, %v2091, 0.0
  %2096 = vadd.xlane.f32.xlu0 %v2095
  %v2097 = vpop.xlane.xlu0 %2096
  %v2098 = vmul.f32 %v2094, %v198
  %v2099 = vmul.f32 %v2097, %v198
  %v2100 = vadd.f32 %v2098, 1e-12
  %v2101 = vadd.f32 %v2099, 1e-12
  %v2102 = vrsqrt.pop %v2100
  %v2103 = vrsqrt.pop %v2101
  %v2104 = vmul.f32 %v2088, %v2102
  %v2105 = vmul.f32 %v2089, %v2103
  %v2107 = vlaneseq
  %v2108 = vshrl.u32 %v2107, 7
  %v2109 = vsub.s32 0, %v2108
  %v2110 = vrot.slane %v2077, %v2109
  %v2112 = vmul.f32 %v2104, %v2110
  %v2113 = vmul.f32 %v2105, %v2110
  %v2115 = vlaneseq
  %v2116 = vshrl.u32 %v2115, 7
  %v2117 = vsub.s32 0, %v2116
  %v2118 = vrot.slane %v2079, %v2117
  %v2120 = vadd.f32 %v2112, %v2118
  %v2121 = vadd.f32 %v2113, %v2118
  %v2122 = vpack.c.bf16 %v2121, %v2120
  %s2123 = scalar_lea.vmem %s13, 16
  %v2124 = vld [vmem:[%s2123] sm:$0xf]
  %v2125 = vld [vmem:[%s2123 + $0x4] sm:$0xf]
  %v2126 = vld [vmem:[%s2123 + $0x8] sm:$0xf]
  %v2127 = vld [vmem:[%s2123 + $0xc] sm:$0xf]
  %s2128 = scalar_lea.vmem %s14, 1
  %v2129 = vld [vmem:[%s2128] sm:$0x1]
  %v2131 = vlaneseq
  %v2132 = vshrl.u32 %v2131, 7
  %v2133 = vsub.s32 0, %v2132
  %v2134 = vrot.slane %v2129, %v2133
  %v2140 = vunpack.c.l.b16 %v2124
  %v2141 = vunpack.c.l.b16 %v2125
  %v2142 = vunpack.c.l.b16 %v2126
  %v2143 = vunpack.c.l.b16 %v2127
  %v2144 = vpack.c.b16 %v2141, %v2140
  %v2145 = vpack.c.b16 %v2143, %v2142
  %v2149 = vsel %vm191, %v2122, 0
  %2151 = vmatprep.subr.bf16.mxu0 0
  %2152 = vmatpush1.bf16.msra.mxu0 %v2144
  %2153 = vmatprep.subr.bf16.mxu0 0
  %2154 = vmatpush1.bf16.msra.mxu0 %v2145
  %2155 = vmatprep.subr.bf16.mxu0 0
  %2156 = vmatpush1.bf16.msra.mxu0 0
  %2157 = vmatprep.subr.bf16.mxu0 0
  %2158 = vmatpush1.bf16.msra.mxu0 0
  %2159 = vmatprep.subr.bf16.mxu0 0
  %2160 = vmatpush1.bf16.msra.mxu0 0
  %2161 = vmatprep.subr.bf16.mxu0 0
  %2162 = vmatpush1.bf16.msra.mxu0 0
  %2163 = vmatprep.subr.bf16.mxu0 0
  %2164 = vmatpush1.bf16.msra.mxu0 0
  %2165 = vmatprep.subr.bf16.mxu0 0
  %2166 = vmatpush1.bf16.msra.mxu0 0
  %2167 = vmatprep.subr.bf16.mxu0 0
  %2168 = vmatpush1.bf16.msra.mxu0 0
  %2169 = vmatprep.subr.bf16.mxu0 0
  %2170 = vmatpush1.bf16.msra.mxu0 0
  %2171 = vmatprep.subr.bf16.mxu0 0
  %2172 = vmatpush1.bf16.msra.mxu0 0
  %2173 = vmatprep.subr.bf16.mxu0 0
  %2174 = vmatpush1.bf16.msra.mxu0 0
  %2175 = vmatprep.subr.bf16.mxu0 0
  %2176 = vmatpush1.bf16.msra.mxu0 0
  %2177 = vmatprep.subr.bf16.mxu0 0
  %2178 = vmatpush1.bf16.msra.mxu0 0
  %2179 = vmatprep.subr.bf16.mxu0 0
  %2180 = vmatpush1.bf16.msra.mxu0 0
  %2181 = vmatprep.subr.bf16.mxu0 0
  %2182 = vmatpush1.bf16.msra.mxu0 0
  %2183 = vmatprep.mubr.bf16.mxu0 0
  %2184 = vmatmul.mubr.bf16.gmra.mrb[0].mxu0 %v2149
  %v2185 = vpop.f32.mrb[0].mxu0
  %v2186 = vadd.f32 %v2134, %v2185
  %v2187 = vpop.f32.mrb[0].mxu0
  %v2188 = vpop.f32.mrb[0].mxu0
  %v2189 = vadd.f32 %v2134, %v2188
  %v2190 = vpop.f32.mrb[0].mxu0
  %2191 = vdwg.mxu0
  %v2192 = vmul.f32 %v2186, 0.5
  %v2193 = vmul.f32 %v2189, 0.5
  %v2194 = vmul.f32 %v2186, 0.044715
  %v2195 = vmul.f32 %v2189, 0.044715
  %v2196 = vmul.f32 %v2194, %v2186
  %v2197 = vmul.f32 %v2195, %v2189
  %v2198 = vmul.f32 %v2196, %v2186
  %v2199 = vmul.f32 %v2197, %v2189
  %v2200 = vadd.f32 %v2186, %v2198
  %v2201 = vadd.f32 %v2189, %v2199
  %v2202 = vmul.f32 %v2200, 0.7978846
  %v2203 = vmul.f32 %v2201, 0.7978846
  %v2204 = vtanh.pop %v2202
  %v2205 = vtanh.pop %v2203
  %v2206 = vadd.f32 %v2204, 1.0
  %v2207 = vadd.f32 %v2205, 1.0
  %v2208 = vmul.f32 %v2192, %v2206
  %v2209 = vmul.f32 %v2193, %v2207
  %v2210 = vpack.c.bf16 %v2209, %v2208
  %s2211 = scalar_lea.vmem %s15, 32
  %v2212 = vld [vmem:[%s2211] sm:$0xf]
  %v2213 = vld [vmem:[%s2211 + $0x4] sm:$0xf]
  %v2214 = vld [vmem:[%s2211 + $0x8] sm:$0xf]
  %v2215 = vld [vmem:[%s2211 + $0xc] sm:$0xf]
  %v2216 = vld [vmem:[%s2211 + $0x10] sm:$0xf]
  %v2217 = vld [vmem:[%s2211 + $0x14] sm:$0xf]
  %v2218 = vld [vmem:[%s2211 + $0x18] sm:$0xf]
  %v2219 = vld [vmem:[%s2211 + $0x1c] sm:$0xf]
  %s2220 = scalar_lea.vmem %s16, 1
  %v2221 = vld [vmem:[%s2220] sm:$0x1]
  %v2223 = vlaneseq
  %v2224 = vshrl.u32 %v2223, 7
  %v2225 = vsub.s32 0, %v2224
  %v2226 = vrot.slane %v2221, %v2225
  %v2236 = vunpack.c.l.b16 %v2212
  %v2237 = vunpack.c.l.b16 %v2213
  %v2238 = vunpack.c.l.b16 %v2214
  %v2239 = vunpack.c.l.b16 %v2215
  %v2240 = vunpack.c.l.b16 %v2216
  %v2241 = vunpack.c.l.b16 %v2217
  %v2242 = vunpack.c.l.b16 %v2218
  %v2243 = vunpack.c.l.b16 %v2219
  %v2244 = vpack.c.b16 %v2237, %v2236
  %v2245 = vpack.c.b16 %v2239, %v2238
  %v2246 = vpack.c.b16 %v2241, %v2240
  %v2247 = vpack.c.b16 %v2243, %v2242
  %v2253 = vsel %vm107, %v2210, 0
  %2255 = vmatprep.subr.bf16.mxu0 0
  %2256 = vmatpush1.bf16.msra.mxu0 %v2244
  %2257 = vmatprep.subr.bf16.mxu0 0
  %2258 = vmatpush1.bf16.msra.mxu0 %v2245
  %2259 = vmatprep.subr.bf16.mxu0 0
  %2260 = vmatpush1.bf16.msra.mxu0 %v2246
  %2261 = vmatprep.subr.bf16.mxu0 0
  %2262 = vmatpush1.bf16.msra.mxu0 %v2247
  %2263 = vmatprep.subr.bf16.mxu0 0
  %2264 = vmatpush1.bf16.msra.mxu0 0
  %2265 = vmatprep.subr.bf16.mxu0 0
  %2266 = vmatpush1.bf16.msra.mxu0 0
  %2267 = vmatprep.subr.bf16.mxu0 0
  %2268 = vmatpush1.bf16.msra.mxu0 0
  %2269 = vmatprep.subr.bf16.mxu0 0
  %2270 = vmatpush1.bf16.msra.mxu0 0
  %2271 = vmatprep.subr.bf16.mxu0 0
  %2272 = vmatpush1.bf16.msra.mxu0 0
  %2273 = vmatprep.subr.bf16.mxu0 0
  %2274 = vmatpush1.bf16.msra.mxu0 0
  %2275 = vmatprep.subr.bf16.mxu0 0
  %2276 = vmatpush1.bf16.msra.mxu0 0
  %2277 = vmatprep.subr.bf16.mxu0 0
  %2278 = vmatpush1.bf16.msra.mxu0 0
  %2279 = vmatprep.subr.bf16.mxu0 0
  %2280 = vmatpush1.bf16.msra.mxu0 0
  %2281 = vmatprep.subr.bf16.mxu0 0
  %2282 = vmatpush1.bf16.msra.mxu0 0
  %2283 = vmatprep.subr.bf16.mxu0 0
  %2284 = vmatpush1.bf16.msra.mxu0 0
  %2285 = vmatprep.subr.bf16.mxu0 0
  %2286 = vmatpush1.bf16.msra.mxu0 0
  %2287 = vmatprep.mubr.bf16.mxu0 0
  %2288 = vmatmul.mubr.bf16.gmra.mrb[0].mxu0 %v2253
  %v2289 = vpop.f32.mrb[0].mxu0
  %v2290 = vadd.f32 %v2226, %v2289
  %v2291 = vpop.f32.mrb[0].mxu0
  %v2292 = vpop.f32.mrb[0].mxu0
  %v2293 = vadd.f32 %v2226, %v2292
  %v2294 = vpop.f32.mrb[0].mxu0
  %2295 = vdwg.mxu0
  %v2296 = vadd.f32 %v2120, %v2290
  %v2297 = vadd.f32 %v2121, %v2293
  %s2298 = scalar_lea.vmem %s17, 1
  %v2299 = vld [vmem:[%s2298] sm:$0x1]
  %s2300 = scalar_lea.vmem %s18, 1
  %v2301 = vld [vmem:[%s2300] sm:$0x1]
  %v2302 = vsel %vm191, %v2296, 0.0
  %2303 = vadd.xlane.f32.xlu0 %v2302
  %v2304 = vpop.xlane.xlu0 %2303
  %v2305 = vsel %vm191, %v2297, 0.0
  %2306 = vadd.xlane.f32.xlu0 %v2305
  %v2307 = vpop.xlane.xlu0 %2306
  %v2308 = vmul.f32 %v2304, %v198
  %v2309 = vmul.f32 %v2307, %v198
  %v2310 = vsub.f32 %v2296, %v2308
  %v2311 = vsub.f32 %v2297, %v2309
  %v2312 = vmul.f32 %v2310, %v2310
  %v2313 = vmul.f32 %v2311, %v2311
  %v2314 = vsel %vm191, %v2312, 0.0
  %2315 = vadd.xlane.f32.xlu0 %v2314
  %v2316 = vpop.xlane.xlu0 %2315
  %v2317 = vsel %vm191, %v2313, 0.0
  %2318 = vadd.xlane.f32.xlu0 %v2317
  %v2319 = vpop.xlane.xlu0 %2318
  %v2320 = vmul.f32 %v2316, %v198
  %v2321 = vmul.f32 %v2319, %v198
  %v2322 = vadd.f32 %v2320, 1e-12
  %v2323 = vadd.f32 %v2321, 1e-12
  %v2324 = vrsqrt.pop %v2322
  %v2325 = vrsqrt.pop %v2323
  %v2326 = vmul.f32 %v2310, %v2324
  %v2327 = vmul.f32 %v2311, %v2325
  %v2329 = vlaneseq
  %v2330 = vshrl.u32 %v2329, 7
  %v2331 = vsub.s32 0, %v2330
  %v2332 = vrot.slane %v2299, %v2331
  %v2334 = vmul.f32 %v2326, %v2332
  %v2335 = vmul.f32 %v2327, %v2332
  %v2337 = vlaneseq
  %v2338 = vshrl.u32 %v2337, 7
  %v2339 = vsub.s32 0, %v2338
  %v2340 = vrot.slane %v2301, %v2339
  %v2342 = vadd.f32 %v2334, %v2340
  %v2343 = vadd.f32 %v2335, %v2340
  %v2345 = vrot.slane %v2342, 7
  %v2348 = vrot.slane %v2343, 6
  %vm2350 = vcmask 1040384
  %v2351 = vsel %vm2350, %v2345, %v2348
  %v2352 = vld [vmem:[%s19] sm:$0x3]
  %v2353 = vld [vmem:[%s21] sm:$0x3]
  %2355 = vrot.lane.b32.xlu0 %v2351, 32
  %v2356 = vpop.permute.xlu0 %2355
  %v2358 = vsel %vm191, %v2352, %v2356
  %v2359 = vpack.c.bf16 %v2358, %v2358
  %v2360 = vld [vmem:[%s20] sm:$0xff]
  %v2361 = vld [vmem:[%s20 + $0x8] sm:$0xff]
  %v2362 = vld [vmem:[%s20 + $0x10] sm:$0xff]
  %v2363 = vld [vmem:[%s20 + $0x18] sm:$0xff]
  %v2364 = vld [vmem:[%s20 + $0x20] sm:$0xff]
  %v2365 = vld [vmem:[%s20 + $0x28] sm:$0xff]
  %v2366 = vld [vmem:[%s20 + $0x30] sm:$0xff]
  %v2367 = vld [vmem:[%s20 + $0x38] sm:$0xff]
  %v2369 = vlaneseq
  %v2370 = vshrl.u32 %v2369, 7
  %v2371 = vsub.s32 0, %v2370
  %v2372 = vrot.slane %v2353, %v2371
  %v2373 = vlaneseq
  %v2374 = vshrl.u32 %v2373, 7
  %v2375 = vsub.s32 1, %v2374
  %v2376 = vrot.slane %v2353, %v2375
  %v2387 = vunpack.c.l.b16 %v2360
  %v2388 = vunpack.c.h.b16 %v2360
  %v2389 = vunpack.c.l.b16 %v2361
  %v2390 = vunpack.c.h.b16 %v2361
  %v2391 = vunpack.c.l.b16 %v2362
  %v2392 = vunpack.c.h.b16 %v2362
  %v2393 = vunpack.c.l.b16 %v2363
  %v2394 = vunpack.c.h.b16 %v2363
  %v2395 = vunpack.c.l.b16 %v2364
  %v2396 = vunpack.c.h.b16 %v2364
  %v2397 = vunpack.c.l.b16 %v2365
  %v2398 = vunpack.c.h.b16 %v2365
  %v2399 = vunpack.c.l.b16 %v2366
  %v2400 = vunpack.c.h.b16 %v2366
  %v2401 = vunpack.c.l.b16 %v2367
  %v2402 = vunpack.c.h.b16 %v2367
  %v2403 = vpack.c.b16 %v2389, %v2387
  %v2404 = vpack.c.b16 %v2390, %v2388
  %v2405 = vpack.c.b16 %v2393, %v2391
  %v2406 = vpack.c.b16 %v2394, %v2392
  %v2407 = vpack.c.b16 %v2397, %v2395
  %v2408 = vpack.c.b16 %v2398, %v2396
  %v2409 = vpack.c.b16 %v2401, %v2399
  %v2410 = vpack.c.b16 %v2402, %v2400
  %v2420 = vsel %vm107, %v2359, 0
  %2422 = vmatprep.subr.bf16.mxu0 %v2404
  %2423 = vmatpush1.bf16.msra.mxu0 %v2403
  %2424 = vmatprep.subr.bf16.mxu0 %v2406
  %2425 = vmatpush1.bf16.msra.mxu0 %v2405
  %2426 = vmatprep.subr.bf16.mxu0 %v2408
  %2427 = vmatpush1.bf16.msra.mxu0 %v2407
  %2428 = vmatprep.subr.bf16.mxu0 %v2410
  %2429 = vmatpush1.bf16.msra.mxu0 %v2409
  %2430 = vmatprep.subr.bf16.mxu0 0
  %2431 = vmatpush1.bf16.msra.mxu0 0
  %2432 = vmatprep.subr.bf16.mxu0 0
  %2433 = vmatpush1.bf16.msra.mxu0 0
  %2434 = vmatprep.subr.bf16.mxu0 0
  %2435 = vmatpush1.bf16.msra.mxu0 0
  %2436 = vmatprep.subr.bf16.mxu0 0
  %2437 = vmatpush1.bf16.msra.mxu0 0
  %2438 = vmatprep.subr.bf16.mxu0 0
  %2439 = vmatpush1.bf16.msra.mxu0 0
  %2440 = vmatprep.subr.bf16.mxu0 0
  %2441 = vmatpush1.bf16.msra.mxu0 0
  %2442 = vmatprep.subr.bf16.mxu0 0
  %2443 = vmatpush1.bf16.msra.mxu0 0
  %2444 = vmatprep.subr.bf16.mxu0 0
  %2445 = vmatpush1.bf16.msra.mxu0 0
  %2446 = vmatprep.subr.bf16.mxu0 0
  %2447 = vmatpush1.bf16.msra.mxu0 0
  %2448 = vmatprep.subr.bf16.mxu0 0
  %2449 = vmatpush1.bf16.msra.mxu0 0
  %2450 = vmatprep.subr.bf16.mxu0 0
  %2451 = vmatpush1.bf16.msra.mxu0 0
  %2452 = vmatprep.subr.bf16.mxu0 0
  %2453 = vmatpush1.bf16.msra.mxu0 0
  %2454 = vmatprep.mubr.bf16.mxu0 0
  %2455 = vmatmul.mubr.bf16.gmra.mrb[0].mxu0 %v2420
  %v2456 = vpop.f32.mrb[0].mxu0
  %v2457 = vadd.f32 %v2372, %v2456
  %v2458 = vpop.f32.mrb[0].mxu0
  %v2459 = vadd.f32 %v2376, %v2458
  %v2460 = vpop.f32.mrb[0].mxu0
  %v2461 = vpop.f32.mrb[0].mxu0
  %2462 = vdwg.mxu0
  %2464 = vrot.lane.b32.xlu0 %v2457, 32
  %v2465 = vpop.permute.xlu0 %2464
  %v2467 = vadd.f32 %v2457, %v2465
  %v2468 = vxor.u32 %v2467, 2147483648
  %v2469 = vmul.f32 %v2468, 1.442695
  %v2470 = vpow.pop %v2469
  %v2471 = vadd.f32 %v2470, 1.0
  %v2472 = vrcp.pop %v2471
  %v2473 = vmul.f32 1.0, %v2472
  %2475 = vrot.lane.b32.xlu0 %v2459, 32
  %v2476 = vpop.permute.xlu0 %2475
  %v2478 = vadd.f32 %v2457, %v2476
  %v2479 = vxor.u32 %v2478, 2147483648
  %v2480 = vmul.f32 %v2479, 1.442695
  %v2481 = vpow.pop %v2480
  %v2482 = vadd.f32 %v2481, 1.0
  %v2483 = vrcp.pop %v2482
  %v2484 = vmul.f32 1.0, %v2483
  %2485 = vrot.lane.b32.xlu0 %v2459, 96
  %v2486 = vpop.permute.xlu0 %2485
  %v2488 = vmul.f32 %v2473, %v2486
  %2490 = vrot.lane.b32.xlu0 %v2488, 64
  %v2491 = vpop.permute.xlu0 %2490
  %v2493 = vadd.f32 %v2457, %v2491
  %v2494 = vtanh.pop %v2493
  %v2495 = vsub.f32 1.0, %v2484
  %2497 = vrot.lane.b32.xlu0 %v2494, 96
  %v2498 = vpop.permute.xlu0 %2497
  %v2500 = vmul.f32 %v2495, %v2498
  %v2501 = vmul.f32 %v2484, %v2356
  %v2502 = vadd.f32 %v2500, %v2501
  %v2503 = vpack.c.bf16 %v2502, %v2502
  %v2504 = vld [vmem:[%s22] sm:$0xf]
  %v2505 = vld [vmem:[%s22 + $0x4] sm:$0xf]
  %v2506 = vld [vmem:[%s22 + $0x8] sm:$0xf]
  %v2507 = vld [vmem:[%s22 + $0xc] sm:$0xf]
  %v2508 = vld [vmem:[%s23] sm:$0x1]
  %v2510 = vlaneseq
  %v2511 = vshrl.u32 %v2510, 7
  %v2512 = vsub.s32 0, %v2511
  %v2513 = vrot.slane %v2508, %v2512
  %2516 = vrot.lane.b32.xlu0 %v2503, 96
  %v2517 = vpop.permute.xlu0 %2516
  %v2522 = vunpack.c.l.b16 %v2504
  %v2523 = vunpack.c.l.b16 %v2505
  %v2524 = vunpack.c.l.b16 %v2506
  %v2525 = vunpack.c.l.b16 %v2507
  %v2526 = vpack.c.b16 %v2523, %v2522
  %v2527 = vpack.c.b16 %v2525, %v2524
  %v2531 = vsel %vm191, %v2517, 0
  %2533 = vmatprep.subr.bf16.mxu0 0
  %2534 = vmatpush1.bf16.msra.mxu0 %v2526
  %2535 = vmatprep.subr.bf16.mxu0 0
  %2536 = vmatpush1.bf16.msra.mxu0 %v2527
  %2537 = vmatprep.subr.bf16.mxu0 0
  %2538 = vmatpush1.bf16.msra.mxu0 0
  %2539 = vmatprep.subr.bf16.mxu0 0
  %2540 = vmatpush1.bf16.msra.mxu0 0
  %2541 = vmatprep.subr.bf16.mxu0 0
  %2542 = vmatpush1.bf16.msra.mxu0 0
  %2543 = vmatprep.subr.bf16.mxu0 0
  %2544 = vmatpush1.bf16.msra.mxu0 0
  %2545 = vmatprep.subr.bf16.mxu0 0
  %2546 = vmatpush1.bf16.msra.mxu0 0
  %2547 = vmatprep.subr.bf16.mxu0 0
  %2548 = vmatpush1.bf16.msra.mxu0 0
  %2549 = vmatprep.subr.bf16.mxu0 0
  %2550 = vmatpush1.bf16.msra.mxu0 0
  %2551 = vmatprep.subr.bf16.mxu0 0
  %2552 = vmatpush1.bf16.msra.mxu0 0
  %2553 = vmatprep.subr.bf16.mxu0 0
  %2554 = vmatpush1.bf16.msra.mxu0 0
  %2555 = vmatprep.subr.bf16.mxu0 0
  %2556 = vmatpush1.bf16.msra.mxu0 0
  %2557 = vmatprep.subr.bf16.mxu0 0
  %2558 = vmatpush1.bf16.msra.mxu0 0
  %2559 = vmatprep.subr.bf16.mxu0 0
  %2560 = vmatpush1.bf16.msra.mxu0 0
  %2561 = vmatprep.subr.bf16.mxu0 0
  %2562 = vmatpush1.bf16.msra.mxu0 0
  %2563 = vmatprep.subr.bf16.mxu0 0
  %2564 = vmatpush1.bf16.msra.mxu0 0
  %2565 = vmatprep.mubr.bf16.mxu0 0
  %2566 = vmatmul.mubr.bf16.gmra.mrb[0].mxu0 %v2531
  %v2567 = vpop.f32.mrb[0].mxu0
  %v2568 = vadd.f32 %v2513, %v2567
  %v2569 = vpop.f32.mrb[0].mxu0
  %v2570 = vpop.f32.mrb[0].mxu0
  %v2571 = vpop.f32.mrb[0].mxu0
  %2572 = vdwg.mxu0
  %2573 = vst [vmem:[%s25] sm:$0x3] %v2568
  %vm2574 = vcmask 1041408
  %v2575 = vsel %vm2574, %v2568, -inf
  %2576 = vmax.xlane.f32.xlu0 %v2575
  %v2577 = vpop.xlane.xlu0 %2576
  %vm2578 = vcmp.eq.f32.partialorder %v2568, %v2577
  %v2579 = vsel %vm2578, %v84, 128
  %v2580 = vsel %vm2574, %v2579, 2147483647
  %v2581 = vand.u32 %v2580, 65535
  %v2582 = vshra.s32 %v2580, 16
  %v2583 = vcvt.s32.f32 %v2581
  %v2584 = vcvt.s32.f32 %v2582
  %2585 = vmin.xlane.f32.xlu0 %v2584
  %v2586 = vpop.xlane.xlu0 %2585
  %vm2587 = vcmp.eq.f32.partialorder %v2584, %v2586
  %v2588 = vsel %vm2587, %v2583, inf
  %2589 = vmin.xlane.f32.xlu0 %v2588
  %v2590 = vpop.xlane.xlu0 %2589
  %v2591 = vcvt.f32.s32 %v2590
  %v2592 = vcvt.f32.s32 %v2586
  %v2593 = vshll.u32 %v2592, 16
  %v2594 = vadd.s32 %v2593, %v2591
  %vm2595 = vcmp.eq.s32.totalorder %v84, %v2594
  %v2596 = vsel %vm2595, 1, 0
  %v2597 = vcvt.s32.f32 %v2596
  %v2598 = vld [vmem:[%s24] sm:$0xff]
  %v2599 = vld [vmem:[%s24 + $0x8] sm:$0xff]
  %v2600 = vld [vmem:[%s24 + $0x10] sm:$0xff]
  %v2601 = vld [vmem:[%s24 + $0x18] sm:$0xff]
  %v2602 = vld [vmem:[%s24 + $0x20] sm:$0xff]
  %v2603 = vld [vmem:[%s24 + $0x28] sm:$0xff]
  %v2604 = vld [vmem:[%s24 + $0x30] sm:$0xff]
  %v2605 = vld [vmem:[%s24 + $0x38] sm:$0xff]
  %v2606 = vld [vmem:[%s24 + $0x40] sm:$0xff]
  %v2607 = vld [vmem:[%s24 + $0x48] sm:$0xff]
  %v2608 = vld [vmem:[%s24 + $0x50] sm:$0xff]
  %v2609 = vld [vmem:[%s24 + $0x58] sm:$0xff]
  %v2610 = vld [vmem:[%s24 + $0x60] sm:$0xff]
  %v2611 = vld [vmem:[%s24 + $0x68] sm:$0xff]
  %v2612 = vld [vmem:[%s24 + $0x70] sm:$0xff]
  %v2613 = vld [vmem:[%s24 + $0x78] sm:$0xff]
  %2614 = vmatprep.subr.mxu0 0.0
  %2615 = vmatpush1.msra.mxu0 %v2598
  %2616 = vmatprep.subr.mxu0 0.0
  %2617 = vmatpush1.msra.mxu0 %v2599
  %2618 = vmatprep.subr.mxu0 0.0
  %2619 = vmatpush1.msra.mxu0 %v2600
  %2620 = vmatprep.subr.mxu0 0.0
  %2621 = vmatpush1.msra.mxu0 %v2601
  %2622 = vmatprep.subr.mxu0 0.0
  %2623 = vmatpush1.msra.mxu0 %v2602
  %2624 = vmatprep.subr.mxu0 0.0
  %2625 = vmatpush1.msra.mxu0 %v2603
  %2626 = vmatprep.subr.mxu0 0.0
  %2627 = vmatpush1.msra.mxu0 %v2604
  %2628 = vmatprep.subr.mxu0 0.0
  %2629 = vmatpush1.msra.mxu0 %v2605
  %2630 = vmatprep.subr.mxu0 0.0
  %2631 = vmatpush1.msra.mxu0 %v2606
  %2632 = vmatprep.subr.mxu0 0.0
  %2633 = vmatpush1.msra.mxu0 %v2607
  %2634 = vmatprep.subr.mxu0 0.0
  %2635 = vmatpush1.msra.mxu0 %v2608
  %2636 = vmatprep.subr.mxu0 0.0
  %2637 = vmatpush1.msra.mxu0 %v2609
  %2638 = vmatprep.subr.mxu0 0.0
  %2639 = vmatpush1.msra.mxu0 %v2610
  %2640 = vmatprep.subr.mxu0 0.0
  %2641 = vmatpush1.msra.mxu0 %v2611
  %2642 = vmatprep.subr.mxu0 0.0
  %2643 = vmatpush1.msra.mxu0 %v2612
  %2644 = vmatprep.subr.mxu0 0.0
  %2645 = vmatpush1.msra.mxu0 %v2613
  %2646 = vmatprep.subr.mxu0 0.0
  %2647 = vmatpush1.msra.mxu0 0.0
  %2648 = vmatprep.subr.mxu0 0.0
  %2649 = vmatpush1.msra.mxu0 0.0
  %2650 = vmatprep.subr.mxu0 0.0
  %2651 = vmatpush1.msra.mxu0 0.0
  %2652 = vmatprep.subr.mxu0 0.0
  %2653 = vmatpush1.msra.mxu0 0.0
  %2654 = vmatprep.subr.mxu0 0.0
  %2655 = vmatpush1.msra.mxu0 0.0
  %2656 = vmatprep.subr.mxu0 0.0
  %2657 = vmatpush1.msra.mxu0 0.0
  %2658 = vmatprep.subr.mxu0 0.0
  %2659 = vmatpush1.msra.mxu0 0.0
  %2660 = vmatprep.subr.mxu0 0.0
  %2661 = vmatpush1.msra.mxu0 0.0
  %2662 = vmatprep.subr.mxu0 0.0
  %2663 = vmatpush1.msra.mxu0 0.0
  %2664 = vmatprep.subr.mxu0 0.0
  %2665 = vmatpush1.msra.mxu0 0.0
  %2666 = vmatprep.subr.mxu0 0.0
  %2667 = vmatpush1.msra.mxu0 0.0
  %2668 = vmatprep.subr.mxu0 0.0
  %2669 = vmatpush1.msra.mxu0 0.0
  %2670 = vmatprep.subr.mxu0 0.0
  %2671 = vmatpush1.msra.mxu0 0.0
  %2672 = vmatprep.subr.mxu0 0.0
  %2673 = vmatpush1.msra.mxu0 0.0
  %2674 = vmatprep.subr.mxu0 0.0
  %2675 = vmatpush1.msra.mxu0 0.0
  %2676 = vmatprep.subr.mxu0 0.0
  %2677 = vmatpush1.msra.mxu0 0.0
  %2678 = vmatprep.mubr.f32.mxu0 0.0
  %2679 = vmatmul.mubr.f32.gmra.mrb[0].mxu0 %v2597
  %v2680 = vpop.f32.mrb[0].mxu0
  %v2681 = vadd.f32 0.0, %v2680
  %v2682 = vpop.f32.mrb[0].mxu0
  %2683 = vdwg.mxu0
  %v2684 = vsel %vm191, %v2681, %v2502
  %v2685 = vpack.c.bf16 %v2684, %v2684
  %v2686 = vld [vmem:[%s20] sm:$0xff]
  %v2687 = vld [vmem:[%s20 + $0x8] sm:$0xff]
  %v2688 = vld [vmem:[%s20 + $0x10] sm:$0xff]
  %v2689 = vld [vmem:[%s20 + $0x18] sm:$0xff]
  %v2690 = vld [vmem:[%s20 + $0x20] sm:$0xff]
  %v2691 = vld [vmem:[%s20 + $0x28] sm:$0xff]
  %v2692 = vld [vmem:[%s20 + $0x30] sm:$0xff]
  %v2693 = vld [vmem:[%s20 + $0x38] sm:$0xff]
  %v2702 = vunpack.c.l.b16 %v2686
  %v2703 = vunpack.c.h.b16 %v2686
  %v2704 = vunpack.c.l.b16 %v2687
  %v2705 = vunpack.c.h.b16 %v2687
  %v2706 = vunpack.c.l.b16 %v2688
  %v2707 = vunpack.c.h.b16 %v2688
  %v2708 = vunpack.c.l.b16 %v2689
  %v2709 = vunpack.c.h.b16 %v2689
  %v2710 = vunpack.c.l.b16 %v2690
  %v2711 = vunpack.c.h.b16 %v2690
  %v2712 = vunpack.c.l.b16 %v2691
  %v2713 = vunpack.c.h.b16 %v2691
  %v2714 = vunpack.c.l.b16 %v2692
  %v2715 = vunpack.c.h.b16 %v2692
  %v2716 = vunpack.c.l.b16 %v2693
  %v2717 = vunpack.c.h.b16 %v2693
  %v2718 = vpack.c.b16 %v2704, %v2702
  %v2719 = vpack.c.b16 %v2705, %v2703
  %v2720 = vpack.c.b16 %v2708, %v2706
  %v2721 = vpack.c.b16 %v2709, %v2707
  %v2722 = vpack.c.b16 %v2712, %v2710
  %v2723 = vpack.c.b16 %v2713, %v2711
  %v2724 = vpack.c.b16 %v2716, %v2714
  %v2725 = vpack.c.b16 %v2717, %v2715
  %v2735 = vsel %vm107, %v2685, 0
  %2737 = vmatprep.subr.bf16.mxu0 %v2719
  %2738 = vmatpush1.bf16.msra.mxu0 %v2718
  %2739 = vmatprep.subr.bf16.mxu0 %v2721
  %2740 = vmatpush1.bf16.msra.mxu0 %v2720
  %2741 = vmatprep.subr.bf16.mxu0 %v2723
  %2742 = vmatpush1.bf16.msra.mxu0 %v2722
  %2743 = vmatprep.subr.bf16.mxu0 %v2725
  %2744 = vmatpush1.bf16.msra.mxu0 %v2724
  %2745 = vmatprep.subr.bf16.mxu0 0
  %2746 = vmatpush1.bf16.msra.mxu0 0
  %2747 = vmatprep.subr.bf16.mxu0 0
  %2748 = vmatpush1.bf16.msra.mxu0 0
  %2749 = vmatprep.subr.bf16.mxu0 0
  %2750 = vmatpush1.bf16.msra.mxu0 0
  %2751 = vmatprep.subr.bf16.mxu0 0
  %2752 = vmatpush1.bf16.msra.mxu0 0
  %2753 = vmatprep.subr.bf16.mxu0 0
  %2754 = vmatpush1.bf16.msra.mxu0 0
  %2755 = vmatprep.subr.bf16.mxu0 0
  %2756 = vmatpush1.bf16.msra.mxu0 0
  %2757 = vmatprep.subr.bf16.mxu0 0
  %2758 = vmatpush1.bf16.msra.mxu0 0
  %2759 = vmatprep.subr.bf16.mxu0 0
  %2760 = vmatpush1.bf16.msra.mxu0 0
  %2761 = vmatprep.subr.bf16.mxu0 0
  %2762 = vmatpush1.bf16.msra.mxu0 0
  %2763 = vmatprep.subr.bf16.mxu0 0
  %2764 = vmatpush1.bf16.msra.mxu0 0
  %2765 = vmatprep.subr.bf16.mxu0 0
  %2766 = vmatpush1.bf16.msra.mxu0 0
  %2767 = vmatprep.subr.bf16.mxu0 0
  %2768 = vmatpush1.bf16.msra.mxu0 0
  %2769 = vmatprep.mubr.bf16.mxu0 0
  %2770 = vmatmul.mubr.bf16.gmra.mrb[0].mxu0 %v2735
  %v2771 = vpop.f32.mrb[0].mxu0
  %v2772 = vadd.f32 %v2372, %v2771
  %v2773 = vpop.f32.mrb[0].mxu0
  %v2774 = vadd.f32 %v2376, %v2773
  %v2775 = vpop.f32.mrb[0].mxu0
  %v2776 = vpop.f32.mrb[0].mxu0
  %2777 = vdwg.mxu0
  %2779 = vrot.lane.b32.xlu0 %v2772, 32
  %v2780 = vpop.permute.xlu0 %2779
  %v2782 = vadd.f32 %v2772, %v2780
  %v2783 = vxor.u32 %v2782, 2147483648
  %v2784 = vmul.f32 %v2783, 1.442695
  %v2785 = vpow.pop %v2784
  %v2786 = vadd.f32 %v2785, 1.0
  %v2787 = vrcp.pop %v2786
  %v2788 = vmul.f32 1.0, %v2787
  %2790 = vrot.lane.b32.xlu0 %v2774, 32
  %v2791 = vpop.permute.xlu0 %2790
  %v2793 = vadd.f32 %v2772, %v2791
  %v2794 = vxor.u32 %v2793, 2147483648
  %v2795 = vmul.f32 %v2794, 1.442695
  %v2796 = vpow.pop %v2795
  %v2797 = vadd.f32 %v2796, 1.0
  %v2798 = vrcp.pop %v2797
  %v2799 = vmul.f32 1.0, %v2798
  %2800 = vrot.lane.b32.xlu0 %v2774, 96
  %v2801 = vpop.permute.xlu0 %2800
  %v2803 = vmul.f32 %v2788, %v2801
  %2805 = vrot.lane.b32.xlu0 %v2803, 64
  %v2806 = vpop.permute.xlu0 %2805
  %v2808 = vadd.f32 %v2772, %v2806
  %v2809 = vtanh.pop %v2808
  %v2810 = vsub.f32 1.0, %v2799
  %2812 = vrot.lane.b32.xlu0 %v2809, 96
  %v2813 = vpop.permute.xlu0 %2812
  %v2815 = vmul.f32 %v2810, %v2813
  %v2816 = vmul.f32 %v2799, %v2502
  %v2817 = vadd.f32 %v2815, %v2816
  %v2818 = vpack.c.bf16 %v2817, %v2817
  %v2819 = vld [vmem:[%s22] sm:$0xf]
  %v2820 = vld [vmem:[%s22 + $0x4] sm:$0xf]
  %v2821 = vld [vmem:[%s22 + $0x8] sm:$0xf]
  %v2822 = vld [vmem:[%s22 + $0xc] sm:$0xf]
  %v2823 = vld [vmem:[%s23] sm:$0x1]
  %v2825 = vlaneseq
  %v2826 = vshrl.u32 %v2825, 7
  %v2827 = vsub.s32 0, %v2826
  %v2828 = vrot.slane %v2823, %v2827
  %2831 = vrot.lane.b32.xlu0 %v2818, 96
  %v2832 = vpop.permute.xlu0 %2831
  %v2837 = vunpack.c.l.b16 %v2819
  %v2838 = vunpack.c.l.b16 %v2820
  %v2839 = vunpack.c.l.b16 %v2821
  %v2840 = vunpack.c.l.b16 %v2822
  %v2841 = vpack.c.b16 %v2838, %v2837
  %v2842 = vpack.c.b16 %v2840, %v2839
  %v2846 = vsel %vm191, %v2832, 0
  %2848 = vmatprep.subr.bf16.mxu0 0
  %2849 = vmatpush1.bf16.msra.mxu0 %v2841
  %2850 = vmatprep.subr.bf16.mxu0 0
  %2851 = vmatpush1.bf16.msra.mxu0 %v2842
  %2852 = vmatprep.subr.bf16.mxu0 0
  %2853 = vmatpush1.bf16.msra.mxu0 0
  %2854 = vmatprep.subr.bf16.mxu0 0
  %2855 = vmatpush1.bf16.msra.mxu0 0
  %2856 = vmatprep.subr.bf16.mxu0 0
  %2857 = vmatpush1.bf16.msra.mxu0 0
  %2858 = vmatprep.subr.bf16.mxu0 0
  %2859 = vmatpush1.bf16.msra.mxu0 0
  %2860 = vmatprep.subr.bf16.mxu0 0
  %2861 = vmatpush1.bf16.msra.mxu0 0
  %2862 = vmatprep.subr.bf16.mxu0 0
  %2863 = vmatpush1.bf16.msra.mxu0 0
  %2864 = vmatprep.subr.bf16.mxu0 0
  %2865 = vmatpush1.bf16.msra.mxu0 0
  %2866 = vmatprep.subr.bf16.mxu0 0
  %2867 = vmatpush1.bf16.msra.mxu0 0
  %2868 = vmatprep.subr.bf16.mxu0 0
  %2869 = vmatpush1.bf16.msra.mxu0 0
  %2870 = vmatprep.subr.bf16.mxu0 0
  %2871 = vmatpush1.bf16.msra.mxu0 0
  %2872 = vmatprep.subr.bf16.mxu0 0
  %2873 = vmatpush1.bf16.msra.mxu0 0
  %2874 = vmatprep.subr.bf16.mxu0 0
  %2875 = vmatpush1.bf16.msra.mxu0 0
  %2876 = vmatprep.subr.bf16.mxu0 0
  %2877 = vmatpush1.bf16.msra.mxu0 0
  %2878 = vmatprep.subr.bf16.mxu0 0
  %2879 = vmatpush1.bf16.msra.mxu0 0
  %2880 = vmatprep.mubr.bf16.mxu0 0
  %2881 = vmatmul.mubr.bf16.gmra.mrb[0].mxu0 %v2846
  %v2882 = vpop.f32.mrb[0].mxu0
  %v2883 = vadd.f32 %v2828, %v2882
  %v2884 = vpop.f32.mrb[0].mxu0
  %v2885 = vpop.f32.mrb[0].mxu0
  %v2886 = vpop.f32.mrb[0].mxu0
  %2887 = vdwg.mxu0
  %2888 = vst [vmem:[%s25 + $0x2] sm:$0x3] %v2883
  %v2889 = vsel %vm2574, %v2883, -inf
  %2890 = vmax.xlane.f32.xlu0 %v2889
  %v2891 = vpop.xlane.xlu0 %2890
  %vm2892 = vcmp.eq.f32.partialorder %v2883, %v2891
  %v2893 = vsel %vm2892, %v84, 128
  %v2894 = vsel %vm2574, %v2893, 2147483647
  %v2895 = vand.u32 %v2894, 65535
  %v2896 = vshra.s32 %v2894, 16
  %v2897 = vcvt.s32.f32 %v2895
  %v2898 = vcvt.s32.f32 %v2896
  %2899 = vmin.xlane.f32.xlu0 %v2898
  %v2900 = vpop.xlane.xlu0 %2899
  %vm2901 = vcmp.eq.f32.partialorder %v2898, %v2900
  %v2902 = vsel %vm2901, %v2897, inf
  %2903 = vmin.xlane.f32.xlu0 %v2902
  %v2904 = vpop.xlane.xlu0 %2903
  %v2905 = vcvt.f32.s32 %v2904
  %v2906 = vcvt.f32.s32 %v2900
  %v2907 = vshll.u32 %v2906, 16
  %v2908 = vadd.s32 %v2907, %v2905
  %vm2909 = vcmp.eq.s32.totalorder %v84, %v2908
  %v2910 = vsel %vm2909, 1, 0
  %v2911 = vcvt.s32.f32 %v2910
  %v2912 = vld [vmem:[%s24] sm:$0xff]
  %v2913 = vld [vmem:[%s24 + $0x8] sm:$0xff]
  %v2914 = vld [vmem:[%s24 + $0x10] sm:$0xff]
  %v2915 = vld [vmem:[%s24 + $0x18] sm:$0xff]
  %v2916 = vld [vmem:[%s24 + $0x20] sm:$0xff]
  %v2917 = vld [vmem:[%s24 + $0x28] sm:$0xff]
  %v2918 = vld [vmem:[%s24 + $0x30] sm:$0xff]
  %v2919 = vld [vmem:[%s24 + $0x38] sm:$0xff]
  %v2920 = vld [vmem:[%s24 + $0x40] sm:$0xff]
  %v2921 = vld [vmem:[%s24 + $0x48] sm:$0xff]
  %v2922 = vld [vmem:[%s24 + $0x50] sm:$0xff]
  %v2923 = vld [vmem:[%s24 + $0x58] sm:$0xff]
  %v2924 = vld [vmem:[%s24 + $0x60] sm:$0xff]
  %v2925 = vld [vmem:[%s24 + $0x68] sm:$0xff]
  %v2926 = vld [vmem:[%s24 + $0x70] sm:$0xff]
  %v2927 = vld [vmem:[%s24 + $0x78] sm:$0xff]
  %2928 = vmatprep.subr.mxu0 0.0
  %2929 = vmatpush1.msra.mxu0 %v2912
  %2930 = vmatprep.subr.mxu0 0.0
  %2931 = vmatpush1.msra.mxu0 %v2913
  %2932 = vmatprep.subr.mxu0 0.0
  %2933 = vmatpush1.msra.mxu0 %v2914
  %2934 = vmatprep.subr.mxu0 0.0
  %2935 = vmatpush1.msra.mxu0 %v2915
  %2936 = vmatprep.subr.mxu0 0.0
  %2937 = vmatpush1.msra.mxu0 %v2916
  %2938 = vmatprep.subr.mxu0 0.0
  %2939 = vmatpush1.msra.mxu0 %v2917
  %2940 = vmatprep.subr.mxu0 0.0
  %2941 = vmatpush1.msra.mxu0 %v2918
  %2942 = vmatprep.subr.mxu0 0.0
  %2943 = vmatpush1.msra.mxu0 %v2919
  %2944 = vmatprep.subr.mxu0 0.0
  %2945 = vmatpush1.msra.mxu0 %v2920
  %2946 = vmatprep.subr.mxu0 0.0
  %2947 = vmatpush1.msra.mxu0 %v2921
  %2948 = vmatprep.subr.mxu0 0.0
  %2949 = vmatpush1.msra.mxu0 %v2922
  %2950 = vmatprep.subr.mxu0 0.0
  %2951 = vmatpush1.msra.mxu0 %v2923
  %2952 = vmatprep.subr.mxu0 0.0
  %2953 = vmatpush1.msra.mxu0 %v2924
  %2954 = vmatprep.subr.mxu0 0.0
  %2955 = vmatpush1.msra.mxu0 %v2925
  %2956 = vmatprep.subr.mxu0 0.0
  %2957 = vmatpush1.msra.mxu0 %v2926
  %2958 = vmatprep.subr.mxu0 0.0
  %2959 = vmatpush1.msra.mxu0 %v2927
  %2960 = vmatprep.subr.mxu0 0.0
  %2961 = vmatpush1.msra.mxu0 0.0
  %2962 = vmatprep.subr.mxu0 0.0
  %2963 = vmatpush1.msra.mxu0 0.0
  %2964 = vmatprep.subr.mxu0 0.0
  %2965 = vmatpush1.msra.mxu0 0.0
  %2966 = vmatprep.subr.mxu0 0.0
  %2967 = vmatpush1.msra.mxu0 0.0
  %2968 = vmatprep.subr.mxu0 0.0
  %2969 = vmatpush1.msra.mxu0 0.0
  %2970 = vmatprep.subr.mxu0 0.0
  %2971 = vmatpush1.msra.mxu0 0.0
  %2972 = vmatprep.subr.mxu0 0.0
  %2973 = vmatpush1.msra.mxu0 0.0
  %2974 = vmatprep.subr.mxu0 0.0
  %2975 = vmatpush1.msra.mxu0 0.0
  %2976 = vmatprep.subr.mxu0 0.0
  %2977 = vmatpush1.msra.mxu0 0.0
  %2978 = vmatprep.subr.mxu0 0.0
  %2979 = vmatpush1.msra.mxu0 0.0
  %2980 = vmatprep.subr.mxu0 0.0
  %2981 = vmatpush1.msra.mxu0 0.0
  %2982 = vmatprep.subr.mxu0 0.0
  %2983 = vmatpush1.msra.mxu0 0.0
  %2984 = vmatprep.subr.mxu0 0.0
  %2985 = vmatpush1.msra.mxu0 0.0
  %2986 = vmatprep.subr.mxu0 0.0
  %2987 = vmatpush1.msra.mxu0 0.0
  %2988 = vmatprep.subr.mxu0 0.0
  %2989 = vmatpush1.msra.mxu0 0.0
  %2990 = vmatprep.subr.mxu0 0.0
  %2991 = vmatpush1.msra.mxu0 0.0
  %2992 = vmatprep.mubr.f32.mxu0 0.0
  %2993 = vmatmul.mubr.f32.gmra.mrb[0].mxu0 %v2911
  %v2994 = vpop.f32.mrb[0].mxu0
  %v2995 = vadd.f32 0.0, %v2994
  %v2996 = vpop.f32.mrb[0].mxu0
  %2997 = vdwg.mxu0
  %v2998 = vsel %vm191, %v2995, %v2817
  %v2999 = vpack.c.bf16 %v2998, %v2998
  %v3000 = vld [vmem:[%s20] sm:$0xff]
  %v3001 = vld [vmem:[%s20 + $0x8] sm:$0xff]
  %v3002 = vld [vmem:[%s20 + $0x10] sm:$0xff]
  %v3003 = vld [vmem:[%s20 + $0x18] sm:$0xff]
  %v3004 = vld [vmem:[%s20 + $0x20] sm:$0xff]
  %v3005 = vld [vmem:[%s20 + $0x28] sm:$0xff]
  %v3006 = vld [vmem:[%s20 + $0x30] sm:$0xff]
  %v3007 = vld [vmem:[%s20 + $0x38] sm:$0xff]
  %v3016 = vunpack.c.l.b16 %v3000
  %v3017 = vunpack.c.h.b16 %v3000
  %v3018 = vunpack.c.l.b16 %v3001
  %v3019 = vunpack.c.h.b16 %v3001
  %v3020 = vunpack.c.l.b16 %v3002
  %v3021 = vunpack.c.h.b16 %v3002
  %v3022 = vunpack.c.l.b16 %v3003
  %v3023 = vunpack.c.h.b16 %v3003
  %v3024 = vunpack.c.l.b16 %v3004
  %v3025 = vunpack.c.h.b16 %v3004
  %v3026 = vunpack.c.l.b16 %v3005
  %v3027 = vunpack.c.h.b16 %v3005
  %v3028 = vunpack.c.l.b16 %v3006
  %v3029 = vunpack.c.h.b16 %v3006
  %v3030 = vunpack.c.l.b16 %v3007
  %v3031 = vunpack.c.h.b16 %v3007
  %v3032 = vpack.c.b16 %v3018, %v3016
  %v3033 = vpack.c.b16 %v3019, %v3017
  %v3034 = vpack.c.b16 %v3022, %v3020
  %v3035 = vpack.c.b16 %v3023, %v3021
  %v3036 = vpack.c.b16 %v3026, %v3024
  %v3037 = vpack.c.b16 %v3027, %v3025
  %v3038 = vpack.c.b16 %v3030, %v3028
  %v3039 = vpack.c.b16 %v3031, %v3029
  %v3049 = vsel %vm107, %v2999, 0
  %3051 = vmatprep.subr.bf16.mxu0 %v3033
  %3052 = vmatpush1.bf16.msra.mxu0 %v3032
  %3053 = vmatprep.subr.bf16.mxu0 %v3035
  %3054 = vmatpush1.bf16.msra.mxu0 %v3034
  %3055 = vmatprep.subr.bf16.mxu0 %v3037
  %3056 = vmatpush1.bf16.msra.mxu0 %v3036
  %3057 = vmatprep.subr.bf16.mxu0 %v3039
  %3058 = vmatpush1.bf16.msra.mxu0 %v3038
  %3059 = vmatprep.subr.bf16.mxu0 0
  %3060 = vmatpush1.bf16.msra.mxu0 0
  %3061 = vmatprep.subr.bf16.mxu0 0
  %3062 = vmatpush1.bf16.msra.mxu0 0
  %3063 = vmatprep.subr.bf16.mxu0 0
  %3064 = vmatpush1.bf16.msra.mxu0 0
  %3065 = vmatprep.subr.bf16.mxu0 0
  %3066 = vmatpush1.bf16.msra.mxu0 0
  %3067 = vmatprep.subr.bf16.mxu0 0
  %3068 = vmatpush1.bf16.msra.mxu0 0
  %3069 = vmatprep.subr.bf16.mxu0 0
  %3070 = vmatpush1.bf16.msra.mxu0 0
  %3071 = vmatprep.subr.bf16.mxu0 0
  %3072 = vmatpush1.bf16.msra.mxu0 0
  %3073 = vmatprep.subr.bf16.mxu0 0
  %3074 = vmatpush1.bf16.msra.mxu0 0
  %3075 = vmatprep.subr.bf16.mxu0 0
  %3076 = vmatpush1.bf16.msra.mxu0 0
  %3077 = vmatprep.subr.bf16.mxu0 0
  %3078 = vmatpush1.bf16.msra.mxu0 0
  %3079 = vmatprep.subr.bf16.mxu0 0
  %3080 = vmatpush1.bf16.msra.mxu0 0
  %3081 = vmatprep.subr.bf16.mxu0 0
  %3082 = vmatpush1.bf16.msra.mxu0 0
  %3083 = vmatprep.mubr.bf16.mxu0 0
  %3084 = vmatmul.mubr.bf16.gmra.mrb[0].mxu0 %v3049
  %v3085 = vpop.f32.mrb[0].mxu0
  %v3086 = vadd.f32 %v2372, %v3085
  %v3087 = vpop.f32.mrb[0].mxu0
  %v3088 = vadd.f32 %v2376, %v3087
  %v3089 = vpop.f32.mrb[0].mxu0
  %v3090 = vpop.f32.mrb[0].mxu0
  %3091 = vdwg.mxu0
  %3093 = vrot.lane.b32.xlu0 %v3086, 32
  %v3094 = vpop.permute.xlu0 %3093
  %v3096 = vadd.f32 %v3086, %v3094
  %v3097 = vxor.u32 %v3096, 2147483648
  %v3098 = vmul.f32 %v3097, 1.442695
  %v3099 = vpow.pop %v3098
  %v3100 = vadd.f32 %v3099, 1.0
  %v3101 = vrcp.pop %v3100
  %v3102 = vmul.f32 1.0, %v3101
  %3104 = vrot.lane.b32.xlu0 %v3088, 32
  %v3105 = vpop.permute.xlu0 %3104
  %v3107 = vadd.f32 %v3086, %v3105
  %v3108 = vxor.u32 %v3107, 2147483648
  %v3109 = vmul.f32 %v3108, 1.442695
  %v3110 = vpow.pop %v3109
  %v3111 = vadd.f32 %v3110, 1.0
  %v3112 = vrcp.pop %v3111
  %v3113 = vmul.f32 1.0, %v3112
  %3114 = vrot.lane.b32.xlu0 %v3088, 96
  %v3115 = vpop.permute.xlu0 %3114
  %v3117 = vmul.f32 %v3102, %v3115
  %3119 = vrot.lane.b32.xlu0 %v3117, 64
  %v3120 = vpop.permute.xlu0 %3119
  %v3122 = vadd.f32 %v3086, %v3120
  %v3123 = vtanh.pop %v3122
  %v3124 = vsub.f32 1.0, %v3113
  %3126 = vrot.lane.b32.xlu0 %v3123, 96
  %v3127 = vpop.permute.xlu0 %3126
  %v3129 = vmul.f32 %v3124, %v3127
  %v3130 = vmul.f32 %v3113, %v2817
  %v3131 = vadd.f32 %v3129, %v3130
  %v3132 = vpack.c.bf16 %v3131, %v3131
  %v3133 = vld [vmem:[%s22] sm:$0xf]
  %v3134 = vld [vmem:[%s22 + $0x4] sm:$0xf]
  %v3135 = vld [vmem:[%s22 + $0x8] sm:$0xf]
  %v3136 = vld [vmem:[%s22 + $0xc] sm:$0xf]
  %v3137 = vld [vmem:[%s23] sm:$0x1]
  %v3139 = vlaneseq
  %v3140 = vshrl.u32 %v3139, 7
  %v3141 = vsub.s32 0, %v3140
  %v3142 = vrot.slane %v3137, %v3141
  %3145 = vrot.lane.b32.xlu0 %v3132, 96
  %v3146 = vpop.permute.xlu0 %3145
  %v3151 = vunpack.c.l.b16 %v3133
  %v3152 = vunpack.c.l.b16 %v3134
  %v3153 = vunpack.c.l.b16 %v3135
  %v3154 = vunpack.c.l.b16 %v3136
  %v3155 = vpack.c.b16 %v3152, %v3151
  %v3156 = vpack.c.b16 %v3154, %v3153
  %v3160 = vsel %vm191, %v3146, 0
  %3162 = vmatprep.subr.bf16.mxu0 0
  %3163 = vmatpush1.bf16.msra.mxu0 %v3155
  %3164 = vmatprep.subr.bf16.mxu0 0
  %3165 = vmatpush1.bf16.msra.mxu0 %v3156
  %3166 = vmatprep.subr.bf16.mxu0 0
  %3167 = vmatpush1.bf16.msra.mxu0 0
  %3168 = vmatprep.subr.bf16.mxu0 0
  %3169 = vmatpush1.bf16.msra.mxu0 0
  %3170 = vmatprep.subr.bf16.mxu0 0
  %3171 = vmatpush1.bf16.msra.mxu0 0
  %3172 = vmatprep.subr.bf16.mxu0 0
  %3173 = vmatpush1.bf16.msra.mxu0 0
  %3174 = vmatprep.subr.bf16.mxu0 0
  %3175 = vmatpush1.bf16.msra.mxu0 0
  %3176 = vmatprep.subr.bf16.mxu0 0
  %3177 = vmatpush1.bf16.msra.mxu0 0
  %3178 = vmatprep.subr.bf16.mxu0 0
  %3179 = vmatpush1.bf16.msra.mxu0 0
  %3180 = vmatprep.subr.bf16.mxu0 0
  %3181 = vmatpush1.bf16.msra.mxu0 0
  %3182 = vmatprep.subr.bf16.mxu0 0
  %3183 = vmatpush1.bf16.msra.mxu0 0
  %3184 = vmatprep.subr.bf16.mxu0 0
  %3185 = vmatpush1.bf16.msra.mxu0 0
  %3186 = vmatprep.subr.bf16.mxu0 0
  %3187 = vmatpush1.bf16.msra.mxu0 0
  %3188 = vmatprep.subr.bf16.mxu0 0
  %3189 = vmatpush1.bf16.msra.mxu0 0
  %3190 = vmatprep.subr.bf16.mxu0 0
  %3191 = vmatpush1.bf16.msra.mxu0 0
  %3192 = vmatprep.subr.bf16.mxu0 0
  %3193 = vmatpush1.bf16.msra.mxu0 0
  %3194 = vmatprep.mubr.bf16.mxu0 0
  %3195 = vmatmul.mubr.bf16.gmra.mrb[0].mxu0 %v3160
  %v3196 = vpop.f32.mrb[0].mxu0
  %v3197 = vadd.f32 %v3142, %v3196
  %v3198 = vpop.f32.mrb[0].mxu0
  %v3199 = vpop.f32.mrb[0].mxu0
  %v3200 = vpop.f32.mrb[0].mxu0
  %3201 = vdwg.mxu0
  %3202 = vst [vmem:[%s25 + $0x4] sm:$0x3] %v3197
  %v3203 = vsel %vm2574, %v3197, -inf
  %3204 = vmax.xlane.f32.xlu0 %v3203
  %v3205 = vpop.xlane.xlu0 %3204
  %vm3206 = vcmp.eq.f32.partialorder %v3197, %v3205
  %v3207 = vsel %vm3206, %v84, 128
  %v3208 = vsel %vm2574, %v3207, 2147483647
  %v3209 = vand.u32 %v3208, 65535
  %v3210 = vshra.s32 %v3208, 16
  %v3211 = vcvt.s32.f32 %v3209
  %v3212 = vcvt.s32.f32 %v3210
  %3213 = vmin.xlane.f32.xlu0 %v3212
  %v3214 = vpop.xlane.xlu0 %3213
  %vm3215 = vcmp.eq.f32.partialorder %v3212, %v3214
  %v3216 = vsel %vm3215, %v3211, inf
  %3217 = vmin.xlane.f32.xlu0 %v3216
  %v3218 = vpop.xlane.xlu0 %3217
  %v3219 = vcvt.f32.s32 %v3218
  %v3220 = vcvt.f32.s32 %v3214
  %v3221 = vshll.u32 %v3220, 16
  %v3222 = vadd.s32 %v3221, %v3219
  %vm3223 = vcmp.eq.s32.totalorder %v84, %v3222
  %v3224 = vsel %vm3223, 1, 0
  %v3225 = vcvt.s32.f32 %v3224
  %v3226 = vld [vmem:[%s24] sm:$0xff]
  %v3227 = vld [vmem:[%s24 + $0x8] sm:$0xff]
  %v3228 = vld [vmem:[%s24 + $0x10] sm:$0xff]
  %v3229 = vld [vmem:[%s24 + $0x18] sm:$0xff]
  %v3230 = vld [vmem:[%s24 + $0x20] sm:$0xff]
  %v3231 = vld [vmem:[%s24 + $0x28] sm:$0xff]
  %v3232 = vld [vmem:[%s24 + $0x30] sm:$0xff]
  %v3233 = vld [vmem:[%s24 + $0x38] sm:$0xff]
  %v3234 = vld [vmem:[%s24 + $0x40] sm:$0xff]
  %v3235 = vld [vmem:[%s24 + $0x48] sm:$0xff]
  %v3236 = vld [vmem:[%s24 + $0x50] sm:$0xff]
  %v3237 = vld [vmem:[%s24 + $0x58] sm:$0xff]
  %v3238 = vld [vmem:[%s24 + $0x60] sm:$0xff]
  %v3239 = vld [vmem:[%s24 + $0x68] sm:$0xff]
  %v3240 = vld [vmem:[%s24 + $0x70] sm:$0xff]
  %v3241 = vld [vmem:[%s24 + $0x78] sm:$0xff]
  %3242 = vmatprep.subr.mxu0 0.0
  %3243 = vmatpush1.msra.mxu0 %v3226
  %3244 = vmatprep.subr.mxu0 0.0
  %3245 = vmatpush1.msra.mxu0 %v3227
  %3246 = vmatprep.subr.mxu0 0.0
  %3247 = vmatpush1.msra.mxu0 %v3228
  %3248 = vmatprep.subr.mxu0 0.0
  %3249 = vmatpush1.msra.mxu0 %v3229
  %3250 = vmatprep.subr.mxu0 0.0
  %3251 = vmatpush1.msra.mxu0 %v3230
  %3252 = vmatprep.subr.mxu0 0.0
  %3253 = vmatpush1.msra.mxu0 %v3231
  %3254 = vmatprep.subr.mxu0 0.0
  %3255 = vmatpush1.msra.mxu0 %v3232
  %3256 = vmatprep.subr.mxu0 0.0
  %3257 = vmatpush1.msra.mxu0 %v3233
  %3258 = vmatprep.subr.mxu0 0.0
  %3259 = vmatpush1.msra.mxu0 %v3234
  %3260 = vmatprep.subr.mxu0 0.0
  %3261 = vmatpush1.msra.mxu0 %v3235
  %3262 = vmatprep.subr.mxu0 0.0
  %3263 = vmatpush1.msra.mxu0 %v3236
  %3264 = vmatprep.subr.mxu0 0.0
  %3265 = vmatpush1.msra.mxu0 %v3237
  %3266 = vmatprep.subr.mxu0 0.0
  %3267 = vmatpush1.msra.mxu0 %v3238
  %3268 = vmatprep.subr.mxu0 0.0
  %3269 = vmatpush1.msra.mxu0 %v3239
  %3270 = vmatprep.subr.mxu0 0.0
  %3271 = vmatpush1.msra.mxu0 %v3240
  %3272 = vmatprep.subr.mxu0 0.0
  %3273 = vmatpush1.msra.mxu0 %v3241
  %3274 = vmatprep.subr.mxu0 0.0
  %3275 = vmatpush1.msra.mxu0 0.0
  %3276 = vmatprep.subr.mxu0 0.0
  %3277 = vmatpush1.msra.mxu0 0.0
  %3278 = vmatprep.subr.mxu0 0.0
  %3279 = vmatpush1.msra.mxu0 0.0
  %3280 = vmatprep.subr.mxu0 0.0
  %3281 = vmatpush1.msra.mxu0 0.0
  %3282 = vmatprep.subr.mxu0 0.0
  %3283 = vmatpush1.msra.mxu0 0.0
  %3284 = vmatprep.subr.mxu0 0.0
  %3285 = vmatpush1.msra.mxu0 0.0
  %3286 = vmatprep.subr.mxu0 0.0
  %3287 = vmatpush1.msra.mxu0 0.0
  %3288 = vmatprep.subr.mxu0 0.0
  %3289 = vmatpush1.msra.mxu0 0.0
  %3290 = vmatprep.subr.mxu0 0.0
  %3291 = vmatpush1.msra.mxu0 0.0
  %3292 = vmatprep.subr.mxu0 0.0
  %3293 = vmatpush1.msra.mxu0 0.0
  %3294 = vmatprep.subr.mxu0 0.0
  %3295 = vmatpush1.msra.mxu0 0.0
  %3296 = vmatprep.subr.mxu0 0.0
  %3297 = vmatpush1.msra.mxu0 0.0
  %3298 = vmatprep.subr.mxu0 0.0
  %3299 = vmatpush1.msra.mxu0 0.0
  %3300 = vmatprep.subr.mxu0 0.0
  %3301 = vmatpush1.msra.mxu0 0.0
  %3302 = vmatprep.subr.mxu0 0.0
  %3303 = vmatpush1.msra.mxu0 0.0
  %3304 = vmatprep.subr.mxu0 0.0
  %3305 = vmatpush1.msra.mxu0 0.0
  %3306 = vmatprep.mubr.f32.mxu0 0.0
  %3307 = vmatmul.mubr.f32.gmra.mrb[0].mxu0 %v3225
  %v3308 = vpop.f32.mrb[0].mxu0
  %v3309 = vadd.f32 0.0, %v3308
  %v3310 = vpop.f32.mrb[0].mxu0
  %3311 = vdwg.mxu0
  %v3312 = vsel %vm191, %v3309, %v3131
  %v3313 = vpack.c.bf16 %v3312, %v3312
  %v3314 = vld [vmem:[%s20] sm:$0xff]
  %v3315 = vld [vmem:[%s20 + $0x8] sm:$0xff]
  %v3316 = vld [vmem:[%s20 + $0x10] sm:$0xff]
  %v3317 = vld [vmem:[%s20 + $0x18] sm:$0xff]
  %v3318 = vld [vmem:[%s20 + $0x20] sm:$0xff]
  %v3319 = vld [vmem:[%s20 + $0x28] sm:$0xff]
  %v3320 = vld [vmem:[%s20 + $0x30] sm:$0xff]
  %v3321 = vld [vmem:[%s20 + $0x38] sm:$0xff]
  %v3330 = vunpack.c.l.b16 %v3314
  %v3331 = vunpack.c.h.b16 %v3314
  %v3332 = vunpack.c.l.b16 %v3315
  %v3333 = vunpack.c.h.b16 %v3315
  %v3334 = vunpack.c.l.b16 %v3316
  %v3335 = vunpack.c.h.b16 %v3316
  %v3336 = vunpack.c.l.b16 %v3317
  %v3337 = vunpack.c.h.b16 %v3317
  %v3338 = vunpack.c.l.b16 %v3318
  %v3339 = vunpack.c.h.b16 %v3318
  %v3340 = vunpack.c.l.b16 %v3319
  %v3341 = vunpack.c.h.b16 %v3319
  %v3342 = vunpack.c.l.b16 %v3320
  %v3343 = vunpack.c.h.b16 %v3320
  %v3344 = vunpack.c.l.b16 %v3321
  %v3345 = vunpack.c.h.b16 %v3321
  %v3346 = vpack.c.b16 %v3332, %v3330
  %v3347 = vpack.c.b16 %v3333, %v3331
  %v3348 = vpack.c.b16 %v3336, %v3334
  %v3349 = vpack.c.b16 %v3337, %v3335
  %v3350 = vpack.c.b16 %v3340, %v3338
  %v3351 = vpack.c.b16 %v3341, %v3339
  %v3352 = vpack.c.b16 %v3344, %v3342
  %v3353 = vpack.c.b16 %v3345, %v3343
  %v3363 = vsel %vm107, %v3313, 0
  %3365 = vmatprep.subr.bf16.mxu0 %v3347
  %3366 = vmatpush1.bf16.msra.mxu0 %v3346
  %3367 = vmatprep.subr.bf16.mxu0 %v3349
  %3368 = vmatpush1.bf16.msra.mxu0 %v3348
  %3369 = vmatprep.subr.bf16.mxu0 %v3351
  %3370 = vmatpush1.bf16.msra.mxu0 %v3350
  %3371 = vmatprep.subr.bf16.mxu0 %v3353
  %3372 = vmatpush1.bf16.msra.mxu0 %v3352
  %3373 = vmatprep.subr.bf16.mxu0 0
  %3374 = vmatpush1.bf16.msra.mxu0 0
  %3375 = vmatprep.subr.bf16.mxu0 0
  %3376 = vmatpush1.bf16.msra.mxu0 0
  %3377 = vmatprep.subr.bf16.mxu0 0
  %3378 = vmatpush1.bf16.msra.mxu0 0
  %3379 = vmatprep.subr.bf16.mxu0 0
  %3380 = vmatpush1.bf16.msra.mxu0 0
  %3381 = vmatprep.subr.bf16.mxu0 0
  %3382 = vmatpush1.bf16.msra.mxu0 0
  %3383 = vmatprep.subr.bf16.mxu0 0
  %3384 = vmatpush1.bf16.msra.mxu0 0
  %3385 = vmatprep.subr.bf16.mxu0 0
  %3386 = vmatpush1.bf16.msra.mxu0 0
  %3387 = vmatprep.subr.bf16.mxu0 0
  %3388 = vmatpush1.bf16.msra.mxu0 0
  %3389 = vmatprep.subr.bf16.mxu0 0
  %3390 = vmatpush1.bf16.msra.mxu0 0
  %3391 = vmatprep.subr.bf16.mxu0 0
  %3392 = vmatpush1.bf16.msra.mxu0 0
  %3393 = vmatprep.subr.bf16.mxu0 0
  %3394 = vmatpush1.bf16.msra.mxu0 0
  %3395 = vmatprep.subr.bf16.mxu0 0
  %3396 = vmatpush1.bf16.msra.mxu0 0
  %3397 = vmatprep.mubr.bf16.mxu0 0
  %3398 = vmatmul.mubr.bf16.gmra.mrb[0].mxu0 %v3363
  %v3399 = vpop.f32.mrb[0].mxu0
  %v3400 = vadd.f32 %v2372, %v3399
  %v3401 = vpop.f32.mrb[0].mxu0
  %v3402 = vadd.f32 %v2376, %v3401
  %v3403 = vpop.f32.mrb[0].mxu0
  %v3404 = vpop.f32.mrb[0].mxu0
  %3405 = vdwg.mxu0
  %3407 = vrot.lane.b32.xlu0 %v3400, 32
  %v3408 = vpop.permute.xlu0 %3407
  %v3410 = vadd.f32 %v3400, %v3408
  %v3411 = vxor.u32 %v3410, 2147483648
  %v3412 = vmul.f32 %v3411, 1.442695
  %v3413 = vpow.pop %v3412
  %v3414 = vadd.f32 %v3413, 1.0
  %v3415 = vrcp.pop %v3414
  %v3416 = vmul.f32 1.0, %v3415
  %3418 = vrot.lane.b32.xlu0 %v3402, 32
  %v3419 = vpop.permute.xlu0 %3418
  %v3421 = vadd.f32 %v3400, %v3419
  %v3422 = vxor.u32 %v3421, 2147483648
  %v3423 = vmul.f32 %v3422, 1.442695
  %v3424 = vpow.pop %v3423
  %v3425 = vadd.f32 %v3424, 1.0
  %v3426 = vrcp.pop %v3425
  %v3427 = vmul.f32 1.0, %v3426
  %3428 = vrot.lane.b32.xlu0 %v3402, 96
  %v3429 = vpop.permute.xlu0 %3428
  %v3431 = vmul.f32 %v3416, %v3429
  %3433 = vrot.lane.b32.xlu0 %v3431, 64
  %v3434 = vpop.permute.xlu0 %3433
  %v3436 = vadd.f32 %v3400, %v3434
  %v3437 = vtanh.pop %v3436
  %v3438 = vsub.f32 1.0, %v3427
  %3440 = vrot.lane.b32.xlu0 %v3437, 96
  %v3441 = vpop.permute.xlu0 %3440
  %v3443 = vmul.f32 %v3438, %v3441
  %v3444 = vmul.f32 %v3427, %v3131
  %v3445 = vadd.f32 %v3443, %v3444
  %v3446 = vpack.c.bf16 %v3445, %v3445
  %v3447 = vld [vmem:[%s22] sm:$0xf]
  %v3448 = vld [vmem:[%s22 + $0x4] sm:$0xf]
  %v3449 = vld [vmem:[%s22 + $0x8] sm:$0xf]
  %v3450 = vld [vmem:[%s22 + $0xc] sm:$0xf]
  %v3451 = vld [vmem:[%s23] sm:$0x1]
  %v3453 = vlaneseq
  %v3454 = vshrl.u32 %v3453, 7
  %v3455 = vsub.s32 0, %v3454
  %v3456 = vrot.slane %v3451, %v3455
  %3459 = vrot.lane.b32.xlu0 %v3446, 96
  %v3460 = vpop.permute.xlu0 %3459
  %v3465 = vunpack.c.l.b16 %v3447
  %v3466 = vunpack.c.l.b16 %v3448
  %v3467 = vunpack.c.l.b16 %v3449
  %v3468 = vunpack.c.l.b16 %v3450
  %v3469 = vpack.c.b16 %v3466, %v3465
  %v3470 = vpack.c.b16 %v3468, %v3467
  %v3474 = vsel %vm191, %v3460, 0
  %3476 = vmatprep.subr.bf16.mxu0 0
  %3477 = vmatpush1.bf16.msra.mxu0 %v3469
  %3478 = vmatprep.subr.bf16.mxu0 0
  %3479 = vmatpush1.bf16.msra.mxu0 %v3470
  %3480 = vmatprep.subr.bf16.mxu0 0
  %3481 = vmatpush1.bf16.msra.mxu0 0
  %3482 = vmatprep.subr.bf16.mxu0 0
  %3483 = vmatpush1.bf16.msra.mxu0 0
  %3484 = vmatprep.subr.bf16.mxu0 0
  %3485 = vmatpush1.bf16.msra.mxu0 0
  %3486 = vmatprep.subr.bf16.mxu0 0
  %3487 = vmatpush1.bf16.msra.mxu0 0
  %3488 = vmatprep.subr.bf16.mxu0 0
  %3489 = vmatpush1.bf16.msra.mxu0 0
  %3490 = vmatprep.subr.bf16.mxu0 0
  %3491 = vmatpush1.bf16.msra.mxu0 0
  %3492 = vmatprep.subr.bf16.mxu0 0
  %3493 = vmatpush1.bf16.msra.mxu0 0
  %3494 = vmatprep.subr.bf16.mxu0 0
  %3495 = vmatpush1.bf16.msra.mxu0 0
  %3496 = vmatprep.subr.bf16.mxu0 0
  %3497 = vmatpush1.bf16.msra.mxu0 0
  %3498 = vmatprep.subr.bf16.mxu0 0
  %3499 = vmatpush1.bf16.msra.mxu0 0
  %3500 = vmatprep.subr.bf16.mxu0 0
  %3501 = vmatpush1.bf16.msra.mxu0 0
  %3502 = vmatprep.subr.bf16.mxu0 0
  %3503 = vmatpush1.bf16.msra.mxu0 0
  %3504 = vmatprep.subr.bf16.mxu0 0
  %3505 = vmatpush1.bf16.msra.mxu0 0
  %3506 = vmatprep.subr.bf16.mxu0 0
  %3507 = vmatpush1.bf16.msra.mxu0 0
  %3508 = vmatprep.mubr.bf16.mxu0 0
  %3509 = vmatmul.mubr.bf16.gmra.mrb[0].mxu0 %v3474
  %v3510 = vpop.f32.mrb[0].mxu0
  %v3511 = vadd.f32 %v3456, %v3510
  %v3512 = vpop.f32.mrb[0].mxu0
  %v3513 = vpop.f32.mrb[0].mxu0
  %v3514 = vpop.f32.mrb[0].mxu0
  %3515 = vdwg.mxu0
  %3516 = vst [vmem:[%s25 + $0x6] sm:$0x3] %v3511
  // Predicated region
  $region102: #{date_conversion_forward.1} parent=0 // pred_check
    _
  $region103: #{date_conversion_forward.1} parent=0 // pred_check_branch
    %3518 = sbr.rel (0) target = $region105
  $region104: #{date_conversion_forward.1} parent=0 // pred_region
    _
  $region105: #{date_conversion_forward.1} parent=0 // pred_fallthru
    _
  // Predicated region
  $region106: #{date_conversion_forward.1} parent=0 // pred_check
    _
  $region107: #{date_conversion_forward.1} parent=0 // pred_check_branch
    %3520 = sbr.rel (0) target = $region109
  $region108: #{date_conversion_forward.1} parent=0 // pred_region
    _
  $region109: #{date_conversion_forward.1} parent=0 // pred_fallthru
    _

</llo_original>
